<compile_context>
chip_gen: v7x
topology: tpu7x:2x2x1
jax: 0.10.0
libtpu: 0.0.40
codegen_flags: <defaults>
</compile_context>

<pallas_src>
import jax
import jax.numpy as jnp
from jax.experimental import pallas as pl
from jax.experimental.pallas import tpu as pltpu


# ----------------------------------- kernel -----------------------------------

def _reflect_conv_kernel(x_ref, wk_ref, b_ref, o_ref):
    """One grid step = full (upsampled) image of one batch element.

    x_ref : (1, (Ho+2)*Wo, 3*Cin) bf16  H-reflection-padded image, spatially
                                        flattened, with the 3 kw taps (W-reflection
                                        already applied) stacked along the K axis.
    wk_ref: (3, 3*Cin, Cout)      bf16  per-kh weight slabs.
    b_ref : (1, Cout)             f32
    o_ref : (1, Ho*Wo, Cout)
    """
    hw = o_ref.shape[1]                       # Ho * Wo   (static)
    w_cols = (x_ref.shape[1] - hw) // 2       # Wo        (static)

    # kh = 0, bias folded into the first matmul result.
    acc = jnp.dot(x_ref[0, 0:hw, :], wk_ref[0],
                  preferred_element_type=jnp.float32) + b_ref[...]
    # kh = 1, 2: contiguous, sublane-aligned row windows of the flattened image.
    acc = acc + jnp.dot(x_ref[0, w_cols:w_cols + hw, :], wk_ref[1],
                        preferred_element_type=jnp.float32)
    acc = acc + jnp.dot(x_ref[0, 2 * w_cols:2 * w_cols + hw, :], wk_ref[2],
                        preferred_element_type=jnp.float32)

    o_ref[0] = acc.astype(o_ref.dtype)


# ----------------------------------- wrapper -----------------------------------

def upsample_conv_pallas(x_nchw, weight, bias, *, stride=1, upsample=None):
    """UpsampleConvLayer forward. x_nchw: (N, Cin, H, W); weight: (Cout, Cin, k, k)."""
    N, Cin, H, W = x_nchw.shape
    Cout, Cin_w, kh, kw = weight.shape
    # TODO(synk): only kernel_size=3 / stride=1 (the transformer_net decoder config)
    #             and integer nearest-neighbour scale factors are implemented.
    assert kh == 3 and kw == 3 and stride == 1 and Cin_w == Cin

    # ---- XLA-side data-movement glue (upsample + reflection taps), bf16 for the MXU
    x = jnp.transpose(x_nchw, (0, 2, 3, 1)).astype(jnp.bfloat16)       # NCHW -> NHWC
    if upsample:
        u = int(upsample)
        x = jnp.repeat(jnp.repeat(x, u, axis=1), u, axis=2)            # nearest
    Ho, Wo = x.shape[1], x.shape[2]
    assert Ho >= 2 and Wo >= 2, "reflection pad needs spatial extent >= 2"

    # W-direction reflection fused into the kw taps, stacked along channels:
    #   left[..., w]  = x[..., w-1]  (w=0    -> reflected x[..., 1])
    #   right[..., w] = x[..., w+1]  (w=Wo-1 -> reflected x[..., Wo-2])
    left = jnp.concatenate([x[:, :, 1:2, :], x[:, :, :Wo - 1, :]], axis=2)
    right = jnp.concatenate([x[:, :, 1:, :], x[:, :, Wo - 2:Wo - 1, :]], axis=2)
    xcat = jnp.concatenate([left, x, right], axis=-1)                  # (N, Ho, Wo, 3*Cin)

    # H-direction reflection pad, then flatten spatial so each kh tap is one
    # contiguous row window of length Ho*Wo.
    xcat = jnp.concatenate([xcat[:, 1:2], xcat, xcat[:, Ho - 2:Ho - 1]], axis=1)
    xflat = xcat.reshape(N, (Ho + 2) * Wo, 3 * Cin)                    # (N, P, 3*Cin)

    # torch (Cout, Cin, kh, kw) -> (kh, kw, Cin, Cout) -> (3, 3*Cin, Cout); bf16.
    wk = jnp.transpose(weight, (2, 3, 1, 0)).reshape(3, 3 * Cin, Cout).astype(jnp.bfloat16)
    b = bias.reshape(1, Cout).astype(jnp.float32)

    P = (Ho + 2) * Wo
    HW = Ho * Wo
    out_itemsize = jnp.dtype(x_nchw.dtype).itemsize
    in_block_bytes = P * 3 * Cin * 2
    out_block_bytes = HW * Cout * out_itemsize
    w_bytes = 3 * 3 * Cin * Cout * 2 + Cout * 4
    vmem_bytes = int(min(100 * 2**20,
                         max(24 * 2**20,
                             2 * (in_block_bytes + out_block_bytes) + w_bytes + (2 << 20))))

    x_spec = pl.BlockSpec((1, P, 3 * Cin), lambda n: (n, 0, 0))
    w_spec = pl.BlockSpec((3, 3 * Cin, Cout), lambda n: (0, 0, 0))
    b_spec = pl.BlockSpec((1, Cout), lambda n: (0, 0))
    o_spec = pl.BlockSpec((1, HW, Cout), lambda n: (n, 0, 0))

    out = pl.pallas_call(
        _reflect_conv_kernel,
        out_shape=jax.ShapeDtypeStruct((N, HW, Cout), x_nchw.dtype),
        grid_spec=pltpu.PrefetchScalarGridSpec(
            num_scalar_prefetch=0,
            grid=(N,),
            in_specs=[x_spec, w_spec, b_spec],
            out_specs=o_spec,
        ),
        compiler_params=pltpu.CompilerParams(
            # Independent batch elements -> shard the grid across TensorCores on v7x.
            dimension_semantics=("parallel",),
            vmem_limit_bytes=vmem_bytes,
        ),
    )(xflat, wk, b)

    out = out.reshape(N, Ho, Wo, Cout)
    return jnp.transpose(out, (0, 3, 1, 2))                            # NHWC -> NCHW


# ------------------------------- pure-JAX reference -----------------------------

def upsample_conv_ref(x_nchw, weight, bias, *, stride=1, upsample=None):
    x = x_nchw
    if upsample:
        u = int(upsample)
        x = jnp.repeat(jnp.repeat(x, u, axis=2), u, axis=3)            # nearest, NCHW
    x = jnp.transpose(x, (0, 2, 3, 1))                                 # NHWC
    p = weight.shape[-1] // 2
    xp = jnp.pad(x, ((0, 0), (p, p), (p, p), (0, 0)), mode="reflect")
    w_hwio = jnp.transpose(weight, (2, 3, 1, 0))
    y = jax.lax.conv_general_dilated(
        xp, w_hwio, window_strides=(stride, stride), padding="VALID",
        dimension_numbers=("NHWC", "HWIO", "NHWC"),
        precision=jax.lax.Precision.HIGHEST)
    y = y + bias[None, None, None, :]
    return jnp.transpose(y, (0, 3, 1, 2))


# ------------------------------------- main -------------------------------------

if __name__ == "__main__":
    N, Cin, H, W = 2, 4, 16, 16
    Cout, ksize, stride, up = 8, 3, 1, 2

    kx, kw_key, kb_key = jax.random.split(jax.random.PRNGKey(0), 3)
    x = jax.random.normal(kx, (N, Cin, H, W), jnp.float32)
    weight = 0.1 * jax.random.normal(kw_key, (Cout, Cin, ksize, ksize), jnp.float32)
    bias = 0.1 * jax.random.normal(kb_key, (Cout,), jnp.float32)

    # With nearest upsample x2 (the transformer_net decoder configuration).
    out = jax.block_until_ready(
        upsample_conv_pallas(x, weight, bias, stride=stride, upsample=up))
    ref = upsample_conv_ref(x, weight, bias, stride=stride, upsample=up)
    assert out.shape == (N, Cout, H * up, W * up)
    err = float(jnp.max(jnp.abs(out - ref)))
    assert jnp.allclose(out, ref, atol=2e-2, rtol=2e-2), err           # bf16 MXU operands

    # Without upsample (upsample=None branch).
    out2 = jax.block_until_ready(
        upsample_conv_pallas(x, weight, bias, stride=stride, upsample=None))
    ref2 = upsample_conv_ref(x, weight, bias, stride=stride, upsample=None)
    assert out2.shape == (N, Cout, H, W)
    err2 = float(jnp.max(jnp.abs(out2 - ref2)))
    assert jnp.allclose(out2, ref2, atol=2e-2, rtol=2e-2), err2

    print("KERNEL_OK")
</pallas_src>

<mosaic_0001>
module attributes {stable_mosaic.version = 11 : i64} {
  func.func @_reflect_conv_kernel(%arg0: i32, %arg1: memref<1x1088x12xbf16, #tpu.memory_space<vmem>>, %arg2: memref<3x12x8xbf16, #tpu.memory_space<vmem>>, %arg3: memref<1x8xf32, #tpu.memory_space<vmem>>, %arg4: memref<1x1024x8xf32, #tpu.memory_space<vmem>>) attributes {dimension_semantics = [#tpu.dimension_semantics<parallel>], iteration_bounds = array<i64: 2>, scalar_prefetch = 0 : i64, scratch_operands = 0 : i64, tpu.core_type = #tpu.core_type<tc>, window_params = [{transform_indices = @transform_0, window_bounds = array<i64: 1, 1088, 12>}, {pipeline_mode = #tpu.pipeline_mode<synchronous>, transform_indices = @transform_1, window_bounds = array<i64: 3, 12, 8>}, {pipeline_mode = #tpu.pipeline_mode<synchronous>, transform_indices = @transform_2, window_bounds = array<i64: 1, 8>}, {transform_indices = @transform_3, window_bounds = array<i64: 1, 1024, 8>}]} {
    %c0 = arith.constant 0 : index
    %c0_0 = arith.constant 0 : index
    %c0_1 = arith.constant 0 : index
    %0 = vector.load %arg1[%c0, %c0_0, %c0_1] : memref<1x1088x12xbf16, #tpu.memory_space<vmem>>, vector<1x1024x12xbf16>
    %1 = vector.shape_cast %0 : vector<1x1024x12xbf16> to vector<1024x12xbf16>
    %c0_2 = arith.constant 0 : index
    %c0_3 = arith.constant 0 : index
    %c0_4 = arith.constant 0 : index
    %2 = vector.load %arg2[%c0_2, %c0_3, %c0_4] : memref<3x12x8xbf16, #tpu.memory_space<vmem>>, vector<1x12x8xbf16>
    %3 = vector.shape_cast %2 : vector<1x12x8xbf16> to vector<12x8xbf16>
    %cst = arith.constant dense<0.000000e+00> : vector<1024x8xf32>
    %4 = tpu.matmul %1, %3, %cst {dimension_numbers = #tpu.dot_dimension_numbers<[1], [0], [0], [1], [0, 0, 1, 1], [], []>} : vector<1024x12xbf16>, vector<12x8xbf16>, vector<1024x8xf32> -> vector<1024x8xf32>
    %c0_5 = arith.constant 0 : index
    %c0_6 = arith.constant 0 : index
    %5 = vector.load %arg3[%c0_5, %c0_6] : memref<1x8xf32, #tpu.memory_space<vmem>>, vector<1x8xf32>
    %6 = vector.broadcast %5 : vector<1x8xf32> to vector<1024x8xf32>
    %7 = arith.addf %4, %6 : vector<1024x8xf32>
    %c0_7 = arith.constant 0 : index
    %c32 = arith.constant 32 : index
    %c0_8 = arith.constant 0 : index
    %8 = vector.load %arg1[%c0_7, %c32, %c0_8] : memref<1x1088x12xbf16, #tpu.memory_space<vmem>>, vector<1x1024x12xbf16>
    %9 = vector.shape_cast %8 : vector<1x1024x12xbf16> to vector<1024x12xbf16>
    %c1 = arith.constant 1 : index
    %c0_9 = arith.constant 0 : index
    %c0_10 = arith.constant 0 : index
    %10 = vector.load %arg2[%c1, %c0_9, %c0_10] : memref<3x12x8xbf16, #tpu.memory_space<vmem>>, vector<1x12x8xbf16>
    %11 = vector.shape_cast %10 : vector<1x12x8xbf16> to vector<12x8xbf16>
    %cst_11 = arith.constant dense<0.000000e+00> : vector<1024x8xf32>
    %12 = tpu.matmul %9, %11, %cst_11 {dimension_numbers = #tpu.dot_dimension_numbers<[1], [0], [0], [1], [0, 0, 1, 1], [], []>} : vector<1024x12xbf16>, vector<12x8xbf16>, vector<1024x8xf32> -> vector<1024x8xf32>
    %13 = arith.addf %7, %12 : vector<1024x8xf32>
    %c0_12 = arith.constant 0 : index
    %c64 = arith.constant 64 : index
    %c0_13 = arith.constant 0 : index
    %14 = vector.load %arg1[%c0_12, %c64, %c0_13] : memref<1x1088x12xbf16, #tpu.memory_space<vmem>>, vector<1x1024x12xbf16>
    %15 = vector.shape_cast %14 : vector<1x1024x12xbf16> to vector<1024x12xbf16>
    %c2 = arith.constant 2 : index
    %c0_14 = arith.constant 0 : index
    %c0_15 = arith.constant 0 : index
    %16 = vector.load %arg2[%c2, %c0_14, %c0_15] : memref<3x12x8xbf16, #tpu.memory_space<vmem>>, vector<1x12x8xbf16>
    %17 = vector.shape_cast %16 : vector<1x12x8xbf16> to vector<12x8xbf16>
    %cst_16 = arith.constant dense<0.000000e+00> : vector<1024x8xf32>
    %18 = tpu.matmul %15, %17, %cst_16 {dimension_numbers = #tpu.dot_dimension_numbers<[1], [0], [0], [1], [0, 0, 1, 1], [], []>} : vector<1024x12xbf16>, vector<12x8xbf16>, vector<1024x8xf32> -> vector<1024x8xf32>
    %19 = arith.addf %13, %18 : vector<1024x8xf32>
    %c0_17 = arith.constant 0 : index
    %c0_18 = arith.constant 0 : index
    %c0_19 = arith.constant 0 : index
    %20 = vector.load %arg4[%c0_17, %c0_18, %c0_19] : memref<1x1024x8xf32, #tpu.memory_space<vmem>>, vector<1x1024x8xf32>
    %21 = vector.shape_cast %20 : vector<1x1024x8xf32> to vector<1024x8xf32>
    %22 = vector.shape_cast %19 : vector<1024x8xf32> to vector<1x1024x8xf32>
    tpu.vector_store %arg4[%c0_17, %c0_18, %c0_19], %22 {strides = array<i32>} : memref<1x1024x8xf32, #tpu.memory_space<vmem>>, vector<1x1024x8xf32>,
    return
  }
  func.func @transform_0(%arg0: i32) -> (i32, i32, i32) {
    %c0_i32 = arith.constant 0 : i32
    %c0_i32_0 = arith.constant 0 : i32
    %c0_i32_1 = arith.constant 0 : i32
    return %arg0, %c0_i32, %c0_i32_0 : i32, i32, i32
  }
  func.func @transform_1(%arg0: i32) -> (i32, i32, i32) {
    %c0_i32 = arith.constant 0 : i32
    %c0_i32_0 = arith.constant 0 : i32
    %c0_i32_1 = arith.constant 0 : i32
    %c0_i32_2 = arith.constant 0 : i32
    return %c0_i32, %c0_i32_0, %c0_i32_1 : i32, i32, i32
  }
  func.func @transform_2(%arg0: i32) -> (i32, i32) {
    %c0_i32 = arith.constant 0 : i32
    %c0_i32_0 = arith.constant 0 : i32
    %c0_i32_1 = arith.constant 0 : i32
    return %c0_i32, %c0_i32_0 : i32, i32
  }
  func.func @transform_3(%arg0: i32) -> (i32, i32, i32) {
    %c0_i32 = arith.constant 0 : i32
    %c0_i32_0 = arith.constant 0 : i32
    %c0_i32_1 = arith.constant 0 : i32
    return %arg0, %c0_i32, %c0_i32_0 : i32, i32, i32
  }
}

</mosaic_0001>

<llo_original>
// kernel: tpu_custom_call.1
$region0: #{tpu_custom_call.1}
  #allocation0 [shape = 'u32[]', space=smem, size = 0x4, offset = 0x4, fixed_abs, tag = 'smem constant byte address 0x4 - core index']
  #allocation1 [shape = 'u32[144,128]{1,0:T(1,128)}', space=vmem, size = 0x12000, scoped, tag = 'internal scratch']
  %s0 = inlined_call_operand.vmem [shape: bf16[2,1088,12], index: 0, kind: input, shape index: {}]
  %s1 = inlined_call_operand.vmem [shape: bf16[3,12,8], index: 1, kind: input, shape index: {}]
  %s2 = inlined_call_operand.vmem [shape: f32[1,8], index: 2, kind: input, shape index: {}]
  %s3 = inlined_call_operand.vmem [shape: f32[2,1024,8], index: 3, kind: output, shape index: {}]
  %s4 = sld [smem:[#allocation0]]
  $region45: #{tpu_custom_call.1} parent=0
    _
  %s6 = ssub.s32 1, %s4
  %s7 = scalar_select 0, %s6, %s4
  loop: start=0, step=1, limit=4
  $region2: #{tpu_custom_call.1} parent=0 // loop_pre_header
    _
  $region3: #{tpu_custom_call.1} parent=0 // loop_header
    %s9 = sphi 0, %s13
    %p10 = scmp.ge.s32.totalorder %s9, 4
    %s19 = sphi 0, %s21
    %s22 = sphi 0, %s19
    %s23 = sphi 0, %s22
    %s39 = sphi 0, %s23
    %s43 = sphi 0, %s43
    %s45 = sphi 0, %s43
    %s46 = sphi 0, %s45
    %s60 = sphi 0, %s46
    %s64 = sphi 0, %s64
    %s66 = sphi 0, %s64
    %s67 = sphi 0, %s66
    %s81 = sphi 0, %s67
    %s87 = sphi 0, %s89
    %s90 = sphi 0, %s87
    %s91 = sphi 0, %s90
    %s107 = sphi 0, %s91
  $region4: #{tpu_custom_call.1} parent=0 // loop_header_branch
    %12 = sbr.rel (%p10) target = $region8
  $region5: #{tpu_custom_call.1} parent=0 // loop_body
    %s14 = ssub.s32 %s9, 1
    %s15 = ssub.s32 %s9, 2
    %s16 = sadd.s32 %s9, 1
    %s17 = ssub.s32 %s9, %s16
    %p18 = scmp.eq.s32.totalorder %s17, 0
    %s20 = sadd.s32 %s19, 1
    %s21 = scalar_select %p18, %s19, %s20
    %p24 = pneg %p18
    %p25 = scmp.eq.s32.totalorder %s9, 1
    %p26 = por %p24, %p25
    %p27 = scmp.ne.s32.totalorder %s19, %s22
    %p28 = scmp.eq.s32.totalorder %s9, 0
    %p29 = por %p27, %p28
    %p30 = scmp.ne.s32.totalorder %s19, %s22
    %p31 = scmp.eq.s32.totalorder %s14, 1
    %p32 = por %p30, %p31
    %p33 = scmp.ne.s32.totalorder %s22, %s23
    %p34 = scmp.eq.s32.totalorder %s14, 0
    %p35 = por %p33, %p34
    %p36 = scmp.ne.s32.totalorder %s22, %s23
    %p37 = scmp.eq.s32.totalorder %s15, 1
    %p38 = por %p36, %p37
    %p40 = scmp.ne.s32.totalorder %s23, %s39
    %p41 = scmp.eq.s32.totalorder %s15, 0
    %p42 = por %p40, %p41
    %s44 = sadd.s32 %s43, 1
    %p47 = scmp.eq.s32.totalorder %s9, 1
    %p48 = scmp.ne.s32.totalorder %s43, %s45
    %p49 = scmp.eq.s32.totalorder %s9, 0
    %p50 = por %p48, %p49
    %p51 = scmp.ne.s32.totalorder %s43, %s45
    %p52 = scmp.eq.s32.totalorder %s14, 1
    %p53 = por %p51, %p52
    %p54 = scmp.ne.s32.totalorder %s45, %s46
    %p55 = scmp.eq.s32.totalorder %s14, 0
    %p56 = por %p54, %p55
    %p57 = scmp.ne.s32.totalorder %s45, %s46
    %p58 = scmp.eq.s32.totalorder %s15, 1
    %p59 = por %p57, %p58
    %p61 = scmp.ne.s32.totalorder %s46, %s60
    %p62 = scmp.eq.s32.totalorder %s15, 0
    %p63 = por %p61, %p62
    %s65 = sadd.s32 %s64, 1
    %p68 = scmp.eq.s32.totalorder %s9, 1
    %p69 = scmp.ne.s32.totalorder %s64, %s66
    %p70 = scmp.eq.s32.totalorder %s9, 0
    %p71 = por %p69, %p70
    %p72 = scmp.ne.s32.totalorder %s64, %s66
    %p73 = scmp.eq.s32.totalorder %s14, 1
    %p74 = por %p72, %p73
    %p75 = scmp.ne.s32.totalorder %s66, %s67
    %p76 = scmp.eq.s32.totalorder %s14, 0
    %p77 = por %p75, %p76
    %p78 = scmp.ne.s32.totalorder %s66, %s67
    %p79 = scmp.eq.s32.totalorder %s15, 1
    %p80 = por %p78, %p79
    %p82 = scmp.ne.s32.totalorder %s67, %s81
    %p83 = scmp.eq.s32.totalorder %s15, 0
    %p84 = por %p82, %p83
    %s85 = ssub.s32 %s9, %s16
    %p86 = scmp.eq.s32.totalorder %s85, 0
    %s88 = sadd.s32 %s87, 1
    %s89 = scalar_select %p86, %s87, %s88
    %p92 = pneg %p86
    %p93 = scmp.eq.s32.totalorder %s9, 1
    %p94 = por %p92, %p93
    %p95 = scmp.ne.s32.totalorder %s87, %s90
    %p96 = scmp.eq.s32.totalorder %s9, 0
    %p97 = por %p95, %p96
    %p98 = scmp.ne.s32.totalorder %s87, %s90
    %p99 = scmp.eq.s32.totalorder %s14, 1
    %p100 = por %p98, %p99
    %p101 = scmp.ne.s32.totalorder %s90, %s91
    %p102 = scmp.eq.s32.totalorder %s14, 0
    %p103 = por %p101, %p102
    %p104 = scmp.ne.s32.totalorder %s90, %s91
    %p105 = scmp.eq.s32.totalorder %s15, 1
    %p106 = por %p104, %p105
    %p108 = scmp.ne.s32.totalorder %s91, %s107
    %p109 = scmp.eq.s32.totalorder %s15, 0
    %p110 = por %p108, %p109
    %p111 = scmp.le.s32.totalorder 1, %s9
    %p112 = scmp.lt.s32.totalorder %s9, 3
    %p113 = pnand %p111, %p112
    %p114 = pneg %p113
    // Predicated region
    $region9: #{tpu_custom_call.1} parent=5 // pred_check
      _
    $region10: #{tpu_custom_call.1} parent=5 // pred_check_branch
      %116 = sbr.rel (%p113) target = $region12
    $region11: #{tpu_custom_call.1} parent=5 // pred_region
      %s117 = ssub.s32 %s9, 1
      // Predicated region
      $region13: #{tpu_custom_call.1} parent=11 // pred_check
        %p118 = pneg %p56
      $region14: #{tpu_custom_call.1} parent=11 // pred_check_branch
        %120 = sbr.rel (%p118) target = $region16
      $region15: #{tpu_custom_call.1} parent=11 // pred_region
        _
      $region16: #{tpu_custom_call.1} parent=11 // pred_fallthru
        _
      // Predicated region
      $region17: #{tpu_custom_call.1} parent=11 // pred_check
        %p121 = pneg %p77
      $region18: #{tpu_custom_call.1} parent=11 // pred_check_branch
        %123 = sbr.rel (%p121) target = $region20
      $region19: #{tpu_custom_call.1} parent=11 // pred_region
        _
      $region20: #{tpu_custom_call.1} parent=11 // pred_fallthru
        _
    $region12: #{tpu_custom_call.1} parent=5 // pred_fallthru
      _
    %p124 = scmp.lt.s32.totalorder %s9, 2
    // Predicated region
    $region21: #{tpu_custom_call.1} parent=5 // pred_check
      %p125 = pneg %p124
    $region22: #{tpu_custom_call.1} parent=5 // pred_check_branch
      %127 = sbr.rel (%p125) target = $region24
    $region23: #{tpu_custom_call.1} parent=5 // pred_region
      // Predicated region
      $region25: #{tpu_custom_call.1} parent=23 // pred_check
        %p128 = pneg %p29
      $region26: #{tpu_custom_call.1} parent=23 // pred_check_branch
        %130 = sbr.rel (%p128) target = $region28
      $region27: #{tpu_custom_call.1} parent=23 // pred_region
        %p131 = scmp.lt.s32.totalorder %s9, 1
        %s132 = scalar_select %p131, %s9, 1
        %s133 = smul.addr %s132, 136
        %s134 = smul.addr %s133, 4
        %s135 = scalar_lea.vmem %s0, %s134
      $region28: #{tpu_custom_call.1} parent=23 // pred_fallthru
        _
    $region24: #{tpu_custom_call.1} parent=5 // pred_fallthru
      _
    %p136 = scmp.le.s32.totalorder 1, %s9
    %p137 = scmp.lt.s32.totalorder %s9, 3
    %p138 = pnand %p136, %p137
    %p139 = pneg %p138
    // Predicated region
    $region29: #{tpu_custom_call.1} parent=5 // pred_check
      _
    $region30: #{tpu_custom_call.1} parent=5 // pred_check_branch
      %141 = sbr.rel (%p138) target = $region32
    $region31: #{tpu_custom_call.1} parent=5 // pred_region
      %s142 = ssub.s32 %s9, 1
      %p143 = scmp.lt.s32.totalorder %s14, 1
      %s144 = scalar_select %p143, %s14, 1
      %s145 = smul.addr %s144, 136
      %s146 = smul.addr %s145, 4
      %s147 = scalar_lea.vmem %s0, %s146
      %p148 = pneg %p35
      %p149 = pneg %p32
      %p150 = pneg %p56
      %p151 = pneg %p53
      %p152 = pneg %p77
      %p153 = pneg %p74
      %p154 = pneg %p103
      %p155 = pneg %p100
      %p156 = scmp.lt.s32.totalorder %s14, 1
      %s157 = scalar_select %p156, %s14, 1
      %s158 = smul.addr %s157, 128
      %s159 = smul.addr %s158, 8
      %s160 = scalar_lea.vmem %s3, %s159
      %p161 = scmp.lt.s32.totalorder %s14, 1
      %s162 = scalar_select %p161, %s14, 1
      %s163 = smul.addr %s162, 136
      %s164 = smul.addr %s163, 4
      %s165 = scalar_lea.vmem %s0, %s164
      %p166 = scmp.lt.s32.totalorder %s14, 1
      %s167 = scalar_select %p166, %s14, 1
      %s168 = smul.addr %s167, 128
      %s169 = smul.addr %s168, 8
      %s170 = scalar_lea.vmem %s3, %s169
      %v172 = vld [vmem:[%s165] sm:$0xf]
      %v173 = vld [vmem:[%s165 + $0x4] sm:$0xf]
      %v174 = vld [vmem:[%s165 + $0x8] sm:$0xf]
      %v175 = vld [vmem:[%s165 + $0xc] sm:$0xf]
      %v176 = vld [vmem:[%s165 + $0x10] sm:$0xf]
      %v177 = vld [vmem:[%s165 + $0x14] sm:$0xf]
      %v178 = vld [vmem:[%s165 + $0x18] sm:$0xf]
      %v179 = vld [vmem:[%s165 + $0x1c] sm:$0xf]
      %v180 = vld [vmem:[%s165 + $0x20] sm:$0xf]
      %v181 = vld [vmem:[%s165 + $0x24] sm:$0xf]
      %v182 = vld [vmem:[%s165 + $0x28] sm:$0xf]
      %v183 = vld [vmem:[%s165 + $0x2c] sm:$0xf]
      %v184 = vld [vmem:[%s165 + $0x30] sm:$0xf]
      %v185 = vld [vmem:[%s165 + $0x34] sm:$0xf]
      %v186 = vld [vmem:[%s165 + $0x38] sm:$0xf]
      %v187 = vld [vmem:[%s165 + $0x3c] sm:$0xf]
      %v188 = vld [vmem:[%s165 + $0x40] sm:$0xf]
      %v189 = vld [vmem:[%s165 + $0x44] sm:$0xf]
      %v190 = vld [vmem:[%s165 + $0x48] sm:$0xf]
      %v191 = vld [vmem:[%s165 + $0x4c] sm:$0xf]
      %v192 = vld [vmem:[%s165 + $0x50] sm:$0xf]
      %v193 = vld [vmem:[%s165 + $0x54] sm:$0xf]
      %v194 = vld [vmem:[%s165 + $0x58] sm:$0xf]
      %v195 = vld [vmem:[%s165 + $0x5c] sm:$0xf]
      %v196 = vld [vmem:[%s165 + $0x60] sm:$0xf]
      %v197 = vld [vmem:[%s165 + $0x64] sm:$0xf]
      %v198 = vld [vmem:[%s165 + $0x68] sm:$0xf]
      %v199 = vld [vmem:[%s165 + $0x6c] sm:$0xf]
      %v200 = vld [vmem:[%s165 + $0x70] sm:$0xf]
      %v201 = vld [vmem:[%s165 + $0x74] sm:$0xf]
      %v202 = vld [vmem:[%s165 + $0x78] sm:$0xf]
      %v203 = vld [vmem:[%s165 + $0x7c] sm:$0xf]
      %v204 = vld [vmem:[%s165 + $0x80] sm:$0xf]
      %v205 = vld [vmem:[%s165 + $0x84] sm:$0xf]
      %v206 = vld [vmem:[%s165 + $0x88] sm:$0xf]
      %v207 = vld [vmem:[%s165 + $0x8c] sm:$0xf]
      %v208 = vld [vmem:[%s165 + $0x90] sm:$0xf]
      %v209 = vld [vmem:[%s165 + $0x94] sm:$0xf]
      %v210 = vld [vmem:[%s165 + $0x98] sm:$0xf]
      %v211 = vld [vmem:[%s165 + $0x9c] sm:$0xf]
      %v212 = vld [vmem:[%s165 + $0xa0] sm:$0xf]
      %v213 = vld [vmem:[%s165 + $0xa4] sm:$0xf]
      %v214 = vld [vmem:[%s165 + $0xa8] sm:$0xf]
      %v215 = vld [vmem:[%s165 + $0xac] sm:$0xf]
      %v216 = vld [vmem:[%s165 + $0xb0] sm:$0xf]
      %v217 = vld [vmem:[%s165 + $0xb4] sm:$0xf]
      %v218 = vld [vmem:[%s165 + $0xb8] sm:$0xf]
      %v219 = vld [vmem:[%s165 + $0xbc] sm:$0xf]
      %v220 = vld [vmem:[%s165 + $0xc0] sm:$0xf]
      %v221 = vld [vmem:[%s165 + $0xc4] sm:$0xf]
      %v222 = vld [vmem:[%s165 + $0xc8] sm:$0xf]
      %v223 = vld [vmem:[%s165 + $0xcc] sm:$0xf]
      %v224 = vld [vmem:[%s165 + $0xd0] sm:$0xf]
      %v225 = vld [vmem:[%s165 + $0xd4] sm:$0xf]
      %v226 = vld [vmem:[%s165 + $0xd8] sm:$0xf]
      %v227 = vld [vmem:[%s165 + $0xdc] sm:$0xf]
      %v228 = vld [vmem:[%s165 + $0xe0] sm:$0xf]
      %v229 = vld [vmem:[%s165 + $0xe4] sm:$0xf]
      %v230 = vld [vmem:[%s165 + $0xe8] sm:$0xf]
      %v231 = vld [vmem:[%s165 + $0xec] sm:$0xf]
      %v232 = vld [vmem:[%s165 + $0xf0] sm:$0xf]
      %v233 = vld [vmem:[%s165 + $0xf4] sm:$0xf]
      %v234 = vld [vmem:[%s165 + $0xf8] sm:$0xf]
      %v235 = vld [vmem:[%s165 + $0xfc] sm:$0xf]
      %v236 = vld [vmem:[%s165 + $0x100] sm:$0xf]
      %v237 = vld [vmem:[%s165 + $0x104] sm:$0xf]
      %v238 = vld [vmem:[%s165 + $0x108] sm:$0xf]
      %v239 = vld [vmem:[%s165 + $0x10c] sm:$0xf]
      %v240 = vld [vmem:[%s165 + $0x110] sm:$0xf]
      %v241 = vld [vmem:[%s165 + $0x114] sm:$0xf]
      %v242 = vld [vmem:[%s165 + $0x118] sm:$0xf]
      %v243 = vld [vmem:[%s165 + $0x11c] sm:$0xf]
      %v244 = vld [vmem:[%s165 + $0x120] sm:$0xf]
      %v245 = vld [vmem:[%s165 + $0x124] sm:$0xf]
      %v246 = vld [vmem:[%s165 + $0x128] sm:$0xf]
      %v247 = vld [vmem:[%s165 + $0x12c] sm:$0xf]
      %v248 = vld [vmem:[%s165 + $0x130] sm:$0xf]
      %v249 = vld [vmem:[%s165 + $0x134] sm:$0xf]
      %v250 = vld [vmem:[%s165 + $0x138] sm:$0xf]
      %v251 = vld [vmem:[%s165 + $0x13c] sm:$0xf]
      %v252 = vld [vmem:[%s165 + $0x140] sm:$0xf]
      %v253 = vld [vmem:[%s165 + $0x144] sm:$0xf]
      %v254 = vld [vmem:[%s165 + $0x148] sm:$0xf]
      %v255 = vld [vmem:[%s165 + $0x14c] sm:$0xf]
      %v256 = vld [vmem:[%s165 + $0x150] sm:$0xf]
      %v257 = vld [vmem:[%s165 + $0x154] sm:$0xf]
      %v258 = vld [vmem:[%s165 + $0x158] sm:$0xf]
      %v259 = vld [vmem:[%s165 + $0x15c] sm:$0xf]
      %v260 = vld [vmem:[%s165 + $0x160] sm:$0xf]
      %v261 = vld [vmem:[%s165 + $0x164] sm:$0xf]
      %v262 = vld [vmem:[%s165 + $0x168] sm:$0xf]
      %v263 = vld [vmem:[%s165 + $0x16c] sm:$0xf]
      %v264 = vld [vmem:[%s165 + $0x170] sm:$0xf]
      %v265 = vld [vmem:[%s165 + $0x174] sm:$0xf]
      %v266 = vld [vmem:[%s165 + $0x178] sm:$0xf]
      %v267 = vld [vmem:[%s165 + $0x17c] sm:$0xf]
      %v268 = vld [vmem:[%s165 + $0x180] sm:$0xf]
      %v269 = vld [vmem:[%s165 + $0x184] sm:$0xf]
      %v270 = vld [vmem:[%s165 + $0x188] sm:$0xf]
      %v271 = vld [vmem:[%s165 + $0x18c] sm:$0xf]
      %v272 = vld [vmem:[%s165 + $0x190] sm:$0xf]
      %v273 = vld [vmem:[%s165 + $0x194] sm:$0xf]
      %v274 = vld [vmem:[%s165 + $0x198] sm:$0xf]
      %v275 = vld [vmem:[%s165 + $0x19c] sm:$0xf]
      %v276 = vld [vmem:[%s165 + $0x1a0] sm:$0xf]
      %v277 = vld [vmem:[%s165 + $0x1a4] sm:$0xf]
      %v278 = vld [vmem:[%s165 + $0x1a8] sm:$0xf]
      %v279 = vld [vmem:[%s165 + $0x1ac] sm:$0xf]
      %v280 = vld [vmem:[%s165 + $0x1b0] sm:$0xf]
      %v281 = vld [vmem:[%s165 + $0x1b4] sm:$0xf]
      %v282 = vld [vmem:[%s165 + $0x1b8] sm:$0xf]
      %v283 = vld [vmem:[%s165 + $0x1bc] sm:$0xf]
      %v284 = vld [vmem:[%s165 + $0x1c0] sm:$0xf]
      %v285 = vld [vmem:[%s165 + $0x1c4] sm:$0xf]
      %v286 = vld [vmem:[%s165 + $0x1c8] sm:$0xf]
      %v287 = vld [vmem:[%s165 + $0x1cc] sm:$0xf]
      %v288 = vld [vmem:[%s165 + $0x1d0] sm:$0xf]
      %v289 = vld [vmem:[%s165 + $0x1d4] sm:$0xf]
      %v290 = vld [vmem:[%s165 + $0x1d8] sm:$0xf]
      %v291 = vld [vmem:[%s165 + $0x1dc] sm:$0xf]
      %v292 = vld [vmem:[%s165 + $0x1e0] sm:$0xf]
      %v293 = vld [vmem:[%s165 + $0x1e4] sm:$0xf]
      %v294 = vld [vmem:[%s165 + $0x1e8] sm:$0xf]
      %v295 = vld [vmem:[%s165 + $0x1ec] sm:$0xf]
      %v296 = vld [vmem:[%s165 + $0x1f0] sm:$0xf]
      %v297 = vld [vmem:[%s165 + $0x1f4] sm:$0xf]
      %v298 = vld [vmem:[%s165 + $0x1f8] sm:$0xf]
      %v299 = vld [vmem:[%s165 + $0x1fc] sm:$0xf]
      %v300 = vld [vmem:[%s1] sm:$0xf]
      %v301 = vld [vmem:[%s1 + $0x4] sm:$0x3]
      %v302 = vld [vmem:[%s2] sm:$0x1]
      %v304 = vlaneseq
      %v305 = vshrl.u32 %v304, 7
      %v306 = vsub.s32 0, %v305
      %v307 = vrot.slane %v302, %v306
      %v437 = vunpack.c.l.b16 %v172
      %v438 = vunpack.c.l.b16 %v173
      %v439 = vunpack.c.l.b16 %v174
      %v440 = vunpack.c.l.b16 %v175
      %v441 = vunpack.c.l.b16 %v176
      %v442 = vunpack.c.l.b16 %v177
      %v443 = vunpack.c.l.b16 %v178
      %v444 = vunpack.c.l.b16 %v179
      %v445 = vunpack.c.l.b16 %v180
      %v446 = vunpack.c.l.b16 %v181
      %v447 = vunpack.c.l.b16 %v182
      %v448 = vunpack.c.l.b16 %v183
      %v449 = vunpack.c.l.b16 %v184
      %v450 = vunpack.c.l.b16 %v185
      %v451 = vunpack.c.l.b16 %v186
      %v452 = vunpack.c.l.b16 %v187
      %v453 = vunpack.c.l.b16 %v188
      %v454 = vunpack.c.l.b16 %v189
      %v455 = vunpack.c.l.b16 %v190
      %v456 = vunpack.c.l.b16 %v191
      %v457 = vunpack.c.l.b16 %v192
      %v458 = vunpack.c.l.b16 %v193
      %v459 = vunpack.c.l.b16 %v194
      %v460 = vunpack.c.l.b16 %v195
      %v461 = vunpack.c.l.b16 %v196
      %v462 = vunpack.c.l.b16 %v197
      %v463 = vunpack.c.l.b16 %v198
      %v464 = vunpack.c.l.b16 %v199
      %v465 = vunpack.c.l.b16 %v200
      %v466 = vunpack.c.l.b16 %v201
      %v467 = vunpack.c.l.b16 %v202
      %v468 = vunpack.c.l.b16 %v203
      %v469 = vunpack.c.l.b16 %v204
      %v470 = vunpack.c.l.b16 %v205
      %v471 = vunpack.c.l.b16 %v206
      %v472 = vunpack.c.l.b16 %v207
      %v473 = vunpack.c.l.b16 %v208
      %v474 = vunpack.c.l.b16 %v209
      %v475 = vunpack.c.l.b16 %v210
      %v476 = vunpack.c.l.b16 %v211
      %v477 = vunpack.c.l.b16 %v212
      %v478 = vunpack.c.l.b16 %v213
      %v479 = vunpack.c.l.b16 %v214
      %v480 = vunpack.c.l.b16 %v215
      %v481 = vunpack.c.l.b16 %v216
      %v482 = vunpack.c.l.b16 %v217
      %v483 = vunpack.c.l.b16 %v218
      %v484 = vunpack.c.l.b16 %v219
      %v485 = vunpack.c.l.b16 %v220
      %v486 = vunpack.c.l.b16 %v221
      %v487 = vunpack.c.l.b16 %v222
      %v488 = vunpack.c.l.b16 %v223
      %v489 = vunpack.c.l.b16 %v224
      %v490 = vunpack.c.l.b16 %v225
      %v491 = vunpack.c.l.b16 %v226
      %v492 = vunpack.c.l.b16 %v227
      %v493 = vunpack.c.l.b16 %v228
      %v494 = vunpack.c.l.b16 %v229
      %v495 = vunpack.c.l.b16 %v230
      %v496 = vunpack.c.l.b16 %v231
      %v497 = vunpack.c.l.b16 %v232
      %v498 = vunpack.c.l.b16 %v233
      %v499 = vunpack.c.l.b16 %v234
      %v500 = vunpack.c.l.b16 %v235
      %v501 = vunpack.c.l.b16 %v236
      %v502 = vunpack.c.l.b16 %v237
      %v503 = vunpack.c.l.b16 %v238
      %v504 = vunpack.c.l.b16 %v239
      %v505 = vunpack.c.l.b16 %v240
      %v506 = vunpack.c.l.b16 %v241
      %v507 = vunpack.c.l.b16 %v242
      %v508 = vunpack.c.l.b16 %v243
      %v509 = vunpack.c.l.b16 %v244
      %v510 = vunpack.c.l.b16 %v245
      %v511 = vunpack.c.l.b16 %v246
      %v512 = vunpack.c.l.b16 %v247
      %v513 = vunpack.c.l.b16 %v248
      %v514 = vunpack.c.l.b16 %v249
      %v515 = vunpack.c.l.b16 %v250
      %v516 = vunpack.c.l.b16 %v251
      %v517 = vunpack.c.l.b16 %v252
      %v518 = vunpack.c.l.b16 %v253
      %v519 = vunpack.c.l.b16 %v254
      %v520 = vunpack.c.l.b16 %v255
      %v521 = vunpack.c.l.b16 %v256
      %v522 = vunpack.c.l.b16 %v257
      %v523 = vunpack.c.l.b16 %v258
      %v524 = vunpack.c.l.b16 %v259
      %v525 = vunpack.c.l.b16 %v260
      %v526 = vunpack.c.l.b16 %v261
      %v527 = vunpack.c.l.b16 %v262
      %v528 = vunpack.c.l.b16 %v263
      %v529 = vunpack.c.l.b16 %v264
      %v530 = vunpack.c.l.b16 %v265
      %v531 = vunpack.c.l.b16 %v266
      %v532 = vunpack.c.l.b16 %v267
      %v533 = vunpack.c.l.b16 %v268
      %v534 = vunpack.c.l.b16 %v269
      %v535 = vunpack.c.l.b16 %v270
      %v536 = vunpack.c.l.b16 %v271
      %v537 = vunpack.c.l.b16 %v272
      %v538 = vunpack.c.l.b16 %v273
      %v539 = vunpack.c.l.b16 %v274
      %v540 = vunpack.c.l.b16 %v275
      %v541 = vunpack.c.l.b16 %v276
      %v542 = vunpack.c.l.b16 %v277
      %v543 = vunpack.c.l.b16 %v278
      %v544 = vunpack.c.l.b16 %v279
      %v545 = vunpack.c.l.b16 %v280
      %v546 = vunpack.c.l.b16 %v281
      %v547 = vunpack.c.l.b16 %v282
      %v548 = vunpack.c.l.b16 %v283
      %v549 = vunpack.c.l.b16 %v284
      %v550 = vunpack.c.l.b16 %v285
      %v551 = vunpack.c.l.b16 %v286
      %v552 = vunpack.c.l.b16 %v287
      %v553 = vunpack.c.l.b16 %v288
      %v554 = vunpack.c.l.b16 %v289
      %v555 = vunpack.c.l.b16 %v290
      %v556 = vunpack.c.l.b16 %v291
      %v557 = vunpack.c.l.b16 %v292
      %v558 = vunpack.c.l.b16 %v293
      %v559 = vunpack.c.l.b16 %v294
      %v560 = vunpack.c.l.b16 %v295
      %v561 = vunpack.c.l.b16 %v296
      %v562 = vunpack.c.l.b16 %v297
      %v563 = vunpack.c.l.b16 %v298
      %v564 = vunpack.c.l.b16 %v299
      %v565 = vpack.c.b16 %v438, %v437
      %v566 = vpack.c.b16 %v440, %v439
      %v567 = vpack.c.b16 %v442, %v441
      %v568 = vpack.c.b16 %v444, %v443
      %v569 = vpack.c.b16 %v446, %v445
      %v570 = vpack.c.b16 %v448, %v447
      %v571 = vpack.c.b16 %v450, %v449
      %v572 = vpack.c.b16 %v452, %v451
      %v573 = vpack.c.b16 %v454, %v453
      %v574 = vpack.c.b16 %v456, %v455
      %v575 = vpack.c.b16 %v458, %v457
      %v576 = vpack.c.b16 %v460, %v459
      %v577 = vpack.c.b16 %v462, %v461
      %v578 = vpack.c.b16 %v464, %v463
      %v579 = vpack.c.b16 %v466, %v465
      %v580 = vpack.c.b16 %v468, %v467
      %v581 = vpack.c.b16 %v470, %v469
      %v582 = vpack.c.b16 %v472, %v471
      %v583 = vpack.c.b16 %v474, %v473
      %v584 = vpack.c.b16 %v476, %v475
      %v585 = vpack.c.b16 %v478, %v477
      %v586 = vpack.c.b16 %v480, %v479
      %v587 = vpack.c.b16 %v482, %v481
      %v588 = vpack.c.b16 %v484, %v483
      %v589 = vpack.c.b16 %v486, %v485
      %v590 = vpack.c.b16 %v488, %v487
      %v591 = vpack.c.b16 %v490, %v489
      %v592 = vpack.c.b16 %v492, %v491
      %v593 = vpack.c.b16 %v494, %v493
      %v594 = vpack.c.b16 %v496, %v495
      %v595 = vpack.c.b16 %v498, %v497
      %v596 = vpack.c.b16 %v500, %v499
      %v597 = vpack.c.b16 %v502, %v501
      %v598 = vpack.c.b16 %v504, %v503
      %v599 = vpack.c.b16 %v506, %v505
      %v600 = vpack.c.b16 %v508, %v507
      %v601 = vpack.c.b16 %v510, %v509
      %v602 = vpack.c.b16 %v512, %v511
      %v603 = vpack.c.b16 %v514, %v513
      %v604 = vpack.c.b16 %v516, %v515
      %v605 = vpack.c.b16 %v518, %v517
      %v606 = vpack.c.b16 %v520, %v519
      %v607 = vpack.c.b16 %v522, %v521
      %v608 = vpack.c.b16 %v524, %v523
      %v609 = vpack.c.b16 %v526, %v525
      %v610 = vpack.c.b16 %v528, %v527
      %v611 = vpack.c.b16 %v530, %v529
      %v612 = vpack.c.b16 %v532, %v531
      %v613 = vpack.c.b16 %v534, %v533
      %v614 = vpack.c.b16 %v536, %v535
      %v615 = vpack.c.b16 %v538, %v537
      %v616 = vpack.c.b16 %v540, %v539
      %v617 = vpack.c.b16 %v542, %v541
      %v618 = vpack.c.b16 %v544, %v543
      %v619 = vpack.c.b16 %v546, %v545
      %v620 = vpack.c.b16 %v548, %v547
      %v621 = vpack.c.b16 %v550, %v549
      %v622 = vpack.c.b16 %v552, %v551
      %v623 = vpack.c.b16 %v554, %v553
      %v624 = vpack.c.b16 %v556, %v555
      %v625 = vpack.c.b16 %v558, %v557
      %v626 = vpack.c.b16 %v560, %v559
      %v627 = vpack.c.b16 %v562, %v561
      %v628 = vpack.c.b16 %v564, %v563
      %v631 = vunpack.c.l.b16 %v300
      %v632 = vunpack.c.l.b16 %v301
      %v633 = vpack.c.b16 %v632, %v631
      %vm634 = vcmask 97280
      %v636 = vsel %vm634, %v565, 0
      %v639 = vsel %vm634, %v566, 0
      %v642 = vsel %vm634, %v567, 0
      %v645 = vsel %vm634, %v568, 0
      %v648 = vsel %vm634, %v569, 0
      %v651 = vsel %vm634, %v570, 0
      %v654 = vsel %vm634, %v571, 0
      %v657 = vsel %vm634, %v572, 0
      %v660 = vsel %vm634, %v573, 0
      %v663 = vsel %vm634, %v574, 0
      %v666 = vsel %vm634, %v575, 0
      %v669 = vsel %vm634, %v576, 0
      %v672 = vsel %vm634, %v577, 0
      %v675 = vsel %vm634, %v578, 0
      %v678 = vsel %vm634, %v579, 0
      %v681 = vsel %vm634, %v580, 0
      %v684 = vsel %vm634, %v581, 0
      %v687 = vsel %vm634, %v582, 0
      %v690 = vsel %vm634, %v583, 0
      %v693 = vsel %vm634, %v584, 0
      %v696 = vsel %vm634, %v585, 0
      %v699 = vsel %vm634, %v586, 0
      %v702 = vsel %vm634, %v587, 0
      %v705 = vsel %vm634, %v588, 0
      %v708 = vsel %vm634, %v589, 0
      %v711 = vsel %vm634, %v590, 0
      %v714 = vsel %vm634, %v591, 0
      %v717 = vsel %vm634, %v592, 0
      %v720 = vsel %vm634, %v593, 0
      %v723 = vsel %vm634, %v594, 0
      %v726 = vsel %vm634, %v595, 0
      %v729 = vsel %vm634, %v596, 0
      %v732 = vsel %vm634, %v597, 0
      %v735 = vsel %vm634, %v598, 0
      %v738 = vsel %vm634, %v599, 0
      %v741 = vsel %vm634, %v600, 0
      %v744 = vsel %vm634, %v601, 0
      %v747 = vsel %vm634, %v602, 0
      %v750 = vsel %vm634, %v603, 0
      %v753 = vsel %vm634, %v604, 0
      %v756 = vsel %vm634, %v605, 0
      %v759 = vsel %vm634, %v606, 0
      %v762 = vsel %vm634, %v607, 0
      %v765 = vsel %vm634, %v608, 0
      %v768 = vsel %vm634, %v609, 0
      %v771 = vsel %vm634, %v610, 0
      %v774 = vsel %vm634, %v611, 0
      %v777 = vsel %vm634, %v612, 0
      %v780 = vsel %vm634, %v613, 0
      %v783 = vsel %vm634, %v614, 0
      %v786 = vsel %vm634, %v615, 0
      %v789 = vsel %vm634, %v616, 0
      %v792 = vsel %vm634, %v617, 0
      %v795 = vsel %vm634, %v618, 0
      %v798 = vsel %vm634, %v619, 0
      %v801 = vsel %vm634, %v620, 0
      %v804 = vsel %vm634, %v621, 0
      %v807 = vsel %vm634, %v622, 0
      %v810 = vsel %vm634, %v623, 0
      %v813 = vsel %vm634, %v624, 0
      %v816 = vsel %vm634, %v625, 0
      %v819 = vsel %vm634, %v626, 0
      %v822 = vsel %vm634, %v627, 0
      %v825 = vsel %vm634, %v628, 0
      %vm827 = vcmask 1045504
      %v829 = vsel %vm827, %v633, 0
      %831 = vmatprep.subr.bf16.mxu0 0
      %832 = vmatpush1.bf16.msra.mxu0 %v829
      %833 = vmatprep.subr.bf16.mxu0 0
      %834 = vmatpush1.bf16.msra.mxu0 0
      %835 = vmatprep.subr.bf16.mxu0 0
      %836 = vmatpush1.bf16.msra.mxu0 0
      %837 = vmatprep.subr.bf16.mxu0 0
      %838 = vmatpush1.bf16.msra.mxu0 0
      %839 = vmatprep.subr.bf16.mxu0 0
      %840 = vmatpush1.bf16.msra.mxu0 0
      %841 = vmatprep.subr.bf16.mxu0 0
      %842 = vmatpush1.bf16.msra.mxu0 0
      %843 = vmatprep.subr.bf16.mxu0 0
      %844 = vmatpush1.bf16.msra.mxu0 0
      %845 = vmatprep.subr.bf16.mxu0 0
      %846 = vmatpush1.bf16.msra.mxu0 0
      %847 = vmatprep.subr.bf16.mxu0 0
      %848 = vmatpush1.bf16.msra.mxu0 0
      %849 = vmatprep.subr.bf16.mxu0 0
      %850 = vmatpush1.bf16.msra.mxu0 0
      %851 = vmatprep.subr.bf16.mxu0 0
      %852 = vmatpush1.bf16.msra.mxu0 0
      %853 = vmatprep.subr.bf16.mxu0 0
      %854 = vmatpush1.bf16.msra.mxu0 0
      %855 = vmatprep.subr.bf16.mxu0 0
      %856 = vmatpush1.bf16.msra.mxu0 0
      %857 = vmatprep.subr.bf16.mxu0 0
      %858 = vmatpush1.bf16.msra.mxu0 0
      %859 = vmatprep.subr.bf16.mxu0 0
      %860 = vmatpush1.bf16.msra.mxu0 0
      %861 = vmatprep.subr.bf16.mxu0 0
      %862 = vmatpush1.bf16.msra.mxu0 0
      %863 = vmatprep.mubr.bf16.mxu0 0
      %864 = vmatmul.mubr.bf16.gmra.mrb[0].mxu0 %v636
      %v865 = vpop.f32.mrb[0].mxu0
      %v866 = vadd.f32 %v307, %v865
      %v867 = vpop.f32.mrb[0].mxu0
      %v868 = vpop.f32.mrb[0].mxu0
      %v869 = vadd.f32 %v307, %v868
      %v870 = vpop.f32.mrb[0].mxu0
      %871 = vmatprep.mubr.bf16.mxu0 0
      %872 = vmatmul.mubr.bf16.gmra.mrb[0].mxu0 %v639
      %v873 = vpop.f32.mrb[0].mxu0
      %v874 = vadd.f32 %v307, %v873
      %v875 = vpop.f32.mrb[0].mxu0
      %v876 = vpop.f32.mrb[0].mxu0
      %v877 = vadd.f32 %v307, %v876
      %v878 = vpop.f32.mrb[0].mxu0
      %879 = vmatprep.mubr.bf16.mxu0 0
      %880 = vmatmul.mubr.bf16.gmra.mrb[0].mxu0 %v642
      %v881 = vpop.f32.mrb[0].mxu0
      %v882 = vadd.f32 %v307, %v881
      %v883 = vpop.f32.mrb[0].mxu0
      %v884 = vpop.f32.mrb[0].mxu0
      %v885 = vadd.f32 %v307, %v884
      %v886 = vpop.f32.mrb[0].mxu0
      %887 = vmatprep.mubr.bf16.mxu0 0
      %888 = vmatmul.mubr.bf16.gmra.mrb[0].mxu0 %v645
      %v889 = vpop.f32.mrb[0].mxu0
      %v890 = vadd.f32 %v307, %v889
      %v891 = vpop.f32.mrb[0].mxu0
      %v892 = vpop.f32.mrb[0].mxu0
      %v893 = vadd.f32 %v307, %v892
      %v894 = vpop.f32.mrb[0].mxu0
      %895 = vmatprep.mubr.bf16.mxu0 0
      %896 = vmatmul.mubr.bf16.gmra.mrb[0].mxu0 %v648
      %v897 = vpop.f32.mrb[0].mxu0
      %v898 = vadd.f32 %v307, %v897
      %v899 = vpop.f32.mrb[0].mxu0
      %v900 = vpop.f32.mrb[0].mxu0
      %v901 = vadd.f32 %v307, %v900
      %v902 = vpop.f32.mrb[0].mxu0
      %903 = vmatprep.mubr.bf16.mxu0 0
      %904 = vmatmul.mubr.bf16.gmra.mrb[0].mxu0 %v651
      %v905 = vpop.f32.mrb[0].mxu0
      %v906 = vadd.f32 %v307, %v905
      %v907 = vpop.f32.mrb[0].mxu0
      %v908 = vpop.f32.mrb[0].mxu0
      %v909 = vadd.f32 %v307, %v908
      %v910 = vpop.f32.mrb[0].mxu0
      %911 = vmatprep.mubr.bf16.mxu0 0
      %912 = vmatmul.mubr.bf16.gmra.mrb[0].mxu0 %v654
      %v913 = vpop.f32.mrb[0].mxu0
      %v914 = vadd.f32 %v307, %v913
      %v915 = vpop.f32.mrb[0].mxu0
      %v916 = vpop.f32.mrb[0].mxu0
      %v917 = vadd.f32 %v307, %v916
      %v918 = vpop.f32.mrb[0].mxu0
      %919 = vmatprep.mubr.bf16.mxu0 0
      %920 = vmatmul.mubr.bf16.gmra.mrb[0].mxu0 %v657
      %v921 = vpop.f32.mrb[0].mxu0
      %v922 = vadd.f32 %v307, %v921
      %v923 = vpop.f32.mrb[0].mxu0
      %v924 = vpop.f32.mrb[0].mxu0
      %v925 = vadd.f32 %v307, %v924
      %v926 = vpop.f32.mrb[0].mxu0
      %927 = vmatprep.mubr.bf16.mxu0 0
      %928 = vmatmul.mubr.bf16.gmra.mrb[0].mxu0 %v660
      %v929 = vpop.f32.mrb[0].mxu0
      %v930 = vadd.f32 %v307, %v929
      %v931 = vpop.f32.mrb[0].mxu0
      %v932 = vpop.f32.mrb[0].mxu0
      %v933 = vadd.f32 %v307, %v932
      %v934 = vpop.f32.mrb[0].mxu0
      %935 = vmatprep.mubr.bf16.mxu0 0
      %936 = vmatmul.mubr.bf16.gmra.mrb[0].mxu0 %v663
      %v937 = vpop.f32.mrb[0].mxu0
      %v938 = vadd.f32 %v307, %v937
      %v939 = vpop.f32.mrb[0].mxu0
      %v940 = vpop.f32.mrb[0].mxu0
      %v941 = vadd.f32 %v307, %v940
      %v942 = vpop.f32.mrb[0].mxu0
      %943 = vmatprep.mubr.bf16.mxu0 0
      %944 = vmatmul.mubr.bf16.gmra.mrb[0].mxu0 %v666
      %v945 = vpop.f32.mrb[0].mxu0
      %v946 = vadd.f32 %v307, %v945
      %v947 = vpop.f32.mrb[0].mxu0
      %v948 = vpop.f32.mrb[0].mxu0
      %v949 = vadd.f32 %v307, %v948
      %v950 = vpop.f32.mrb[0].mxu0
      %951 = vmatprep.mubr.bf16.mxu0 0
      %952 = vmatmul.mubr.bf16.gmra.mrb[0].mxu0 %v669
      %v953 = vpop.f32.mrb[0].mxu0
      %v954 = vadd.f32 %v307, %v953
      %v955 = vpop.f32.mrb[0].mxu0
      %v956 = vpop.f32.mrb[0].mxu0
      %v957 = vadd.f32 %v307, %v956
      %v958 = vpop.f32.mrb[0].mxu0
      %959 = vmatprep.mubr.bf16.mxu0 0
      %960 = vmatmul.mubr.bf16.gmra.mrb[0].mxu0 %v672
      %v961 = vpop.f32.mrb[0].mxu0
      %v962 = vadd.f32 %v307, %v961
      %v963 = vpop.f32.mrb[0].mxu0
      %v964 = vpop.f32.mrb[0].mxu0
      %v965 = vadd.f32 %v307, %v964
      %v966 = vpop.f32.mrb[0].mxu0
      %967 = vmatprep.mubr.bf16.mxu0 0
      %968 = vmatmul.mubr.bf16.gmra.mrb[0].mxu0 %v675
      %v969 = vpop.f32.mrb[0].mxu0
      %v970 = vadd.f32 %v307, %v969
      %v971 = vpop.f32.mrb[0].mxu0
      %v972 = vpop.f32.mrb[0].mxu0
      %v973 = vadd.f32 %v307, %v972
      %v974 = vpop.f32.mrb[0].mxu0
      %975 = vmatprep.mubr.bf16.mxu0 0
      %976 = vmatmul.mubr.bf16.gmra.mrb[0].mxu0 %v678
      %v977 = vpop.f32.mrb[0].mxu0
      %v978 = vadd.f32 %v307, %v977
      %v979 = vpop.f32.mrb[0].mxu0
      %v980 = vpop.f32.mrb[0].mxu0
      %v981 = vadd.f32 %v307, %v980
      %v982 = vpop.f32.mrb[0].mxu0
      %983 = vmatprep.mubr.bf16.mxu0 0
      %984 = vmatmul.mubr.bf16.gmra.mrb[0].mxu0 %v681
      %v985 = vpop.f32.mrb[0].mxu0
      %v986 = vadd.f32 %v307, %v985
      %v987 = vpop.f32.mrb[0].mxu0
      %v988 = vpop.f32.mrb[0].mxu0
      %v989 = vadd.f32 %v307, %v988
      %v990 = vpop.f32.mrb[0].mxu0
      %991 = vmatprep.mubr.bf16.mxu0 0
      %992 = vmatmul.mubr.bf16.gmra.mrb[0].mxu0 %v684
      %v993 = vpop.f32.mrb[0].mxu0
      %v994 = vadd.f32 %v307, %v993
      %v995 = vpop.f32.mrb[0].mxu0
      %v996 = vpop.f32.mrb[0].mxu0
      %v997 = vadd.f32 %v307, %v996
      %v998 = vpop.f32.mrb[0].mxu0
      %999 = vmatprep.mubr.bf16.mxu0 0
      %1000 = vmatmul.mubr.bf16.gmra.mrb[0].mxu0 %v687
      %v1001 = vpop.f32.mrb[0].mxu0
      %v1002 = vadd.f32 %v307, %v1001
      %v1003 = vpop.f32.mrb[0].mxu0
      %v1004 = vpop.f32.mrb[0].mxu0
      %v1005 = vadd.f32 %v307, %v1004
      %v1006 = vpop.f32.mrb[0].mxu0
      %1007 = vmatprep.mubr.bf16.mxu0 0
      %1008 = vmatmul.mubr.bf16.gmra.mrb[0].mxu0 %v690
      %v1009 = vpop.f32.mrb[0].mxu0
      %v1010 = vadd.f32 %v307, %v1009
      %v1011 = vpop.f32.mrb[0].mxu0
      %v1012 = vpop.f32.mrb[0].mxu0
      %v1013 = vadd.f32 %v307, %v1012
      %v1014 = vpop.f32.mrb[0].mxu0
      %1015 = vmatprep.mubr.bf16.mxu0 0
      %1016 = vmatmul.mubr.bf16.gmra.mrb[0].mxu0 %v693
      %v1017 = vpop.f32.mrb[0].mxu0
      %v1018 = vadd.f32 %v307, %v1017
      %v1019 = vpop.f32.mrb[0].mxu0
      %v1020 = vpop.f32.mrb[0].mxu0
      %v1021 = vadd.f32 %v307, %v1020
      %v1022 = vpop.f32.mrb[0].mxu0
      %1023 = vmatprep.mubr.bf16.mxu0 0
      %1024 = vmatmul.mubr.bf16.gmra.mrb[0].mxu0 %v696
      %v1025 = vpop.f32.mrb[0].mxu0
      %v1026 = vadd.f32 %v307, %v1025
      %v1027 = vpop.f32.mrb[0].mxu0
      %v1028 = vpop.f32.mrb[0].mxu0
      %v1029 = vadd.f32 %v307, %v1028
      %v1030 = vpop.f32.mrb[0].mxu0
      %1031 = vmatprep.mubr.bf16.mxu0 0
      %1032 = vmatmul.mubr.bf16.gmra.mrb[0].mxu0 %v699
      %v1033 = vpop.f32.mrb[0].mxu0
      %v1034 = vadd.f32 %v307, %v1033
      %v1035 = vpop.f32.mrb[0].mxu0
      %v1036 = vpop.f32.mrb[0].mxu0
      %v1037 = vadd.f32 %v307, %v1036
      %v1038 = vpop.f32.mrb[0].mxu0
      %1039 = vmatprep.mubr.bf16.mxu0 0
      %1040 = vmatmul.mubr.bf16.gmra.mrb[0].mxu0 %v702
      %v1041 = vpop.f32.mrb[0].mxu0
      %v1042 = vadd.f32 %v307, %v1041
      %v1043 = vpop.f32.mrb[0].mxu0
      %v1044 = vpop.f32.mrb[0].mxu0
      %v1045 = vadd.f32 %v307, %v1044
      %v1046 = vpop.f32.mrb[0].mxu0
      %1047 = vmatprep.mubr.bf16.mxu0 0
      %1048 = vmatmul.mubr.bf16.gmra.mrb[0].mxu0 %v705
      %v1049 = vpop.f32.mrb[0].mxu0
      %v1050 = vadd.f32 %v307, %v1049
      %v1051 = vpop.f32.mrb[0].mxu0
      %v1052 = vpop.f32.mrb[0].mxu0
      %v1053 = vadd.f32 %v307, %v1052
      %v1054 = vpop.f32.mrb[0].mxu0
      %1055 = vmatprep.mubr.bf16.mxu0 0
      %1056 = vmatmul.mubr.bf16.gmra.mrb[0].mxu0 %v708
      %v1057 = vpop.f32.mrb[0].mxu0
      %v1058 = vadd.f32 %v307, %v1057
      %v1059 = vpop.f32.mrb[0].mxu0
      %v1060 = vpop.f32.mrb[0].mxu0
      %v1061 = vadd.f32 %v307, %v1060
      %v1062 = vpop.f32.mrb[0].mxu0
      %1063 = vmatprep.mubr.bf16.mxu0 0
      %1064 = vmatmul.mubr.bf16.gmra.mrb[0].mxu0 %v711
      %v1065 = vpop.f32.mrb[0].mxu0
      %v1066 = vadd.f32 %v307, %v1065
      %v1067 = vpop.f32.mrb[0].mxu0
      %v1068 = vpop.f32.mrb[0].mxu0
      %v1069 = vadd.f32 %v307, %v1068
      %v1070 = vpop.f32.mrb[0].mxu0
      %1071 = vmatprep.mubr.bf16.mxu0 0
      %1072 = vmatmul.mubr.bf16.gmra.mrb[0].mxu0 %v714
      %v1073 = vpop.f32.mrb[0].mxu0
      %v1074 = vadd.f32 %v307, %v1073
      %v1075 = vpop.f32.mrb[0].mxu0
      %v1076 = vpop.f32.mrb[0].mxu0
      %v1077 = vadd.f32 %v307, %v1076
      %v1078 = vpop.f32.mrb[0].mxu0
      %1079 = vmatprep.mubr.bf16.mxu0 0
      %1080 = vmatmul.mubr.bf16.gmra.mrb[0].mxu0 %v717
      %v1081 = vpop.f32.mrb[0].mxu0
      %v1082 = vadd.f32 %v307, %v1081
      %v1083 = vpop.f32.mrb[0].mxu0
      %v1084 = vpop.f32.mrb[0].mxu0
      %v1085 = vadd.f32 %v307, %v1084
      %v1086 = vpop.f32.mrb[0].mxu0
      %1087 = vmatprep.mubr.bf16.mxu0 0
      %1088 = vmatmul.mubr.bf16.gmra.mrb[0].mxu0 %v720
      %v1089 = vpop.f32.mrb[0].mxu0
      %v1090 = vadd.f32 %v307, %v1089
      %v1091 = vpop.f32.mrb[0].mxu0
      %v1092 = vpop.f32.mrb[0].mxu0
      %v1093 = vadd.f32 %v307, %v1092
      %v1094 = vpop.f32.mrb[0].mxu0
      %1095 = vmatprep.mubr.bf16.mxu0 0
      %1096 = vmatmul.mubr.bf16.gmra.mrb[0].mxu0 %v723
      %v1097 = vpop.f32.mrb[0].mxu0
      %v1098 = vadd.f32 %v307, %v1097
      %v1099 = vpop.f32.mrb[0].mxu0
      %v1100 = vpop.f32.mrb[0].mxu0
      %v1101 = vadd.f32 %v307, %v1100
      %v1102 = vpop.f32.mrb[0].mxu0
      %1103 = vmatprep.mubr.bf16.mxu0 0
      %1104 = vmatmul.mubr.bf16.gmra.mrb[0].mxu0 %v726
      %v1105 = vpop.f32.mrb[0].mxu0
      %v1106 = vadd.f32 %v307, %v1105
      %v1107 = vpop.f32.mrb[0].mxu0
      %v1108 = vpop.f32.mrb[0].mxu0
      %v1109 = vadd.f32 %v307, %v1108
      %v1110 = vpop.f32.mrb[0].mxu0
      %1111 = vmatprep.mubr.bf16.mxu0 0
      %1112 = vmatmul.mubr.bf16.gmra.mrb[0].mxu0 %v729
      %v1113 = vpop.f32.mrb[0].mxu0
      %v1114 = vadd.f32 %v307, %v1113
      %v1115 = vpop.f32.mrb[0].mxu0
      %v1116 = vpop.f32.mrb[0].mxu0
      %v1117 = vadd.f32 %v307, %v1116
      %v1118 = vpop.f32.mrb[0].mxu0
      %1119 = vmatprep.mubr.bf16.mxu0 0
      %1120 = vmatmul.mubr.bf16.gmra.mrb[0].mxu0 %v732
      %v1121 = vpop.f32.mrb[0].mxu0
      %v1122 = vadd.f32 %v307, %v1121
      %v1123 = vpop.f32.mrb[0].mxu0
      %v1124 = vpop.f32.mrb[0].mxu0
      %v1125 = vadd.f32 %v307, %v1124
      %v1126 = vpop.f32.mrb[0].mxu0
      %1127 = vmatprep.mubr.bf16.mxu0 0
      %1128 = vmatmul.mubr.bf16.gmra.mrb[0].mxu0 %v735
      %v1129 = vpop.f32.mrb[0].mxu0
      %v1130 = vadd.f32 %v307, %v1129
      %v1131 = vpop.f32.mrb[0].mxu0
      %v1132 = vpop.f32.mrb[0].mxu0
      %v1133 = vadd.f32 %v307, %v1132
      %v1134 = vpop.f32.mrb[0].mxu0
      %1135 = vmatprep.mubr.bf16.mxu0 0
      %1136 = vmatmul.mubr.bf16.gmra.mrb[0].mxu0 %v738
      %v1137 = vpop.f32.mrb[0].mxu0
      %v1138 = vadd.f32 %v307, %v1137
      %v1139 = vpop.f32.mrb[0].mxu0
      %v1140 = vpop.f32.mrb[0].mxu0
      %v1141 = vadd.f32 %v307, %v1140
      %v1142 = vpop.f32.mrb[0].mxu0
      %1143 = vmatprep.mubr.bf16.mxu0 0
      %1144 = vmatmul.mubr.bf16.gmra.mrb[0].mxu0 %v741
      %v1145 = vpop.f32.mrb[0].mxu0
      %v1146 = vadd.f32 %v307, %v1145
      %v1147 = vpop.f32.mrb[0].mxu0
      %v1148 = vpop.f32.mrb[0].mxu0
      %v1149 = vadd.f32 %v307, %v1148
      %v1150 = vpop.f32.mrb[0].mxu0
      %1151 = vmatprep.mubr.bf16.mxu0 0
      %1152 = vmatmul.mubr.bf16.gmra.mrb[0].mxu0 %v744
      %v1153 = vpop.f32.mrb[0].mxu0
      %v1154 = vadd.f32 %v307, %v1153
      %v1155 = vpop.f32.mrb[0].mxu0
      %v1156 = vpop.f32.mrb[0].mxu0
      %v1157 = vadd.f32 %v307, %v1156
      %v1158 = vpop.f32.mrb[0].mxu0
      %1159 = vmatprep.mubr.bf16.mxu0 0
      %1160 = vmatmul.mubr.bf16.gmra.mrb[0].mxu0 %v747
      %v1161 = vpop.f32.mrb[0].mxu0
      %v1162 = vadd.f32 %v307, %v1161
      %v1163 = vpop.f32.mrb[0].mxu0
      %v1164 = vpop.f32.mrb[0].mxu0
      %v1165 = vadd.f32 %v307, %v1164
      %v1166 = vpop.f32.mrb[0].mxu0
      %1167 = vmatprep.mubr.bf16.mxu0 0
      %1168 = vmatmul.mubr.bf16.gmra.mrb[0].mxu0 %v750
      %v1169 = vpop.f32.mrb[0].mxu0
      %v1170 = vadd.f32 %v307, %v1169
      %v1171 = vpop.f32.mrb[0].mxu0
      %v1172 = vpop.f32.mrb[0].mxu0
      %v1173 = vadd.f32 %v307, %v1172
      %v1174 = vpop.f32.mrb[0].mxu0
      %1175 = vmatprep.mubr.bf16.mxu0 0
      %1176 = vmatmul.mubr.bf16.gmra.mrb[0].mxu0 %v753
      %v1177 = vpop.f32.mrb[0].mxu0
      %v1178 = vadd.f32 %v307, %v1177
      %v1179 = vpop.f32.mrb[0].mxu0
      %v1180 = vpop.f32.mrb[0].mxu0
      %v1181 = vadd.f32 %v307, %v1180
      %v1182 = vpop.f32.mrb[0].mxu0
      %1183 = vmatprep.mubr.bf16.mxu0 0
      %1184 = vmatmul.mubr.bf16.gmra.mrb[0].mxu0 %v756
      %v1185 = vpop.f32.mrb[0].mxu0
      %v1186 = vadd.f32 %v307, %v1185
      %v1187 = vpop.f32.mrb[0].mxu0
      %v1188 = vpop.f32.mrb[0].mxu0
      %v1189 = vadd.f32 %v307, %v1188
      %v1190 = vpop.f32.mrb[0].mxu0
      %1191 = vmatprep.mubr.bf16.mxu0 0
      %1192 = vmatmul.mubr.bf16.gmra.mrb[0].mxu0 %v759
      %v1193 = vpop.f32.mrb[0].mxu0
      %v1194 = vadd.f32 %v307, %v1193
      %v1195 = vpop.f32.mrb[0].mxu0
      %v1196 = vpop.f32.mrb[0].mxu0
      %v1197 = vadd.f32 %v307, %v1196
      %v1198 = vpop.f32.mrb[0].mxu0
      %1199 = vmatprep.mubr.bf16.mxu0 0
      %1200 = vmatmul.mubr.bf16.gmra.mrb[0].mxu0 %v762
      %v1201 = vpop.f32.mrb[0].mxu0
      %v1202 = vadd.f32 %v307, %v1201
      %v1203 = vpop.f32.mrb[0].mxu0
      %v1204 = vpop.f32.mrb[0].mxu0
      %v1205 = vadd.f32 %v307, %v1204
      %v1206 = vpop.f32.mrb[0].mxu0
      %1207 = vmatprep.mubr.bf16.mxu0 0
      %1208 = vmatmul.mubr.bf16.gmra.mrb[0].mxu0 %v765
      %v1209 = vpop.f32.mrb[0].mxu0
      %v1210 = vadd.f32 %v307, %v1209
      %v1211 = vpop.f32.mrb[0].mxu0
      %v1212 = vpop.f32.mrb[0].mxu0
      %v1213 = vadd.f32 %v307, %v1212
      %v1214 = vpop.f32.mrb[0].mxu0
      %1215 = vmatprep.mubr.bf16.mxu0 0
      %1216 = vmatmul.mubr.bf16.gmra.mrb[0].mxu0 %v768
      %v1217 = vpop.f32.mrb[0].mxu0
      %v1218 = vadd.f32 %v307, %v1217
      %v1219 = vpop.f32.mrb[0].mxu0
      %v1220 = vpop.f32.mrb[0].mxu0
      %v1221 = vadd.f32 %v307, %v1220
      %v1222 = vpop.f32.mrb[0].mxu0
      %1223 = vmatprep.mubr.bf16.mxu0 0
      %1224 = vmatmul.mubr.bf16.gmra.mrb[0].mxu0 %v771
      %v1225 = vpop.f32.mrb[0].mxu0
      %v1226 = vadd.f32 %v307, %v1225
      %v1227 = vpop.f32.mrb[0].mxu0
      %v1228 = vpop.f32.mrb[0].mxu0
      %v1229 = vadd.f32 %v307, %v1228
      %v1230 = vpop.f32.mrb[0].mxu0
      %1231 = vmatprep.mubr.bf16.mxu0 0
      %1232 = vmatmul.mubr.bf16.gmra.mrb[0].mxu0 %v774
      %v1233 = vpop.f32.mrb[0].mxu0
      %v1234 = vadd.f32 %v307, %v1233
      %v1235 = vpop.f32.mrb[0].mxu0
      %v1236 = vpop.f32.mrb[0].mxu0
      %v1237 = vadd.f32 %v307, %v1236
      %v1238 = vpop.f32.mrb[0].mxu0
      %1239 = vmatprep.mubr.bf16.mxu0 0
      %1240 = vmatmul.mubr.bf16.gmra.mrb[0].mxu0 %v777
      %v1241 = vpop.f32.mrb[0].mxu0
      %v1242 = vadd.f32 %v307, %v1241
      %v1243 = vpop.f32.mrb[0].mxu0
      %v1244 = vpop.f32.mrb[0].mxu0
      %v1245 = vadd.f32 %v307, %v1244
      %v1246 = vpop.f32.mrb[0].mxu0
      %1247 = vmatprep.mubr.bf16.mxu0 0
      %1248 = vmatmul.mubr.bf16.gmra.mrb[0].mxu0 %v780
      %v1249 = vpop.f32.mrb[0].mxu0
      %v1250 = vadd.f32 %v307, %v1249
      %v1251 = vpop.f32.mrb[0].mxu0
      %v1252 = vpop.f32.mrb[0].mxu0
      %v1253 = vadd.f32 %v307, %v1252
      %v1254 = vpop.f32.mrb[0].mxu0
      %1255 = vmatprep.mubr.bf16.mxu0 0
      %1256 = vmatmul.mubr.bf16.gmra.mrb[0].mxu0 %v783
      %v1257 = vpop.f32.mrb[0].mxu0
      %v1258 = vadd.f32 %v307, %v1257
      %v1259 = vpop.f32.mrb[0].mxu0
      %v1260 = vpop.f32.mrb[0].mxu0
      %v1261 = vadd.f32 %v307, %v1260
      %v1262 = vpop.f32.mrb[0].mxu0
      %1263 = vmatprep.mubr.bf16.mxu0 0
      %1264 = vmatmul.mubr.bf16.gmra.mrb[0].mxu0 %v786
      %v1265 = vpop.f32.mrb[0].mxu0
      %v1266 = vadd.f32 %v307, %v1265
      %v1267 = vpop.f32.mrb[0].mxu0
      %v1268 = vpop.f32.mrb[0].mxu0
      %v1269 = vadd.f32 %v307, %v1268
      %v1270 = vpop.f32.mrb[0].mxu0
      %1271 = vmatprep.mubr.bf16.mxu0 0
      %1272 = vmatmul.mubr.bf16.gmra.mrb[0].mxu0 %v789
      %v1273 = vpop.f32.mrb[0].mxu0
      %v1274 = vadd.f32 %v307, %v1273
      %v1275 = vpop.f32.mrb[0].mxu0
      %v1276 = vpop.f32.mrb[0].mxu0
      %v1277 = vadd.f32 %v307, %v1276
      %v1278 = vpop.f32.mrb[0].mxu0
      %1279 = vmatprep.mubr.bf16.mxu0 0
      %1280 = vmatmul.mubr.bf16.gmra.mrb[0].mxu0 %v792
      %v1281 = vpop.f32.mrb[0].mxu0
      %v1282 = vadd.f32 %v307, %v1281
      %v1283 = vpop.f32.mrb[0].mxu0
      %v1284 = vpop.f32.mrb[0].mxu0
      %v1285 = vadd.f32 %v307, %v1284
      %v1286 = vpop.f32.mrb[0].mxu0
      %1287 = vmatprep.mubr.bf16.mxu0 0
      %1288 = vmatmul.mubr.bf16.gmra.mrb[0].mxu0 %v795
      %v1289 = vpop.f32.mrb[0].mxu0
      %v1290 = vadd.f32 %v307, %v1289
      %v1291 = vpop.f32.mrb[0].mxu0
      %v1292 = vpop.f32.mrb[0].mxu0
      %v1293 = vadd.f32 %v307, %v1292
      %v1294 = vpop.f32.mrb[0].mxu0
      %1295 = vmatprep.mubr.bf16.mxu0 0
      %1296 = vmatmul.mubr.bf16.gmra.mrb[0].mxu0 %v798
      %v1297 = vpop.f32.mrb[0].mxu0
      %v1298 = vadd.f32 %v307, %v1297
      %v1299 = vpop.f32.mrb[0].mxu0
      %v1300 = vpop.f32.mrb[0].mxu0
      %v1301 = vadd.f32 %v307, %v1300
      %v1302 = vpop.f32.mrb[0].mxu0
      %1303 = vmatprep.mubr.bf16.mxu0 0
      %1304 = vmatmul.mubr.bf16.gmra.mrb[0].mxu0 %v801
      %v1305 = vpop.f32.mrb[0].mxu0
      %v1306 = vadd.f32 %v307, %v1305
      %v1307 = vpop.f32.mrb[0].mxu0
      %v1308 = vpop.f32.mrb[0].mxu0
      %v1309 = vadd.f32 %v307, %v1308
      %v1310 = vpop.f32.mrb[0].mxu0
      %1311 = vmatprep.mubr.bf16.mxu0 0
      %1312 = vmatmul.mubr.bf16.gmra.mrb[0].mxu0 %v804
      %v1313 = vpop.f32.mrb[0].mxu0
      %v1314 = vadd.f32 %v307, %v1313
      %v1315 = vpop.f32.mrb[0].mxu0
      %v1316 = vpop.f32.mrb[0].mxu0
      %v1317 = vadd.f32 %v307, %v1316
      %v1318 = vpop.f32.mrb[0].mxu0
      %1319 = vmatprep.mubr.bf16.mxu0 0
      %1320 = vmatmul.mubr.bf16.gmra.mrb[0].mxu0 %v807
      %v1321 = vpop.f32.mrb[0].mxu0
      %v1322 = vadd.f32 %v307, %v1321
      %v1323 = vpop.f32.mrb[0].mxu0
      %v1324 = vpop.f32.mrb[0].mxu0
      %v1325 = vadd.f32 %v307, %v1324
      %v1326 = vpop.f32.mrb[0].mxu0
      %1327 = vmatprep.mubr.bf16.mxu0 0
      %1328 = vmatmul.mubr.bf16.gmra.mrb[0].mxu0 %v810
      %v1329 = vpop.f32.mrb[0].mxu0
      %v1330 = vadd.f32 %v307, %v1329
      %v1331 = vpop.f32.mrb[0].mxu0
      %v1332 = vpop.f32.mrb[0].mxu0
      %v1333 = vadd.f32 %v307, %v1332
      %v1334 = vpop.f32.mrb[0].mxu0
      %1335 = vmatprep.mubr.bf16.mxu0 0
      %1336 = vmatmul.mubr.bf16.gmra.mrb[0].mxu0 %v813
      %v1337 = vpop.f32.mrb[0].mxu0
      %v1338 = vadd.f32 %v307, %v1337
      %v1339 = vpop.f32.mrb[0].mxu0
      %v1340 = vpop.f32.mrb[0].mxu0
      %v1341 = vadd.f32 %v307, %v1340
      %v1342 = vpop.f32.mrb[0].mxu0
      %1343 = vmatprep.mubr.bf16.mxu0 0
      %1344 = vmatmul.mubr.bf16.gmra.mrb[0].mxu0 %v816
      %v1345 = vpop.f32.mrb[0].mxu0
      %v1346 = vadd.f32 %v307, %v1345
      %v1347 = vpop.f32.mrb[0].mxu0
      %v1348 = vpop.f32.mrb[0].mxu0
      %v1349 = vadd.f32 %v307, %v1348
      %v1350 = vpop.f32.mrb[0].mxu0
      %1351 = vmatprep.mubr.bf16.mxu0 0
      %1352 = vmatmul.mubr.bf16.gmra.mrb[0].mxu0 %v819
      %v1353 = vpop.f32.mrb[0].mxu0
      %v1354 = vadd.f32 %v307, %v1353
      %v1355 = vpop.f32.mrb[0].mxu0
      %v1356 = vpop.f32.mrb[0].mxu0
      %v1357 = vadd.f32 %v307, %v1356
      %v1358 = vpop.f32.mrb[0].mxu0
      %1359 = vmatprep.mubr.bf16.mxu0 0
      %1360 = vmatmul.mubr.bf16.gmra.mrb[0].mxu0 %v822
      %v1361 = vpop.f32.mrb[0].mxu0
      %v1362 = vadd.f32 %v307, %v1361
      %v1363 = vpop.f32.mrb[0].mxu0
      %v1364 = vpop.f32.mrb[0].mxu0
      %v1365 = vadd.f32 %v307, %v1364
      %v1366 = vpop.f32.mrb[0].mxu0
      %1367 = vmatprep.mubr.bf16.mxu0 0
      %1368 = vmatmul.mubr.bf16.gmra.mrb[0].mxu0 %v825
      %v1369 = vpop.f32.mrb[0].mxu0
      %v1370 = vadd.f32 %v307, %v1369
      %v1371 = vpop.f32.mrb[0].mxu0
      %v1372 = vpop.f32.mrb[0].mxu0
      %v1373 = vadd.f32 %v307, %v1372
      %v1374 = vpop.f32.mrb[0].mxu0
      %1375 = vdwg.mxu0
      %v1376 = vld [vmem:[%s165 + $0x10] sm:$0xf]
      %v1377 = vld [vmem:[%s165 + $0x14] sm:$0xf]
      %v1378 = vld [vmem:[%s165 + $0x18] sm:$0xf]
      %v1379 = vld [vmem:[%s165 + $0x1c] sm:$0xf]
      %v1380 = vld [vmem:[%s165 + $0x20] sm:$0xf]
      %v1381 = vld [vmem:[%s165 + $0x24] sm:$0xf]
      %v1382 = vld [vmem:[%s165 + $0x28] sm:$0xf]
      %v1383 = vld [vmem:[%s165 + $0x2c] sm:$0xf]
      %v1384 = vld [vmem:[%s165 + $0x30] sm:$0xf]
      %v1385 = vld [vmem:[%s165 + $0x34] sm:$0xf]
      %v1386 = vld [vmem:[%s165 + $0x38] sm:$0xf]
      %v1387 = vld [vmem:[%s165 + $0x3c] sm:$0xf]
      %v1388 = vld [vmem:[%s165 + $0x40] sm:$0xf]
      %v1389 = vld [vmem:[%s165 + $0x44] sm:$0xf]
      %v1390 = vld [vmem:[%s165 + $0x48] sm:$0xf]
      %v1391 = vld [vmem:[%s165 + $0x4c] sm:$0xf]
      %v1392 = vld [vmem:[%s165 + $0x50] sm:$0xf]
      %v1393 = vld [vmem:[%s165 + $0x54] sm:$0xf]
      %v1394 = vld [vmem:[%s165 + $0x58] sm:$0xf]
      %v1395 = vld [vmem:[%s165 + $0x5c] sm:$0xf]
      %v1396 = vld [vmem:[%s165 + $0x60] sm:$0xf]
      %v1397 = vld [vmem:[%s165 + $0x64] sm:$0xf]
      %v1398 = vld [vmem:[%s165 + $0x68] sm:$0xf]
      %v1399 = vld [vmem:[%s165 + $0x6c] sm:$0xf]
      %v1400 = vld [vmem:[%s165 + $0x70] sm:$0xf]
      %v1401 = vld [vmem:[%s165 + $0x74] sm:$0xf]
      %v1402 = vld [vmem:[%s165 + $0x78] sm:$0xf]
      %v1403 = vld [vmem:[%s165 + $0x7c] sm:$0xf]
      %v1404 = vld [vmem:[%s165 + $0x80] sm:$0xf]
      %v1405 = vld [vmem:[%s165 + $0x84] sm:$0xf]
      %v1406 = vld [vmem:[%s165 + $0x88] sm:$0xf]
      %v1407 = vld [vmem:[%s165 + $0x8c] sm:$0xf]
      %v1408 = vld [vmem:[%s165 + $0x90] sm:$0xf]
      %v1409 = vld [vmem:[%s165 + $0x94] sm:$0xf]
      %v1410 = vld [vmem:[%s165 + $0x98] sm:$0xf]
      %v1411 = vld [vmem:[%s165 + $0x9c] sm:$0xf]
      %v1412 = vld [vmem:[%s165 + $0xa0] sm:$0xf]
      %v1413 = vld [vmem:[%s165 + $0xa4] sm:$0xf]
      %v1414 = vld [vmem:[%s165 + $0xa8] sm:$0xf]
      %v1415 = vld [vmem:[%s165 + $0xac] sm:$0xf]
      %v1416 = vld [vmem:[%s165 + $0xb0] sm:$0xf]
      %v1417 = vld [vmem:[%s165 + $0xb4] sm:$0xf]
      %v1418 = vld [vmem:[%s165 + $0xb8] sm:$0xf]
      %v1419 = vld [vmem:[%s165 + $0xbc] sm:$0xf]
      %v1420 = vld [vmem:[%s165 + $0xc0] sm:$0xf]
      %v1421 = vld [vmem:[%s165 + $0xc4] sm:$0xf]
      %v1422 = vld [vmem:[%s165 + $0xc8] sm:$0xf]
      %v1423 = vld [vmem:[%s165 + $0xcc] sm:$0xf]
      %v1424 = vld [vmem:[%s165 + $0xd0] sm:$0xf]
      %v1425 = vld [vmem:[%s165 + $0xd4] sm:$0xf]
      %v1426 = vld [vmem:[%s165 + $0xd8] sm:$0xf]
      %v1427 = vld [vmem:[%s165 + $0xdc] sm:$0xf]
      %v1428 = vld [vmem:[%s165 + $0xe0] sm:$0xf]
      %v1429 = vld [vmem:[%s165 + $0xe4] sm:$0xf]
      %v1430 = vld [vmem:[%s165 + $0xe8] sm:$0xf]
      %v1431 = vld [vmem:[%s165 + $0xec] sm:$0xf]
      %v1432 = vld [vmem:[%s165 + $0xf0] sm:$0xf]
      %v1433 = vld [vmem:[%s165 + $0xf4] sm:$0xf]
      %v1434 = vld [vmem:[%s165 + $0xf8] sm:$0xf]
      %v1435 = vld [vmem:[%s165 + $0xfc] sm:$0xf]
      %v1436 = vld [vmem:[%s165 + $0x100] sm:$0xf]
      %v1437 = vld [vmem:[%s165 + $0x104] sm:$0xf]
      %v1438 = vld [vmem:[%s165 + $0x108] sm:$0xf]
      %v1439 = vld [vmem:[%s165 + $0x10c] sm:$0xf]
      %v1440 = vld [vmem:[%s165 + $0x110] sm:$0xf]
      %v1441 = vld [vmem:[%s165 + $0x114] sm:$0xf]
      %v1442 = vld [vmem:[%s165 + $0x118] sm:$0xf]
      %v1443 = vld [vmem:[%s165 + $0x11c] sm:$0xf]
      %v1444 = vld [vmem:[%s165 + $0x120] sm:$0xf]
      %v1445 = vld [vmem:[%s165 + $0x124] sm:$0xf]
      %v1446 = vld [vmem:[%s165 + $0x128] sm:$0xf]
      %v1447 = vld [vmem:[%s165 + $0x12c] sm:$0xf]
      %v1448 = vld [vmem:[%s165 + $0x130] sm:$0xf]
      %v1449 = vld [vmem:[%s165 + $0x134] sm:$0xf]
      %v1450 = vld [vmem:[%s165 + $0x138] sm:$0xf]
      %v1451 = vld [vmem:[%s165 + $0x13c] sm:$0xf]
      %v1452 = vld [vmem:[%s165 + $0x140] sm:$0xf]
      %v1453 = vld [vmem:[%s165 + $0x144] sm:$0xf]
      %v1454 = vld [vmem:[%s165 + $0x148] sm:$0xf]
      %v1455 = vld [vmem:[%s165 + $0x14c] sm:$0xf]
      %v1456 = vld [vmem:[%s165 + $0x150] sm:$0xf]
      %v1457 = vld [vmem:[%s165 + $0x154] sm:$0xf]
      %v1458 = vld [vmem:[%s165 + $0x158] sm:$0xf]
      %v1459 = vld [vmem:[%s165 + $0x15c] sm:$0xf]
      %v1460 = vld [vmem:[%s165 + $0x160] sm:$0xf]
      %v1461 = vld [vmem:[%s165 + $0x164] sm:$0xf]
      %v1462 = vld [vmem:[%s165 + $0x168] sm:$0xf]
      %v1463 = vld [vmem:[%s165 + $0x16c] sm:$0xf]
      %v1464 = vld [vmem:[%s165 + $0x170] sm:$0xf]
      %v1465 = vld [vmem:[%s165 + $0x174] sm:$0xf]
      %v1466 = vld [vmem:[%s165 + $0x178] sm:$0xf]
      %v1467 = vld [vmem:[%s165 + $0x17c] sm:$0xf]
      %v1468 = vld [vmem:[%s165 + $0x180] sm:$0xf]
      %v1469 = vld [vmem:[%s165 + $0x184] sm:$0xf]
      %v1470 = vld [vmem:[%s165 + $0x188] sm:$0xf]
      %v1471 = vld [vmem:[%s165 + $0x18c] sm:$0xf]
      %v1472 = vld [vmem:[%s165 + $0x190] sm:$0xf]
      %v1473 = vld [vmem:[%s165 + $0x194] sm:$0xf]
      %v1474 = vld [vmem:[%s165 + $0x198] sm:$0xf]
      %v1475 = vld [vmem:[%s165 + $0x19c] sm:$0xf]
      %v1476 = vld [vmem:[%s165 + $0x1a0] sm:$0xf]
      %v1477 = vld [vmem:[%s165 + $0x1a4] sm:$0xf]
      %v1478 = vld [vmem:[%s165 + $0x1a8] sm:$0xf]
      %v1479 = vld [vmem:[%s165 + $0x1ac] sm:$0xf]
      %v1480 = vld [vmem:[%s165 + $0x1b0] sm:$0xf]
      %v1481 = vld [vmem:[%s165 + $0x1b4] sm:$0xf]
      %v1482 = vld [vmem:[%s165 + $0x1b8] sm:$0xf]
      %v1483 = vld [vmem:[%s165 + $0x1bc] sm:$0xf]
      %v1484 = vld [vmem:[%s165 + $0x1c0] sm:$0xf]
      %v1485 = vld [vmem:[%s165 + $0x1c4] sm:$0xf]
      %v1486 = vld [vmem:[%s165 + $0x1c8] sm:$0xf]
      %v1487 = vld [vmem:[%s165 + $0x1cc] sm:$0xf]
      %v1488 = vld [vmem:[%s165 + $0x1d0] sm:$0xf]
      %v1489 = vld [vmem:[%s165 + $0x1d4] sm:$0xf]
      %v1490 = vld [vmem:[%s165 + $0x1d8] sm:$0xf]
      %v1491 = vld [vmem:[%s165 + $0x1dc] sm:$0xf]
      %v1492 = vld [vmem:[%s165 + $0x1e0] sm:$0xf]
      %v1493 = vld [vmem:[%s165 + $0x1e4] sm:$0xf]
      %v1494 = vld [vmem:[%s165 + $0x1e8] sm:$0xf]
      %v1495 = vld [vmem:[%s165 + $0x1ec] sm:$0xf]
      %v1496 = vld [vmem:[%s165 + $0x1f0] sm:$0xf]
      %v1497 = vld [vmem:[%s165 + $0x1f4] sm:$0xf]
      %v1498 = vld [vmem:[%s165 + $0x1f8] sm:$0xf]
      %v1499 = vld [vmem:[%s165 + $0x1fc] sm:$0xf]
      %v1500 = vld [vmem:[%s165 + $0x200] sm:$0xf]
      %v1501 = vld [vmem:[%s165 + $0x204] sm:$0xf]
      %v1502 = vld [vmem:[%s165 + $0x208] sm:$0xf]
      %v1503 = vld [vmem:[%s165 + $0x20c] sm:$0xf]
      %s1504 = scalar_lea.vmem %s1, 8
      %v1505 = vld [vmem:[%s1504] sm:$0xf]
      %v1506 = vld [vmem:[%s1504 + $0x4] sm:$0x3]
      %v1635 = vunpack.c.l.b16 %v1376
      %v1636 = vunpack.c.l.b16 %v1377
      %v1637 = vunpack.c.l.b16 %v1378
      %v1638 = vunpack.c.l.b16 %v1379
      %v1639 = vunpack.c.l.b16 %v1380
      %v1640 = vunpack.c.l.b16 %v1381
      %v1641 = vunpack.c.l.b16 %v1382
      %v1642 = vunpack.c.l.b16 %v1383
      %v1643 = vunpack.c.l.b16 %v1384
      %v1644 = vunpack.c.l.b16 %v1385
      %v1645 = vunpack.c.l.b16 %v1386
      %v1646 = vunpack.c.l.b16 %v1387
      %v1647 = vunpack.c.l.b16 %v1388
      %v1648 = vunpack.c.l.b16 %v1389
      %v1649 = vunpack.c.l.b16 %v1390
      %v1650 = vunpack.c.l.b16 %v1391
      %v1651 = vunpack.c.l.b16 %v1392
      %v1652 = vunpack.c.l.b16 %v1393
      %v1653 = vunpack.c.l.b16 %v1394
      %v1654 = vunpack.c.l.b16 %v1395
      %v1655 = vunpack.c.l.b16 %v1396
      %v1656 = vunpack.c.l.b16 %v1397
      %v1657 = vunpack.c.l.b16 %v1398
      %v1658 = vunpack.c.l.b16 %v1399
      %v1659 = vunpack.c.l.b16 %v1400
      %v1660 = vunpack.c.l.b16 %v1401
      %v1661 = vunpack.c.l.b16 %v1402
      %v1662 = vunpack.c.l.b16 %v1403
      %v1663 = vunpack.c.l.b16 %v1404
      %v1664 = vunpack.c.l.b16 %v1405
      %v1665 = vunpack.c.l.b16 %v1406
      %v1666 = vunpack.c.l.b16 %v1407
      %v1667 = vunpack.c.l.b16 %v1408
      %v1668 = vunpack.c.l.b16 %v1409
      %v1669 = vunpack.c.l.b16 %v1410
      %v1670 = vunpack.c.l.b16 %v1411
      %v1671 = vunpack.c.l.b16 %v1412
      %v1672 = vunpack.c.l.b16 %v1413
      %v1673 = vunpack.c.l.b16 %v1414
      %v1674 = vunpack.c.l.b16 %v1415
      %v1675 = vunpack.c.l.b16 %v1416
      %v1676 = vunpack.c.l.b16 %v1417
      %v1677 = vunpack.c.l.b16 %v1418
      %v1678 = vunpack.c.l.b16 %v1419
      %v1679 = vunpack.c.l.b16 %v1420
      %v1680 = vunpack.c.l.b16 %v1421
      %v1681 = vunpack.c.l.b16 %v1422
      %v1682 = vunpack.c.l.b16 %v1423
      %v1683 = vunpack.c.l.b16 %v1424
      %v1684 = vunpack.c.l.b16 %v1425
      %v1685 = vunpack.c.l.b16 %v1426
      %v1686 = vunpack.c.l.b16 %v1427
      %v1687 = vunpack.c.l.b16 %v1428
      %v1688 = vunpack.c.l.b16 %v1429
      %v1689 = vunpack.c.l.b16 %v1430
      %v1690 = vunpack.c.l.b16 %v1431
      %v1691 = vunpack.c.l.b16 %v1432
      %v1692 = vunpack.c.l.b16 %v1433
      %v1693 = vunpack.c.l.b16 %v1434
      %v1694 = vunpack.c.l.b16 %v1435
      %v1695 = vunpack.c.l.b16 %v1436
      %v1696 = vunpack.c.l.b16 %v1437
      %v1697 = vunpack.c.l.b16 %v1438
      %v1698 = vunpack.c.l.b16 %v1439
      %v1699 = vunpack.c.l.b16 %v1440
      %v1700 = vunpack.c.l.b16 %v1441
      %v1701 = vunpack.c.l.b16 %v1442
      %v1702 = vunpack.c.l.b16 %v1443
      %v1703 = vunpack.c.l.b16 %v1444
      %v1704 = vunpack.c.l.b16 %v1445
      %v1705 = vunpack.c.l.b16 %v1446
      %v1706 = vunpack.c.l.b16 %v1447
      %v1707 = vunpack.c.l.b16 %v1448
      %v1708 = vunpack.c.l.b16 %v1449
      %v1709 = vunpack.c.l.b16 %v1450
      %v1710 = vunpack.c.l.b16 %v1451
      %v1711 = vunpack.c.l.b16 %v1452
      %v1712 = vunpack.c.l.b16 %v1453
      %v1713 = vunpack.c.l.b16 %v1454
      %v1714 = vunpack.c.l.b16 %v1455
      %v1715 = vunpack.c.l.b16 %v1456
      %v1716 = vunpack.c.l.b16 %v1457
      %v1717 = vunpack.c.l.b16 %v1458
      %v1718 = vunpack.c.l.b16 %v1459
      %v1719 = vunpack.c.l.b16 %v1460
      %v1720 = vunpack.c.l.b16 %v1461
      %v1721 = vunpack.c.l.b16 %v1462
      %v1722 = vunpack.c.l.b16 %v1463
      %v1723 = vunpack.c.l.b16 %v1464
      %v1724 = vunpack.c.l.b16 %v1465
      %v1725 = vunpack.c.l.b16 %v1466
      %v1726 = vunpack.c.l.b16 %v1467
      %v1727 = vunpack.c.l.b16 %v1468
      %v1728 = vunpack.c.l.b16 %v1469
      %v1729 = vunpack.c.l.b16 %v1470
      %v1730 = vunpack.c.l.b16 %v1471
      %v1731 = vunpack.c.l.b16 %v1472
      %v1732 = vunpack.c.l.b16 %v1473
      %v1733 = vunpack.c.l.b16 %v1474
      %v1734 = vunpack.c.l.b16 %v1475
      %v1735 = vunpack.c.l.b16 %v1476
      %v1736 = vunpack.c.l.b16 %v1477
      %v1737 = vunpack.c.l.b16 %v1478
      %v1738 = vunpack.c.l.b16 %v1479
      %v1739 = vunpack.c.l.b16 %v1480
      %v1740 = vunpack.c.l.b16 %v1481
      %v1741 = vunpack.c.l.b16 %v1482
      %v1742 = vunpack.c.l.b16 %v1483
      %v1743 = vunpack.c.l.b16 %v1484
      %v1744 = vunpack.c.l.b16 %v1485
      %v1745 = vunpack.c.l.b16 %v1486
      %v1746 = vunpack.c.l.b16 %v1487
      %v1747 = vunpack.c.l.b16 %v1488
      %v1748 = vunpack.c.l.b16 %v1489
      %v1749 = vunpack.c.l.b16 %v1490
      %v1750 = vunpack.c.l.b16 %v1491
      %v1751 = vunpack.c.l.b16 %v1492
      %v1752 = vunpack.c.l.b16 %v1493
      %v1753 = vunpack.c.l.b16 %v1494
      %v1754 = vunpack.c.l.b16 %v1495
      %v1755 = vunpack.c.l.b16 %v1496
      %v1756 = vunpack.c.l.b16 %v1497
      %v1757 = vunpack.c.l.b16 %v1498
      %v1758 = vunpack.c.l.b16 %v1499
      %v1759 = vunpack.c.l.b16 %v1500
      %v1760 = vunpack.c.l.b16 %v1501
      %v1761 = vunpack.c.l.b16 %v1502
      %v1762 = vunpack.c.l.b16 %v1503
      %v1763 = vpack.c.b16 %v1636, %v1635
      %v1764 = vpack.c.b16 %v1638, %v1637
      %v1765 = vpack.c.b16 %v1640, %v1639
      %v1766 = vpack.c.b16 %v1642, %v1641
      %v1767 = vpack.c.b16 %v1644, %v1643
      %v1768 = vpack.c.b16 %v1646, %v1645
      %v1769 = vpack.c.b16 %v1648, %v1647
      %v1770 = vpack.c.b16 %v1650, %v1649
      %v1771 = vpack.c.b16 %v1652, %v1651
      %v1772 = vpack.c.b16 %v1654, %v1653
      %v1773 = vpack.c.b16 %v1656, %v1655
      %v1774 = vpack.c.b16 %v1658, %v1657
      %v1775 = vpack.c.b16 %v1660, %v1659
      %v1776 = vpack.c.b16 %v1662, %v1661
      %v1777 = vpack.c.b16 %v1664, %v1663
      %v1778 = vpack.c.b16 %v1666, %v1665
      %v1779 = vpack.c.b16 %v1668, %v1667
      %v1780 = vpack.c.b16 %v1670, %v1669
      %v1781 = vpack.c.b16 %v1672, %v1671
      %v1782 = vpack.c.b16 %v1674, %v1673
      %v1783 = vpack.c.b16 %v1676, %v1675
      %v1784 = vpack.c.b16 %v1678, %v1677
      %v1785 = vpack.c.b16 %v1680, %v1679
      %v1786 = vpack.c.b16 %v1682, %v1681
      %v1787 = vpack.c.b16 %v1684, %v1683
      %v1788 = vpack.c.b16 %v1686, %v1685
      %v1789 = vpack.c.b16 %v1688, %v1687
      %v1790 = vpack.c.b16 %v1690, %v1689
      %v1791 = vpack.c.b16 %v1692, %v1691
      %v1792 = vpack.c.b16 %v1694, %v1693
      %v1793 = vpack.c.b16 %v1696, %v1695
      %v1794 = vpack.c.b16 %v1698, %v1697
      %v1795 = vpack.c.b16 %v1700, %v1699
      %v1796 = vpack.c.b16 %v1702, %v1701
      %v1797 = vpack.c.b16 %v1704, %v1703
      %v1798 = vpack.c.b16 %v1706, %v1705
      %v1799 = vpack.c.b16 %v1708, %v1707
      %v1800 = vpack.c.b16 %v1710, %v1709
      %v1801 = vpack.c.b16 %v1712, %v1711
      %v1802 = vpack.c.b16 %v1714, %v1713
      %v1803 = vpack.c.b16 %v1716, %v1715
      %v1804 = vpack.c.b16 %v1718, %v1717
      %v1805 = vpack.c.b16 %v1720, %v1719
      %v1806 = vpack.c.b16 %v1722, %v1721
      %v1807 = vpack.c.b16 %v1724, %v1723
      %v1808 = vpack.c.b16 %v1726, %v1725
      %v1809 = vpack.c.b16 %v1728, %v1727
      %v1810 = vpack.c.b16 %v1730, %v1729
      %v1811 = vpack.c.b16 %v1732, %v1731
      %v1812 = vpack.c.b16 %v1734, %v1733
      %v1813 = vpack.c.b16 %v1736, %v1735
      %v1814 = vpack.c.b16 %v1738, %v1737
      %v1815 = vpack.c.b16 %v1740, %v1739
      %v1816 = vpack.c.b16 %v1742, %v1741
      %v1817 = vpack.c.b16 %v1744, %v1743
      %v1818 = vpack.c.b16 %v1746, %v1745
      %v1819 = vpack.c.b16 %v1748, %v1747
      %v1820 = vpack.c.b16 %v1750, %v1749
      %v1821 = vpack.c.b16 %v1752, %v1751
      %v1822 = vpack.c.b16 %v1754, %v1753
      %v1823 = vpack.c.b16 %v1756, %v1755
      %v1824 = vpack.c.b16 %v1758, %v1757
      %v1825 = vpack.c.b16 %v1760, %v1759
      %v1826 = vpack.c.b16 %v1762, %v1761
      %v1829 = vunpack.c.l.b16 %v1505
      %v1830 = vunpack.c.l.b16 %v1506
      %v1831 = vpack.c.b16 %v1830, %v1829
      %v1833 = vsel %vm634, %v1763, 0
      %v1836 = vsel %vm634, %v1764, 0
      %v1839 = vsel %vm634, %v1765, 0
      %v1842 = vsel %vm634, %v1766, 0
      %v1845 = vsel %vm634, %v1767, 0
      %v1848 = vsel %vm634, %v1768, 0
      %v1851 = vsel %vm634, %v1769, 0
      %v1854 = vsel %vm634, %v1770, 0
      %v1857 = vsel %vm634, %v1771, 0
      %v1860 = vsel %vm634, %v1772, 0
      %v1863 = vsel %vm634, %v1773, 0
      %v1866 = vsel %vm634, %v1774, 0
      %v1869 = vsel %vm634, %v1775, 0
      %v1872 = vsel %vm634, %v1776, 0
      %v1875 = vsel %vm634, %v1777, 0
      %v1878 = vsel %vm634, %v1778, 0
      %v1881 = vsel %vm634, %v1779, 0
      %v1884 = vsel %vm634, %v1780, 0
      %v1887 = vsel %vm634, %v1781, 0
      %v1890 = vsel %vm634, %v1782, 0
      %v1893 = vsel %vm634, %v1783, 0
      %v1896 = vsel %vm634, %v1784, 0
      %v1899 = vsel %vm634, %v1785, 0
      %v1902 = vsel %vm634, %v1786, 0
      %v1905 = vsel %vm634, %v1787, 0
      %v1908 = vsel %vm634, %v1788, 0
      %v1911 = vsel %vm634, %v1789, 0
      %v1914 = vsel %vm634, %v1790, 0
      %v1917 = vsel %vm634, %v1791, 0
      %v1920 = vsel %vm634, %v1792, 0
      %v1923 = vsel %vm634, %v1793, 0
      %v1926 = vsel %vm634, %v1794, 0
      %v1929 = vsel %vm634, %v1795, 0
      %v1932 = vsel %vm634, %v1796, 0
      %v1935 = vsel %vm634, %v1797, 0
      %v1938 = vsel %vm634, %v1798, 0
      %v1941 = vsel %vm634, %v1799, 0
      %v1944 = vsel %vm634, %v1800, 0
      %v1947 = vsel %vm634, %v1801, 0
      %v1950 = vsel %vm634, %v1802, 0
      %v1953 = vsel %vm634, %v1803, 0
      %v1956 = vsel %vm634, %v1804, 0
      %v1959 = vsel %vm634, %v1805, 0
      %v1962 = vsel %vm634, %v1806, 0
      %v1965 = vsel %vm634, %v1807, 0
      %v1968 = vsel %vm634, %v1808, 0
      %v1971 = vsel %vm634, %v1809, 0
      %v1974 = vsel %vm634, %v1810, 0
      %v1977 = vsel %vm634, %v1811, 0
      %v1980 = vsel %vm634, %v1812, 0
      %v1983 = vsel %vm634, %v1813, 0
      %v1986 = vsel %vm634, %v1814, 0
      %v1989 = vsel %vm634, %v1815, 0
      %v1992 = vsel %vm634, %v1816, 0
      %v1995 = vsel %vm634, %v1817, 0
      %v1998 = vsel %vm634, %v1818, 0
      %v2001 = vsel %vm634, %v1819, 0
      %v2004 = vsel %vm634, %v1820, 0
      %v2007 = vsel %vm634, %v1821, 0
      %v2010 = vsel %vm634, %v1822, 0
      %v2013 = vsel %vm634, %v1823, 0
      %v2016 = vsel %vm634, %v1824, 0
      %v2019 = vsel %vm634, %v1825, 0
      %v2022 = vsel %vm634, %v1826, 0
      %v2025 = vsel %vm827, %v1831, 0
      %2027 = vmatprep.subr.bf16.mxu0 0
      %2028 = vmatpush1.bf16.msra.mxu0 %v2025
      %2029 = vmatprep.subr.bf16.mxu0 0
      %2030 = vmatpush1.bf16.msra.mxu0 0
      %2031 = vmatprep.subr.bf16.mxu0 0
      %2032 = vmatpush1.bf16.msra.mxu0 0
      %2033 = vmatprep.subr.bf16.mxu0 0
      %2034 = vmatpush1.bf16.msra.mxu0 0
      %2035 = vmatprep.subr.bf16.mxu0 0
      %2036 = vmatpush1.bf16.msra.mxu0 0
      %2037 = vmatprep.subr.bf16.mxu0 0
      %2038 = vmatpush1.bf16.msra.mxu0 0
      %2039 = vmatprep.subr.bf16.mxu0 0
      %2040 = vmatpush1.bf16.msra.mxu0 0
      %2041 = vmatprep.subr.bf16.mxu0 0
      %2042 = vmatpush1.bf16.msra.mxu0 0
      %2043 = vmatprep.subr.bf16.mxu0 0
      %2044 = vmatpush1.bf16.msra.mxu0 0
      %2045 = vmatprep.subr.bf16.mxu0 0
      %2046 = vmatpush1.bf16.msra.mxu0 0
      %2047 = vmatprep.subr.bf16.mxu0 0
      %2048 = vmatpush1.bf16.msra.mxu0 0
      %2049 = vmatprep.subr.bf16.mxu0 0
      %2050 = vmatpush1.bf16.msra.mxu0 0
      %2051 = vmatprep.subr.bf16.mxu0 0
      %2052 = vmatpush1.bf16.msra.mxu0 0
      %2053 = vmatprep.subr.bf16.mxu0 0
      %2054 = vmatpush1.bf16.msra.mxu0 0
      %2055 = vmatprep.subr.bf16.mxu0 0
      %2056 = vmatpush1.bf16.msra.mxu0 0
      %2057 = vmatprep.subr.bf16.mxu0 0
      %2058 = vmatpush1.bf16.msra.mxu0 0
      %2059 = vmatprep.mubr.bf16.mxu0 0
      %2060 = vmatmul.mubr.bf16.gmra.mrb[0].mxu0 %v1833
      %v2061 = vpop.f32.mrb[0].mxu0
      %v2062 = vadd.f32 0.0, %v2061
      %v2063 = vpop.f32.mrb[0].mxu0
      %v2064 = vpop.f32.mrb[0].mxu0
      %v2065 = vadd.f32 0.0, %v2064
      %v2066 = vpop.f32.mrb[0].mxu0
      %2067 = vmatprep.mubr.bf16.mxu0 0
      %2068 = vmatmul.mubr.bf16.gmra.mrb[0].mxu0 %v1836
      %v2069 = vpop.f32.mrb[0].mxu0
      %v2070 = vadd.f32 0.0, %v2069
      %v2071 = vpop.f32.mrb[0].mxu0
      %v2072 = vpop.f32.mrb[0].mxu0
      %v2073 = vadd.f32 0.0, %v2072
      %v2074 = vpop.f32.mrb[0].mxu0
      %2075 = vmatprep.mubr.bf16.mxu0 0
      %2076 = vmatmul.mubr.bf16.gmra.mrb[0].mxu0 %v1839
      %v2077 = vpop.f32.mrb[0].mxu0
      %v2078 = vadd.f32 0.0, %v2077
      %v2079 = vpop.f32.mrb[0].mxu0
      %v2080 = vpop.f32.mrb[0].mxu0
      %v2081 = vadd.f32 0.0, %v2080
      %v2082 = vpop.f32.mrb[0].mxu0
      %2083 = vmatprep.mubr.bf16.mxu0 0
      %2084 = vmatmul.mubr.bf16.gmra.mrb[0].mxu0 %v1842
      %v2085 = vpop.f32.mrb[0].mxu0
      %v2086 = vadd.f32 0.0, %v2085
      %v2087 = vpop.f32.mrb[0].mxu0
      %v2088 = vpop.f32.mrb[0].mxu0
      %v2089 = vadd.f32 0.0, %v2088
      %v2090 = vpop.f32.mrb[0].mxu0
      %2091 = vmatprep.mubr.bf16.mxu0 0
      %2092 = vmatmul.mubr.bf16.gmra.mrb[0].mxu0 %v1845
      %v2093 = vpop.f32.mrb[0].mxu0
      %v2094 = vadd.f32 0.0, %v2093
      %v2095 = vpop.f32.mrb[0].mxu0
      %v2096 = vpop.f32.mrb[0].mxu0
      %v2097 = vadd.f32 0.0, %v2096
      %v2098 = vpop.f32.mrb[0].mxu0
      %2099 = vmatprep.mubr.bf16.mxu0 0
      %2100 = vmatmul.mubr.bf16.gmra.mrb[0].mxu0 %v1848
      %v2101 = vpop.f32.mrb[0].mxu0
      %v2102 = vadd.f32 0.0, %v2101
      %v2103 = vpop.f32.mrb[0].mxu0
      %v2104 = vpop.f32.mrb[0].mxu0
      %v2105 = vadd.f32 0.0, %v2104
      %v2106 = vpop.f32.mrb[0].mxu0
      %2107 = vmatprep.mubr.bf16.mxu0 0
      %2108 = vmatmul.mubr.bf16.gmra.mrb[0].mxu0 %v1851
      %v2109 = vpop.f32.mrb[0].mxu0
      %v2110 = vadd.f32 0.0, %v2109
      %v2111 = vpop.f32.mrb[0].mxu0
      %v2112 = vpop.f32.mrb[0].mxu0
      %v2113 = vadd.f32 0.0, %v2112
      %v2114 = vpop.f32.mrb[0].mxu0
      %2115 = vmatprep.mubr.bf16.mxu0 0
      %2116 = vmatmul.mubr.bf16.gmra.mrb[0].mxu0 %v1854
      %v2117 = vpop.f32.mrb[0].mxu0
      %v2118 = vadd.f32 0.0, %v2117
      %v2119 = vpop.f32.mrb[0].mxu0
      %v2120 = vpop.f32.mrb[0].mxu0
      %v2121 = vadd.f32 0.0, %v2120
      %v2122 = vpop.f32.mrb[0].mxu0
      %2123 = vmatprep.mubr.bf16.mxu0 0
      %2124 = vmatmul.mubr.bf16.gmra.mrb[0].mxu0 %v1857
      %v2125 = vpop.f32.mrb[0].mxu0
      %v2126 = vadd.f32 0.0, %v2125
      %v2127 = vpop.f32.mrb[0].mxu0
      %v2128 = vpop.f32.mrb[0].mxu0
      %v2129 = vadd.f32 0.0, %v2128
      %v2130 = vpop.f32.mrb[0].mxu0
      %2131 = vmatprep.mubr.bf16.mxu0 0
      %2132 = vmatmul.mubr.bf16.gmra.mrb[0].mxu0 %v1860
      %v2133 = vpop.f32.mrb[0].mxu0
      %v2134 = vadd.f32 0.0, %v2133
      %v2135 = vpop.f32.mrb[0].mxu0
      %v2136 = vpop.f32.mrb[0].mxu0
      %v2137 = vadd.f32 0.0, %v2136
      %v2138 = vpop.f32.mrb[0].mxu0
      %2139 = vmatprep.mubr.bf16.mxu0 0
      %2140 = vmatmul.mubr.bf16.gmra.mrb[0].mxu0 %v1863
      %v2141 = vpop.f32.mrb[0].mxu0
      %v2142 = vadd.f32 0.0, %v2141
      %v2143 = vpop.f32.mrb[0].mxu0
      %v2144 = vpop.f32.mrb[0].mxu0
      %v2145 = vadd.f32 0.0, %v2144
      %v2146 = vpop.f32.mrb[0].mxu0
      %2147 = vmatprep.mubr.bf16.mxu0 0
      %2148 = vmatmul.mubr.bf16.gmra.mrb[0].mxu0 %v1866
      %v2149 = vpop.f32.mrb[0].mxu0
      %v2150 = vadd.f32 0.0, %v2149
      %v2151 = vpop.f32.mrb[0].mxu0
      %v2152 = vpop.f32.mrb[0].mxu0
      %v2153 = vadd.f32 0.0, %v2152
      %v2154 = vpop.f32.mrb[0].mxu0
      %2155 = vmatprep.mubr.bf16.mxu0 0
      %2156 = vmatmul.mubr.bf16.gmra.mrb[0].mxu0 %v1869
      %v2157 = vpop.f32.mrb[0].mxu0
      %v2158 = vadd.f32 0.0, %v2157
      %v2159 = vpop.f32.mrb[0].mxu0
      %v2160 = vpop.f32.mrb[0].mxu0
      %v2161 = vadd.f32 0.0, %v2160
      %v2162 = vpop.f32.mrb[0].mxu0
      %2163 = vmatprep.mubr.bf16.mxu0 0
      %2164 = vmatmul.mubr.bf16.gmra.mrb[0].mxu0 %v1872
      %v2165 = vpop.f32.mrb[0].mxu0
      %v2166 = vadd.f32 0.0, %v2165
      %v2167 = vpop.f32.mrb[0].mxu0
      %v2168 = vpop.f32.mrb[0].mxu0
      %v2169 = vadd.f32 0.0, %v2168
      %v2170 = vpop.f32.mrb[0].mxu0
      %2171 = vmatprep.mubr.bf16.mxu0 0
      %2172 = vmatmul.mubr.bf16.gmra.mrb[0].mxu0 %v1875
      %v2173 = vpop.f32.mrb[0].mxu0
      %v2174 = vadd.f32 0.0, %v2173
      %v2175 = vpop.f32.mrb[0].mxu0
      %v2176 = vpop.f32.mrb[0].mxu0
      %v2177 = vadd.f32 0.0, %v2176
      %v2178 = vpop.f32.mrb[0].mxu0
      %2179 = vmatprep.mubr.bf16.mxu0 0
      %2180 = vmatmul.mubr.bf16.gmra.mrb[0].mxu0 %v1878
      %v2181 = vpop.f32.mrb[0].mxu0
      %v2182 = vadd.f32 0.0, %v2181
      %v2183 = vpop.f32.mrb[0].mxu0
      %v2184 = vpop.f32.mrb[0].mxu0
      %v2185 = vadd.f32 0.0, %v2184
      %v2186 = vpop.f32.mrb[0].mxu0
      %2187 = vmatprep.mubr.bf16.mxu0 0
      %2188 = vmatmul.mubr.bf16.gmra.mrb[0].mxu0 %v1881
      %v2189 = vpop.f32.mrb[0].mxu0
      %v2190 = vadd.f32 0.0, %v2189
      %v2191 = vpop.f32.mrb[0].mxu0
      %v2192 = vpop.f32.mrb[0].mxu0
      %v2193 = vadd.f32 0.0, %v2192
      %v2194 = vpop.f32.mrb[0].mxu0
      %2195 = vmatprep.mubr.bf16.mxu0 0
      %2196 = vmatmul.mubr.bf16.gmra.mrb[0].mxu0 %v1884
      %v2197 = vpop.f32.mrb[0].mxu0
      %v2198 = vadd.f32 0.0, %v2197
      %v2199 = vpop.f32.mrb[0].mxu0
      %v2200 = vpop.f32.mrb[0].mxu0
      %v2201 = vadd.f32 0.0, %v2200
      %v2202 = vpop.f32.mrb[0].mxu0
      %2203 = vmatprep.mubr.bf16.mxu0 0
      %2204 = vmatmul.mubr.bf16.gmra.mrb[0].mxu0 %v1887
      %v2205 = vpop.f32.mrb[0].mxu0
      %v2206 = vadd.f32 0.0, %v2205
      %v2207 = vpop.f32.mrb[0].mxu0
      %v2208 = vpop.f32.mrb[0].mxu0
      %v2209 = vadd.f32 0.0, %v2208
      %v2210 = vpop.f32.mrb[0].mxu0
      %2211 = vmatprep.mubr.bf16.mxu0 0
      %2212 = vmatmul.mubr.bf16.gmra.mrb[0].mxu0 %v1890
      %v2213 = vpop.f32.mrb[0].mxu0
      %v2214 = vadd.f32 0.0, %v2213
      %v2215 = vpop.f32.mrb[0].mxu0
      %v2216 = vpop.f32.mrb[0].mxu0
      %v2217 = vadd.f32 0.0, %v2216
      %v2218 = vpop.f32.mrb[0].mxu0
      %2219 = vmatprep.mubr.bf16.mxu0 0
      %2220 = vmatmul.mubr.bf16.gmra.mrb[0].mxu0 %v1893
      %v2221 = vpop.f32.mrb[0].mxu0
      %v2222 = vadd.f32 0.0, %v2221
      %v2223 = vpop.f32.mrb[0].mxu0
      %v2224 = vpop.f32.mrb[0].mxu0
      %v2225 = vadd.f32 0.0, %v2224
      %v2226 = vpop.f32.mrb[0].mxu0
      %2227 = vmatprep.mubr.bf16.mxu0 0
      %2228 = vmatmul.mubr.bf16.gmra.mrb[0].mxu0 %v1896
      %v2229 = vpop.f32.mrb[0].mxu0
      %v2230 = vadd.f32 0.0, %v2229
      %v2231 = vpop.f32.mrb[0].mxu0
      %v2232 = vpop.f32.mrb[0].mxu0
      %v2233 = vadd.f32 0.0, %v2232
      %v2234 = vpop.f32.mrb[0].mxu0
      %2235 = vmatprep.mubr.bf16.mxu0 0
      %2236 = vmatmul.mubr.bf16.gmra.mrb[0].mxu0 %v1899
      %v2237 = vpop.f32.mrb[0].mxu0
      %v2238 = vadd.f32 0.0, %v2237
      %v2239 = vpop.f32.mrb[0].mxu0
      %v2240 = vpop.f32.mrb[0].mxu0
      %v2241 = vadd.f32 0.0, %v2240
      %v2242 = vpop.f32.mrb[0].mxu0
      %2243 = vmatprep.mubr.bf16.mxu0 0
      %2244 = vmatmul.mubr.bf16.gmra.mrb[0].mxu0 %v1902
      %v2245 = vpop.f32.mrb[0].mxu0
      %v2246 = vadd.f32 0.0, %v2245
      %v2247 = vpop.f32.mrb[0].mxu0
      %v2248 = vpop.f32.mrb[0].mxu0
      %v2249 = vadd.f32 0.0, %v2248
      %v2250 = vpop.f32.mrb[0].mxu0
      %2251 = vmatprep.mubr.bf16.mxu0 0
      %2252 = vmatmul.mubr.bf16.gmra.mrb[0].mxu0 %v1905
      %v2253 = vpop.f32.mrb[0].mxu0
      %v2254 = vadd.f32 0.0, %v2253
      %v2255 = vpop.f32.mrb[0].mxu0
      %v2256 = vpop.f32.mrb[0].mxu0
      %v2257 = vadd.f32 0.0, %v2256
      %v2258 = vpop.f32.mrb[0].mxu0
      %2259 = vmatprep.mubr.bf16.mxu0 0
      %2260 = vmatmul.mubr.bf16.gmra.mrb[0].mxu0 %v1908
      %v2261 = vpop.f32.mrb[0].mxu0
      %v2262 = vadd.f32 0.0, %v2261
      %v2263 = vpop.f32.mrb[0].mxu0
      %v2264 = vpop.f32.mrb[0].mxu0
      %v2265 = vadd.f32 0.0, %v2264
      %v2266 = vpop.f32.mrb[0].mxu0
      %2267 = vmatprep.mubr.bf16.mxu0 0
      %2268 = vmatmul.mubr.bf16.gmra.mrb[0].mxu0 %v1911
      %v2269 = vpop.f32.mrb[0].mxu0
      %v2270 = vadd.f32 0.0, %v2269
      %v2271 = vpop.f32.mrb[0].mxu0
      %v2272 = vpop.f32.mrb[0].mxu0
      %v2273 = vadd.f32 0.0, %v2272
      %v2274 = vpop.f32.mrb[0].mxu0
      %2275 = vmatprep.mubr.bf16.mxu0 0
      %2276 = vmatmul.mubr.bf16.gmra.mrb[0].mxu0 %v1914
      %v2277 = vpop.f32.mrb[0].mxu0
      %v2278 = vadd.f32 0.0, %v2277
      %v2279 = vpop.f32.mrb[0].mxu0
      %v2280 = vpop.f32.mrb[0].mxu0
      %v2281 = vadd.f32 0.0, %v2280
      %v2282 = vpop.f32.mrb[0].mxu0
      %2283 = vmatprep.mubr.bf16.mxu0 0
      %2284 = vmatmul.mubr.bf16.gmra.mrb[0].mxu0 %v1917
      %v2285 = vpop.f32.mrb[0].mxu0
      %v2286 = vadd.f32 0.0, %v2285
      %v2287 = vpop.f32.mrb[0].mxu0
      %v2288 = vpop.f32.mrb[0].mxu0
      %v2289 = vadd.f32 0.0, %v2288
      %v2290 = vpop.f32.mrb[0].mxu0
      %2291 = vmatprep.mubr.bf16.mxu0 0
      %2292 = vmatmul.mubr.bf16.gmra.mrb[0].mxu0 %v1920
      %v2293 = vpop.f32.mrb[0].mxu0
      %v2294 = vadd.f32 0.0, %v2293
      %v2295 = vpop.f32.mrb[0].mxu0
      %v2296 = vpop.f32.mrb[0].mxu0
      %v2297 = vadd.f32 0.0, %v2296
      %v2298 = vpop.f32.mrb[0].mxu0
      %2299 = vmatprep.mubr.bf16.mxu0 0
      %2300 = vmatmul.mubr.bf16.gmra.mrb[0].mxu0 %v1923
      %v2301 = vpop.f32.mrb[0].mxu0
      %v2302 = vadd.f32 0.0, %v2301
      %v2303 = vpop.f32.mrb[0].mxu0
      %v2304 = vpop.f32.mrb[0].mxu0
      %v2305 = vadd.f32 0.0, %v2304
      %v2306 = vpop.f32.mrb[0].mxu0
      %2307 = vmatprep.mubr.bf16.mxu0 0
      %2308 = vmatmul.mubr.bf16.gmra.mrb[0].mxu0 %v1926
      %v2309 = vpop.f32.mrb[0].mxu0
      %v2310 = vadd.f32 0.0, %v2309
      %v2311 = vpop.f32.mrb[0].mxu0
      %v2312 = vpop.f32.mrb[0].mxu0
      %v2313 = vadd.f32 0.0, %v2312
      %v2314 = vpop.f32.mrb[0].mxu0
      %2315 = vmatprep.mubr.bf16.mxu0 0
      %2316 = vmatmul.mubr.bf16.gmra.mrb[0].mxu0 %v1929
      %v2317 = vpop.f32.mrb[0].mxu0
      %v2318 = vadd.f32 0.0, %v2317
      %v2319 = vpop.f32.mrb[0].mxu0
      %v2320 = vpop.f32.mrb[0].mxu0
      %v2321 = vadd.f32 0.0, %v2320
      %v2322 = vpop.f32.mrb[0].mxu0
      %2323 = vmatprep.mubr.bf16.mxu0 0
      %2324 = vmatmul.mubr.bf16.gmra.mrb[0].mxu0 %v1932
      %v2325 = vpop.f32.mrb[0].mxu0
      %v2326 = vadd.f32 0.0, %v2325
      %v2327 = vpop.f32.mrb[0].mxu0
      %v2328 = vpop.f32.mrb[0].mxu0
      %v2329 = vadd.f32 0.0, %v2328
      %v2330 = vpop.f32.mrb[0].mxu0
      %2331 = vmatprep.mubr.bf16.mxu0 0
      %2332 = vmatmul.mubr.bf16.gmra.mrb[0].mxu0 %v1935
      %v2333 = vpop.f32.mrb[0].mxu0
      %v2334 = vadd.f32 0.0, %v2333
      %v2335 = vpop.f32.mrb[0].mxu0
      %v2336 = vpop.f32.mrb[0].mxu0
      %v2337 = vadd.f32 0.0, %v2336
      %v2338 = vpop.f32.mrb[0].mxu0
      %2339 = vmatprep.mubr.bf16.mxu0 0
      %2340 = vmatmul.mubr.bf16.gmra.mrb[0].mxu0 %v1938
      %v2341 = vpop.f32.mrb[0].mxu0
      %v2342 = vadd.f32 0.0, %v2341
      %v2343 = vpop.f32.mrb[0].mxu0
      %v2344 = vpop.f32.mrb[0].mxu0
      %v2345 = vadd.f32 0.0, %v2344
      %v2346 = vpop.f32.mrb[0].mxu0
      %2347 = vmatprep.mubr.bf16.mxu0 0
      %2348 = vmatmul.mubr.bf16.gmra.mrb[0].mxu0 %v1941
      %v2349 = vpop.f32.mrb[0].mxu0
      %v2350 = vadd.f32 0.0, %v2349
      %v2351 = vpop.f32.mrb[0].mxu0
      %v2352 = vpop.f32.mrb[0].mxu0
      %v2353 = vadd.f32 0.0, %v2352
      %v2354 = vpop.f32.mrb[0].mxu0
      %2355 = vmatprep.mubr.bf16.mxu0 0
      %2356 = vmatmul.mubr.bf16.gmra.mrb[0].mxu0 %v1944
      %v2357 = vpop.f32.mrb[0].mxu0
      %v2358 = vadd.f32 0.0, %v2357
      %v2359 = vpop.f32.mrb[0].mxu0
      %v2360 = vpop.f32.mrb[0].mxu0
      %v2361 = vadd.f32 0.0, %v2360
      %v2362 = vpop.f32.mrb[0].mxu0
      %2363 = vmatprep.mubr.bf16.mxu0 0
      %2364 = vmatmul.mubr.bf16.gmra.mrb[0].mxu0 %v1947
      %v2365 = vpop.f32.mrb[0].mxu0
      %v2366 = vadd.f32 0.0, %v2365
      %v2367 = vpop.f32.mrb[0].mxu0
      %v2368 = vpop.f32.mrb[0].mxu0
      %v2369 = vadd.f32 0.0, %v2368
      %v2370 = vpop.f32.mrb[0].mxu0
      %2371 = vmatprep.mubr.bf16.mxu0 0
      %2372 = vmatmul.mubr.bf16.gmra.mrb[0].mxu0 %v1950
      %v2373 = vpop.f32.mrb[0].mxu0
      %v2374 = vadd.f32 0.0, %v2373
      %v2375 = vpop.f32.mrb[0].mxu0
      %v2376 = vpop.f32.mrb[0].mxu0
      %v2377 = vadd.f32 0.0, %v2376
      %v2378 = vpop.f32.mrb[0].mxu0
      %2379 = vmatprep.mubr.bf16.mxu0 0
      %2380 = vmatmul.mubr.bf16.gmra.mrb[0].mxu0 %v1953
      %v2381 = vpop.f32.mrb[0].mxu0
      %v2382 = vadd.f32 0.0, %v2381
      %v2383 = vpop.f32.mrb[0].mxu0
      %v2384 = vpop.f32.mrb[0].mxu0
      %v2385 = vadd.f32 0.0, %v2384
      %v2386 = vpop.f32.mrb[0].mxu0
      %2387 = vmatprep.mubr.bf16.mxu0 0
      %2388 = vmatmul.mubr.bf16.gmra.mrb[0].mxu0 %v1956
      %v2389 = vpop.f32.mrb[0].mxu0
      %v2390 = vadd.f32 0.0, %v2389
      %v2391 = vpop.f32.mrb[0].mxu0
      %v2392 = vpop.f32.mrb[0].mxu0
      %v2393 = vadd.f32 0.0, %v2392
      %v2394 = vpop.f32.mrb[0].mxu0
      %2395 = vmatprep.mubr.bf16.mxu0 0
      %2396 = vmatmul.mubr.bf16.gmra.mrb[0].mxu0 %v1959
      %v2397 = vpop.f32.mrb[0].mxu0
      %v2398 = vadd.f32 0.0, %v2397
      %v2399 = vpop.f32.mrb[0].mxu0
      %v2400 = vpop.f32.mrb[0].mxu0
      %v2401 = vadd.f32 0.0, %v2400
      %v2402 = vpop.f32.mrb[0].mxu0
      %2403 = vmatprep.mubr.bf16.mxu0 0
      %2404 = vmatmul.mubr.bf16.gmra.mrb[0].mxu0 %v1962
      %v2405 = vpop.f32.mrb[0].mxu0
      %v2406 = vadd.f32 0.0, %v2405
      %v2407 = vpop.f32.mrb[0].mxu0
      %v2408 = vpop.f32.mrb[0].mxu0
      %v2409 = vadd.f32 0.0, %v2408
      %v2410 = vpop.f32.mrb[0].mxu0
      %2411 = vmatprep.mubr.bf16.mxu0 0
      %2412 = vmatmul.mubr.bf16.gmra.mrb[0].mxu0 %v1965
      %v2413 = vpop.f32.mrb[0].mxu0
      %v2414 = vadd.f32 0.0, %v2413
      %v2415 = vpop.f32.mrb[0].mxu0
      %v2416 = vpop.f32.mrb[0].mxu0
      %v2417 = vadd.f32 0.0, %v2416
      %v2418 = vpop.f32.mrb[0].mxu0
      %2419 = vmatprep.mubr.bf16.mxu0 0
      %2420 = vmatmul.mubr.bf16.gmra.mrb[0].mxu0 %v1968
      %v2421 = vpop.f32.mrb[0].mxu0
      %v2422 = vadd.f32 0.0, %v2421
      %v2423 = vpop.f32.mrb[0].mxu0
      %v2424 = vpop.f32.mrb[0].mxu0
      %v2425 = vadd.f32 0.0, %v2424
      %v2426 = vpop.f32.mrb[0].mxu0
      %2427 = vmatprep.mubr.bf16.mxu0 0
      %2428 = vmatmul.mubr.bf16.gmra.mrb[0].mxu0 %v1971
      %v2429 = vpop.f32.mrb[0].mxu0
      %v2430 = vadd.f32 0.0, %v2429
      %v2431 = vpop.f32.mrb[0].mxu0
      %v2432 = vpop.f32.mrb[0].mxu0
      %v2433 = vadd.f32 0.0, %v2432
      %v2434 = vpop.f32.mrb[0].mxu0
      %2435 = vmatprep.mubr.bf16.mxu0 0
      %2436 = vmatmul.mubr.bf16.gmra.mrb[0].mxu0 %v1974
      %v2437 = vpop.f32.mrb[0].mxu0
      %v2438 = vadd.f32 0.0, %v2437
      %v2439 = vpop.f32.mrb[0].mxu0
      %v2440 = vpop.f32.mrb[0].mxu0
      %v2441 = vadd.f32 0.0, %v2440
      %v2442 = vpop.f32.mrb[0].mxu0
      %2443 = vmatprep.mubr.bf16.mxu0 0
      %2444 = vmatmul.mubr.bf16.gmra.mrb[0].mxu0 %v1977
      %v2445 = vpop.f32.mrb[0].mxu0
      %v2446 = vadd.f32 0.0, %v2445
      %v2447 = vpop.f32.mrb[0].mxu0
      %v2448 = vpop.f32.mrb[0].mxu0
      %v2449 = vadd.f32 0.0, %v2448
      %v2450 = vpop.f32.mrb[0].mxu0
      %2451 = vmatprep.mubr.bf16.mxu0 0
      %2452 = vmatmul.mubr.bf16.gmra.mrb[0].mxu0 %v1980
      %v2453 = vpop.f32.mrb[0].mxu0
      %v2454 = vadd.f32 0.0, %v2453
      %v2455 = vpop.f32.mrb[0].mxu0
      %v2456 = vpop.f32.mrb[0].mxu0
      %v2457 = vadd.f32 0.0, %v2456
      %v2458 = vpop.f32.mrb[0].mxu0
      %2459 = vmatprep.mubr.bf16.mxu0 0
      %2460 = vmatmul.mubr.bf16.gmra.mrb[0].mxu0 %v1983
      %v2461 = vpop.f32.mrb[0].mxu0
      %v2462 = vadd.f32 0.0, %v2461
      %v2463 = vpop.f32.mrb[0].mxu0
      %v2464 = vpop.f32.mrb[0].mxu0
      %v2465 = vadd.f32 0.0, %v2464
      %v2466 = vpop.f32.mrb[0].mxu0
      %2467 = vmatprep.mubr.bf16.mxu0 0
      %2468 = vmatmul.mubr.bf16.gmra.mrb[0].mxu0 %v1986
      %v2469 = vpop.f32.mrb[0].mxu0
      %v2470 = vadd.f32 0.0, %v2469
      %v2471 = vpop.f32.mrb[0].mxu0
      %v2472 = vpop.f32.mrb[0].mxu0
      %v2473 = vadd.f32 0.0, %v2472
      %v2474 = vpop.f32.mrb[0].mxu0
      %2475 = vmatprep.mubr.bf16.mxu0 0
      %2476 = vmatmul.mubr.bf16.gmra.mrb[0].mxu0 %v1989
      %v2477 = vpop.f32.mrb[0].mxu0
      %v2478 = vadd.f32 0.0, %v2477
      %v2479 = vpop.f32.mrb[0].mxu0
      %v2480 = vpop.f32.mrb[0].mxu0
      %v2481 = vadd.f32 0.0, %v2480
      %v2482 = vpop.f32.mrb[0].mxu0
      %2483 = vmatprep.mubr.bf16.mxu0 0
      %2484 = vmatmul.mubr.bf16.gmra.mrb[0].mxu0 %v1992
      %v2485 = vpop.f32.mrb[0].mxu0
      %v2486 = vadd.f32 0.0, %v2485
      %v2487 = vpop.f32.mrb[0].mxu0
      %v2488 = vpop.f32.mrb[0].mxu0
      %v2489 = vadd.f32 0.0, %v2488
      %v2490 = vpop.f32.mrb[0].mxu0
      %2491 = vmatprep.mubr.bf16.mxu0 0
      %2492 = vmatmul.mubr.bf16.gmra.mrb[0].mxu0 %v1995
      %v2493 = vpop.f32.mrb[0].mxu0
      %v2494 = vadd.f32 0.0, %v2493
      %v2495 = vpop.f32.mrb[0].mxu0
      %v2496 = vpop.f32.mrb[0].mxu0
      %v2497 = vadd.f32 0.0, %v2496
      %v2498 = vpop.f32.mrb[0].mxu0
      %2499 = vmatprep.mubr.bf16.mxu0 0
      %2500 = vmatmul.mubr.bf16.gmra.mrb[0].mxu0 %v1998
      %v2501 = vpop.f32.mrb[0].mxu0
      %v2502 = vadd.f32 0.0, %v2501
      %v2503 = vpop.f32.mrb[0].mxu0
      %v2504 = vpop.f32.mrb[0].mxu0
      %v2505 = vadd.f32 0.0, %v2504
      %v2506 = vpop.f32.mrb[0].mxu0
      %2507 = vmatprep.mubr.bf16.mxu0 0
      %2508 = vmatmul.mubr.bf16.gmra.mrb[0].mxu0 %v2001
      %v2509 = vpop.f32.mrb[0].mxu0
      %v2510 = vadd.f32 0.0, %v2509
      %v2511 = vpop.f32.mrb[0].mxu0
      %v2512 = vpop.f32.mrb[0].mxu0
      %v2513 = vadd.f32 0.0, %v2512
      %v2514 = vpop.f32.mrb[0].mxu0
      %2515 = vmatprep.mubr.bf16.mxu0 0
      %2516 = vmatmul.mubr.bf16.gmra.mrb[0].mxu0 %v2004
      %v2517 = vpop.f32.mrb[0].mxu0
      %v2518 = vadd.f32 0.0, %v2517
      %v2519 = vpop.f32.mrb[0].mxu0
      %v2520 = vpop.f32.mrb[0].mxu0
      %v2521 = vadd.f32 0.0, %v2520
      %v2522 = vpop.f32.mrb[0].mxu0
      %2523 = vmatprep.mubr.bf16.mxu0 0
      %2524 = vmatmul.mubr.bf16.gmra.mrb[0].mxu0 %v2007
      %v2525 = vpop.f32.mrb[0].mxu0
      %v2526 = vadd.f32 0.0, %v2525
      %v2527 = vpop.f32.mrb[0].mxu0
      %v2528 = vpop.f32.mrb[0].mxu0
      %v2529 = vadd.f32 0.0, %v2528
      %v2530 = vpop.f32.mrb[0].mxu0
      %2531 = vmatprep.mubr.bf16.mxu0 0
      %2532 = vmatmul.mubr.bf16.gmra.mrb[0].mxu0 %v2010
      %v2533 = vpop.f32.mrb[0].mxu0
      %v2534 = vadd.f32 0.0, %v2533
      %v2535 = vpop.f32.mrb[0].mxu0
      %v2536 = vpop.f32.mrb[0].mxu0
      %v2537 = vadd.f32 0.0, %v2536
      %v2538 = vpop.f32.mrb[0].mxu0
      %2539 = vmatprep.mubr.bf16.mxu0 0
      %2540 = vmatmul.mubr.bf16.gmra.mrb[0].mxu0 %v2013
      %v2541 = vpop.f32.mrb[0].mxu0
      %v2542 = vadd.f32 0.0, %v2541
      %v2543 = vpop.f32.mrb[0].mxu0
      %v2544 = vpop.f32.mrb[0].mxu0
      %v2545 = vadd.f32 0.0, %v2544
      %v2546 = vpop.f32.mrb[0].mxu0
      %2547 = vmatprep.mubr.bf16.mxu0 0
      %2548 = vmatmul.mubr.bf16.gmra.mrb[0].mxu0 %v2016
      %v2549 = vpop.f32.mrb[0].mxu0
      %v2550 = vadd.f32 0.0, %v2549
      %v2551 = vpop.f32.mrb[0].mxu0
      %v2552 = vpop.f32.mrb[0].mxu0
      %v2553 = vadd.f32 0.0, %v2552
      %v2554 = vpop.f32.mrb[0].mxu0
      %2555 = vmatprep.mubr.bf16.mxu0 0
      %2556 = vmatmul.mubr.bf16.gmra.mrb[0].mxu0 %v2019
      %v2557 = vpop.f32.mrb[0].mxu0
      %v2558 = vadd.f32 0.0, %v2557
      %v2559 = vpop.f32.mrb[0].mxu0
      %v2560 = vpop.f32.mrb[0].mxu0
      %v2561 = vadd.f32 0.0, %v2560
      %v2562 = vpop.f32.mrb[0].mxu0
      %2563 = vmatprep.mubr.bf16.mxu0 0
      %2564 = vmatmul.mubr.bf16.gmra.mrb[0].mxu0 %v2022
      %v2565 = vpop.f32.mrb[0].mxu0
      %v2566 = vadd.f32 0.0, %v2565
      %v2567 = vpop.f32.mrb[0].mxu0
      %v2568 = vpop.f32.mrb[0].mxu0
      %v2569 = vadd.f32 0.0, %v2568
      %v2570 = vpop.f32.mrb[0].mxu0
      %2571 = vdwg.mxu0
      %v2572 = vadd.f32 %v866, %v2062
      %v2573 = vadd.f32 %v869, %v2065
      %v2574 = vadd.f32 %v874, %v2070
      %v2575 = vadd.f32 %v877, %v2073
      %v2576 = vadd.f32 %v882, %v2078
      %v2577 = vadd.f32 %v885, %v2081
      %v2578 = vadd.f32 %v890, %v2086
      %v2579 = vadd.f32 %v893, %v2089
      %v2580 = vadd.f32 %v898, %v2094
      %v2581 = vadd.f32 %v901, %v2097
      %v2582 = vadd.f32 %v906, %v2102
      %v2583 = vadd.f32 %v909, %v2105
      %v2584 = vadd.f32 %v914, %v2110
      %v2585 = vadd.f32 %v917, %v2113
      %v2586 = vadd.f32 %v922, %v2118
      %v2587 = vadd.f32 %v925, %v2121
      %v2588 = vadd.f32 %v930, %v2126
      %v2589 = vadd.f32 %v933, %v2129
      %v2590 = vadd.f32 %v938, %v2134
      %v2591 = vadd.f32 %v941, %v2137
      %v2592 = vadd.f32 %v946, %v2142
      %v2593 = vadd.f32 %v949, %v2145
      %v2594 = vadd.f32 %v954, %v2150
      %v2595 = vadd.f32 %v957, %v2153
      %v2596 = vadd.f32 %v962, %v2158
      %v2597 = vadd.f32 %v965, %v2161
      %v2598 = vadd.f32 %v970, %v2166
      %v2599 = vadd.f32 %v973, %v2169
      %v2600 = vadd.f32 %v978, %v2174
      %v2601 = vadd.f32 %v981, %v2177
      %v2602 = vadd.f32 %v986, %v2182
      %v2603 = vadd.f32 %v989, %v2185
      %v2604 = vadd.f32 %v994, %v2190
      %v2605 = vadd.f32 %v997, %v2193
      %v2606 = vadd.f32 %v1002, %v2198
      %v2607 = vadd.f32 %v1005, %v2201
      %v2608 = vadd.f32 %v1010, %v2206
      %v2609 = vadd.f32 %v1013, %v2209
      %v2610 = vadd.f32 %v1018, %v2214
      %v2611 = vadd.f32 %v1021, %v2217
      %v2612 = vadd.f32 %v1026, %v2222
      %v2613 = vadd.f32 %v1029, %v2225
      %v2614 = vadd.f32 %v1034, %v2230
      %v2615 = vadd.f32 %v1037, %v2233
      %v2616 = vadd.f32 %v1042, %v2238
      %v2617 = vadd.f32 %v1045, %v2241
      %v2618 = vadd.f32 %v1050, %v2246
      %v2619 = vadd.f32 %v1053, %v2249
      %v2620 = vadd.f32 %v1058, %v2254
      %v2621 = vadd.f32 %v1061, %v2257
      %v2622 = vadd.f32 %v1066, %v2262
      %v2623 = vadd.f32 %v1069, %v2265
      %v2624 = vadd.f32 %v1074, %v2270
      %v2625 = vadd.f32 %v1077, %v2273
      %v2626 = vadd.f32 %v1082, %v2278
      %v2627 = vadd.f32 %v1085, %v2281
      %v2628 = vadd.f32 %v1090, %v2286
      %v2629 = vadd.f32 %v1093, %v2289
      %v2630 = vadd.f32 %v1098, %v2294
      %v2631 = vadd.f32 %v1101, %v2297
      %v2632 = vadd.f32 %v1106, %v2302
      %v2633 = vadd.f32 %v1109, %v2305
      %v2634 = vadd.f32 %v1114, %v2310
      %v2635 = vadd.f32 %v1117, %v2313
      %v2636 = vadd.f32 %v1122, %v2318
      %v2637 = vadd.f32 %v1125, %v2321
      %v2638 = vadd.f32 %v1130, %v2326
      %v2639 = vadd.f32 %v1133, %v2329
      %v2640 = vadd.f32 %v1138, %v2334
      %v2641 = vadd.f32 %v1141, %v2337
      %v2642 = vadd.f32 %v1146, %v2342
      %v2643 = vadd.f32 %v1149, %v2345
      %v2644 = vadd.f32 %v1154, %v2350
      %v2645 = vadd.f32 %v1157, %v2353
      %v2646 = vadd.f32 %v1162, %v2358
      %v2647 = vadd.f32 %v1165, %v2361
      %v2648 = vadd.f32 %v1170, %v2366
      %v2649 = vadd.f32 %v1173, %v2369
      %v2650 = vadd.f32 %v1178, %v2374
      %v2651 = vadd.f32 %v1181, %v2377
      %v2652 = vadd.f32 %v1186, %v2382
      %v2653 = vadd.f32 %v1189, %v2385
      %v2654 = vadd.f32 %v1194, %v2390
      %v2655 = vadd.f32 %v1197, %v2393
      %v2656 = vadd.f32 %v1202, %v2398
      %v2657 = vadd.f32 %v1205, %v2401
      %v2658 = vadd.f32 %v1210, %v2406
      %v2659 = vadd.f32 %v1213, %v2409
      %v2660 = vadd.f32 %v1218, %v2414
      %v2661 = vadd.f32 %v1221, %v2417
      %v2662 = vadd.f32 %v1226, %v2422
      %v2663 = vadd.f32 %v1229, %v2425
      %v2664 = vadd.f32 %v1234, %v2430
      %v2665 = vadd.f32 %v1237, %v2433
      %v2666 = vadd.f32 %v1242, %v2438
      %v2667 = vadd.f32 %v1245, %v2441
      %v2668 = vadd.f32 %v1250, %v2446
      %v2669 = vadd.f32 %v1253, %v2449
      %v2670 = vadd.f32 %v1258, %v2454
      %v2671 = vadd.f32 %v1261, %v2457
      %v2672 = vadd.f32 %v1266, %v2462
      %v2673 = vadd.f32 %v1269, %v2465
      %v2674 = vadd.f32 %v1274, %v2470
      %v2675 = vadd.f32 %v1277, %v2473
      %v2676 = vadd.f32 %v1282, %v2478
      %v2677 = vadd.f32 %v1285, %v2481
      %v2678 = vadd.f32 %v1290, %v2486
      %v2679 = vadd.f32 %v1293, %v2489
      %v2680 = vadd.f32 %v1298, %v2494
      %v2681 = vadd.f32 %v1301, %v2497
      %v2682 = vadd.f32 %v1306, %v2502
      %v2683 = vadd.f32 %v1309, %v2505
      %v2684 = vadd.f32 %v1314, %v2510
      %v2685 = vadd.f32 %v1317, %v2513
      %v2686 = vadd.f32 %v1322, %v2518
      %v2687 = vadd.f32 %v1325, %v2521
      %v2688 = vadd.f32 %v1330, %v2526
      %v2689 = vadd.f32 %v1333, %v2529
      %v2690 = vadd.f32 %v1338, %v2534
      %v2691 = vadd.f32 %v1341, %v2537
      %v2692 = vadd.f32 %v1346, %v2542
      %v2693 = vadd.f32 %v1349, %v2545
      %v2694 = vadd.f32 %v1354, %v2550
      %v2695 = vadd.f32 %v1357, %v2553
      %v2696 = vadd.f32 %v1362, %v2558
      %v2697 = vadd.f32 %v1365, %v2561
      %v2698 = vadd.f32 %v1370, %v2566
      %v2699 = vadd.f32 %v1373, %v2569
      %v2700 = vld [vmem:[%s165 + $0x20] sm:$0xf]
      %v2701 = vld [vmem:[%s165 + $0x24] sm:$0xf]
      %v2702 = vld [vmem:[%s165 + $0x28] sm:$0xf]
      %v2703 = vld [vmem:[%s165 + $0x2c] sm:$0xf]
      %v2704 = vld [vmem:[%s165 + $0x30] sm:$0xf]
      %v2705 = vld [vmem:[%s165 + $0x34] sm:$0xf]
      %v2706 = vld [vmem:[%s165 + $0x38] sm:$0xf]
      %v2707 = vld [vmem:[%s165 + $0x3c] sm:$0xf]
      %v2708 = vld [vmem:[%s165 + $0x40] sm:$0xf]
      %v2709 = vld [vmem:[%s165 + $0x44] sm:$0xf]
      %v2710 = vld [vmem:[%s165 + $0x48] sm:$0xf]
      %v2711 = vld [vmem:[%s165 + $0x4c] sm:$0xf]
      %v2712 = vld [vmem:[%s165 + $0x50] sm:$0xf]
      %v2713 = vld [vmem:[%s165 + $0x54] sm:$0xf]
      %v2714 = vld [vmem:[%s165 + $0x58] sm:$0xf]
      %v2715 = vld [vmem:[%s165 + $0x5c] sm:$0xf]
      %v2716 = vld [vmem:[%s165 + $0x60] sm:$0xf]
      %v2717 = vld [vmem:[%s165 + $0x64] sm:$0xf]
      %v2718 = vld [vmem:[%s165 + $0x68] sm:$0xf]
      %v2719 = vld [vmem:[%s165 + $0x6c] sm:$0xf]
      %v2720 = vld [vmem:[%s165 + $0x70] sm:$0xf]
      %v2721 = vld [vmem:[%s165 + $0x74] sm:$0xf]
      %v2722 = vld [vmem:[%s165 + $0x78] sm:$0xf]
      %v2723 = vld [vmem:[%s165 + $0x7c] sm:$0xf]
      %v2724 = vld [vmem:[%s165 + $0x80] sm:$0xf]
      %v2725 = vld [vmem:[%s165 + $0x84] sm:$0xf]
      %v2726 = vld [vmem:[%s165 + $0x88] sm:$0xf]
      %v2727 = vld [vmem:[%s165 + $0x8c] sm:$0xf]
      %v2728 = vld [vmem:[%s165 + $0x90] sm:$0xf]
      %v2729 = vld [vmem:[%s165 + $0x94] sm:$0xf]
      %v2730 = vld [vmem:[%s165 + $0x98] sm:$0xf]
      %v2731 = vld [vmem:[%s165 + $0x9c] sm:$0xf]
      %v2732 = vld [vmem:[%s165 + $0xa0] sm:$0xf]
      %v2733 = vld [vmem:[%s165 + $0xa4] sm:$0xf]
      %v2734 = vld [vmem:[%s165 + $0xa8] sm:$0xf]
      %v2735 = vld [vmem:[%s165 + $0xac] sm:$0xf]
      %v2736 = vld [vmem:[%s165 + $0xb0] sm:$0xf]
      %v2737 = vld [vmem:[%s165 + $0xb4] sm:$0xf]
      %v2738 = vld [vmem:[%s165 + $0xb8] sm:$0xf]
      %v2739 = vld [vmem:[%s165 + $0xbc] sm:$0xf]
      %v2740 = vld [vmem:[%s165 + $0xc0] sm:$0xf]
      %v2741 = vld [vmem:[%s165 + $0xc4] sm:$0xf]
      %v2742 = vld [vmem:[%s165 + $0xc8] sm:$0xf]
      %v2743 = vld [vmem:[%s165 + $0xcc] sm:$0xf]
      %v2744 = vld [vmem:[%s165 + $0xd0] sm:$0xf]
      %v2745 = vld [vmem:[%s165 + $0xd4] sm:$0xf]
      %v2746 = vld [vmem:[%s165 + $0xd8] sm:$0xf]
      %v2747 = vld [vmem:[%s165 + $0xdc] sm:$0xf]
      %v2748 = vld [vmem:[%s165 + $0xe0] sm:$0xf]
      %v2749 = vld [vmem:[%s165 + $0xe4] sm:$0xf]
      %v2750 = vld [vmem:[%s165 + $0xe8] sm:$0xf]
      %v2751 = vld [vmem:[%s165 + $0xec] sm:$0xf]
      %v2752 = vld [vmem:[%s165 + $0xf0] sm:$0xf]
      %v2753 = vld [vmem:[%s165 + $0xf4] sm:$0xf]
      %v2754 = vld [vmem:[%s165 + $0xf8] sm:$0xf]
      %v2755 = vld [vmem:[%s165 + $0xfc] sm:$0xf]
      %v2756 = vld [vmem:[%s165 + $0x100] sm:$0xf]
      %v2757 = vld [vmem:[%s165 + $0x104] sm:$0xf]
      %v2758 = vld [vmem:[%s165 + $0x108] sm:$0xf]
      %v2759 = vld [vmem:[%s165 + $0x10c] sm:$0xf]
      %v2760 = vld [vmem:[%s165 + $0x110] sm:$0xf]
      %v2761 = vld [vmem:[%s165 + $0x114] sm:$0xf]
      %v2762 = vld [vmem:[%s165 + $0x118] sm:$0xf]
      %v2763 = vld [vmem:[%s165 + $0x11c] sm:$0xf]
      %v2764 = vld [vmem:[%s165 + $0x120] sm:$0xf]
      %v2765 = vld [vmem:[%s165 + $0x124] sm:$0xf]
      %v2766 = vld [vmem:[%s165 + $0x128] sm:$0xf]
      %v2767 = vld [vmem:[%s165 + $0x12c] sm:$0xf]
      %v2768 = vld [vmem:[%s165 + $0x130] sm:$0xf]
      %v2769 = vld [vmem:[%s165 + $0x134] sm:$0xf]
      %v2770 = vld [vmem:[%s165 + $0x138] sm:$0xf]
      %v2771 = vld [vmem:[%s165 + $0x13c] sm:$0xf]
      %v2772 = vld [vmem:[%s165 + $0x140] sm:$0xf]
      %v2773 = vld [vmem:[%s165 + $0x144] sm:$0xf]
      %v2774 = vld [vmem:[%s165 + $0x148] sm:$0xf]
      %v2775 = vld [vmem:[%s165 + $0x14c] sm:$0xf]
      %v2776 = vld [vmem:[%s165 + $0x150] sm:$0xf]
      %v2777 = vld [vmem:[%s165 + $0x154] sm:$0xf]
      %v2778 = vld [vmem:[%s165 + $0x158] sm:$0xf]
      %v2779 = vld [vmem:[%s165 + $0x15c] sm:$0xf]
      %v2780 = vld [vmem:[%s165 + $0x160] sm:$0xf]
      %v2781 = vld [vmem:[%s165 + $0x164] sm:$0xf]
      %v2782 = vld [vmem:[%s165 + $0x168] sm:$0xf]
      %v2783 = vld [vmem:[%s165 + $0x16c] sm:$0xf]
      %v2784 = vld [vmem:[%s165 + $0x170] sm:$0xf]
      %v2785 = vld [vmem:[%s165 + $0x174] sm:$0xf]
      %v2786 = vld [vmem:[%s165 + $0x178] sm:$0xf]
      %v2787 = vld [vmem:[%s165 + $0x17c] sm:$0xf]
      %v2788 = vld [vmem:[%s165 + $0x180] sm:$0xf]
      %v2789 = vld [vmem:[%s165 + $0x184] sm:$0xf]
      %v2790 = vld [vmem:[%s165 + $0x188] sm:$0xf]
      %v2791 = vld [vmem:[%s165 + $0x18c] sm:$0xf]
      %v2792 = vld [vmem:[%s165 + $0x190] sm:$0xf]
      %v2793 = vld [vmem:[%s165 + $0x194] sm:$0xf]
      %v2794 = vld [vmem:[%s165 + $0x198] sm:$0xf]
      %v2795 = vld [vmem:[%s165 + $0x19c] sm:$0xf]
      %v2796 = vld [vmem:[%s165 + $0x1a0] sm:$0xf]
      %v2797 = vld [vmem:[%s165 + $0x1a4] sm:$0xf]
      %v2798 = vld [vmem:[%s165 + $0x1a8] sm:$0xf]
      %v2799 = vld [vmem:[%s165 + $0x1ac] sm:$0xf]
      %v2800 = vld [vmem:[%s165 + $0x1b0] sm:$0xf]
      %v2801 = vld [vmem:[%s165 + $0x1b4] sm:$0xf]
      %v2802 = vld [vmem:[%s165 + $0x1b8] sm:$0xf]
      %v2803 = vld [vmem:[%s165 + $0x1bc] sm:$0xf]
      %v2804 = vld [vmem:[%s165 + $0x1c0] sm:$0xf]
      %v2805 = vld [vmem:[%s165 + $0x1c4] sm:$0xf]
      %v2806 = vld [vmem:[%s165 + $0x1c8] sm:$0xf]
      %v2807 = vld [vmem:[%s165 + $0x1cc] sm:$0xf]
      %v2808 = vld [vmem:[%s165 + $0x1d0] sm:$0xf]
      %v2809 = vld [vmem:[%s165 + $0x1d4] sm:$0xf]
      %v2810 = vld [vmem:[%s165 + $0x1d8] sm:$0xf]
      %v2811 = vld [vmem:[%s165 + $0x1dc] sm:$0xf]
      %v2812 = vld [vmem:[%s165 + $0x1e0] sm:$0xf]
      %v2813 = vld [vmem:[%s165 + $0x1e4] sm:$0xf]
      %v2814 = vld [vmem:[%s165 + $0x1e8] sm:$0xf]
      %v2815 = vld [vmem:[%s165 + $0x1ec] sm:$0xf]
      %v2816 = vld [vmem:[%s165 + $0x1f0] sm:$0xf]
      %v2817 = vld [vmem:[%s165 + $0x1f4] sm:$0xf]
      %v2818 = vld [vmem:[%s165 + $0x1f8] sm:$0xf]
      %v2819 = vld [vmem:[%s165 + $0x1fc] sm:$0xf]
      %v2820 = vld [vmem:[%s165 + $0x200] sm:$0xf]
      %v2821 = vld [vmem:[%s165 + $0x204] sm:$0xf]
      %v2822 = vld [vmem:[%s165 + $0x208] sm:$0xf]
      %v2823 = vld [vmem:[%s165 + $0x20c] sm:$0xf]
      %v2824 = vld [vmem:[%s165 + $0x210] sm:$0xf]
      %v2825 = vld [vmem:[%s165 + $0x214] sm:$0xf]
      %v2826 = vld [vmem:[%s165 + $0x218] sm:$0xf]
      %v2827 = vld [vmem:[%s165 + $0x21c] sm:$0xf]
      %s2828 = scalar_lea.vmem %s1, 16
      %v2829 = vld [vmem:[%s2828] sm:$0xf]
      %v2830 = vld [vmem:[%s2828 + $0x4] sm:$0x3]
      %v2959 = vunpack.c.l.b16 %v2700
      %v2960 = vunpack.c.l.b16 %v2701
      %v2961 = vunpack.c.l.b16 %v2702
      %v2962 = vunpack.c.l.b16 %v2703
      %v2963 = vunpack.c.l.b16 %v2704
      %v2964 = vunpack.c.l.b16 %v2705
      %v2965 = vunpack.c.l.b16 %v2706
      %v2966 = vunpack.c.l.b16 %v2707
      %v2967 = vunpack.c.l.b16 %v2708
      %v2968 = vunpack.c.l.b16 %v2709
      %v2969 = vunpack.c.l.b16 %v2710
      %v2970 = vunpack.c.l.b16 %v2711
      %v2971 = vunpack.c.l.b16 %v2712
      %v2972 = vunpack.c.l.b16 %v2713
      %v2973 = vunpack.c.l.b16 %v2714
      %v2974 = vunpack.c.l.b16 %v2715
      %v2975 = vunpack.c.l.b16 %v2716
      %v2976 = vunpack.c.l.b16 %v2717
      %v2977 = vunpack.c.l.b16 %v2718
      %v2978 = vunpack.c.l.b16 %v2719
      %v2979 = vunpack.c.l.b16 %v2720
      %v2980 = vunpack.c.l.b16 %v2721
      %v2981 = vunpack.c.l.b16 %v2722
      %v2982 = vunpack.c.l.b16 %v2723
      %v2983 = vunpack.c.l.b16 %v2724
      %v2984 = vunpack.c.l.b16 %v2725
      %v2985 = vunpack.c.l.b16 %v2726
      %v2986 = vunpack.c.l.b16 %v2727
      %v2987 = vunpack.c.l.b16 %v2728
      %v2988 = vunpack.c.l.b16 %v2729
      %v2989 = vunpack.c.l.b16 %v2730
      %v2990 = vunpack.c.l.b16 %v2731
      %v2991 = vunpack.c.l.b16 %v2732
      %v2992 = vunpack.c.l.b16 %v2733
      %v2993 = vunpack.c.l.b16 %v2734
      %v2994 = vunpack.c.l.b16 %v2735
      %v2995 = vunpack.c.l.b16 %v2736
      %v2996 = vunpack.c.l.b16 %v2737
      %v2997 = vunpack.c.l.b16 %v2738
      %v2998 = vunpack.c.l.b16 %v2739
      %v2999 = vunpack.c.l.b16 %v2740
      %v3000 = vunpack.c.l.b16 %v2741
      %v3001 = vunpack.c.l.b16 %v2742
      %v3002 = vunpack.c.l.b16 %v2743
      %v3003 = vunpack.c.l.b16 %v2744
      %v3004 = vunpack.c.l.b16 %v2745
      %v3005 = vunpack.c.l.b16 %v2746
      %v3006 = vunpack.c.l.b16 %v2747
      %v3007 = vunpack.c.l.b16 %v2748
      %v3008 = vunpack.c.l.b16 %v2749
      %v3009 = vunpack.c.l.b16 %v2750
      %v3010 = vunpack.c.l.b16 %v2751
      %v3011 = vunpack.c.l.b16 %v2752
      %v3012 = vunpack.c.l.b16 %v2753
      %v3013 = vunpack.c.l.b16 %v2754
      %v3014 = vunpack.c.l.b16 %v2755
      %v3015 = vunpack.c.l.b16 %v2756
      %v3016 = vunpack.c.l.b16 %v2757
      %v3017 = vunpack.c.l.b16 %v2758
      %v3018 = vunpack.c.l.b16 %v2759
      %v3019 = vunpack.c.l.b16 %v2760
      %v3020 = vunpack.c.l.b16 %v2761
      %v3021 = vunpack.c.l.b16 %v2762
      %v3022 = vunpack.c.l.b16 %v2763
      %v3023 = vunpack.c.l.b16 %v2764
      %v3024 = vunpack.c.l.b16 %v2765
      %v3025 = vunpack.c.l.b16 %v2766
      %v3026 = vunpack.c.l.b16 %v2767
      %v3027 = vunpack.c.l.b16 %v2768
      %v3028 = vunpack.c.l.b16 %v2769
      %v3029 = vunpack.c.l.b16 %v2770
      %v3030 = vunpack.c.l.b16 %v2771
      %v3031 = vunpack.c.l.b16 %v2772
      %v3032 = vunpack.c.l.b16 %v2773
      %v3033 = vunpack.c.l.b16 %v2774
      %v3034 = vunpack.c.l.b16 %v2775
      %v3035 = vunpack.c.l.b16 %v2776
      %v3036 = vunpack.c.l.b16 %v2777
      %v3037 = vunpack.c.l.b16 %v2778
      %v3038 = vunpack.c.l.b16 %v2779
      %v3039 = vunpack.c.l.b16 %v2780
      %v3040 = vunpack.c.l.b16 %v2781
      %v3041 = vunpack.c.l.b16 %v2782
      %v3042 = vunpack.c.l.b16 %v2783
      %v3043 = vunpack.c.l.b16 %v2784
      %v3044 = vunpack.c.l.b16 %v2785
      %v3045 = vunpack.c.l.b16 %v2786
      %v3046 = vunpack.c.l.b16 %v2787
      %v3047 = vunpack.c.l.b16 %v2788
      %v3048 = vunpack.c.l.b16 %v2789
      %v3049 = vunpack.c.l.b16 %v2790
      %v3050 = vunpack.c.l.b16 %v2791
      %v3051 = vunpack.c.l.b16 %v2792
      %v3052 = vunpack.c.l.b16 %v2793
      %v3053 = vunpack.c.l.b16 %v2794
      %v3054 = vunpack.c.l.b16 %v2795
      %v3055 = vunpack.c.l.b16 %v2796
      %v3056 = vunpack.c.l.b16 %v2797
      %v3057 = vunpack.c.l.b16 %v2798
      %v3058 = vunpack.c.l.b16 %v2799
      %v3059 = vunpack.c.l.b16 %v2800
      %v3060 = vunpack.c.l.b16 %v2801
      %v3061 = vunpack.c.l.b16 %v2802
      %v3062 = vunpack.c.l.b16 %v2803
      %v3063 = vunpack.c.l.b16 %v2804
      %v3064 = vunpack.c.l.b16 %v2805
      %v3065 = vunpack.c.l.b16 %v2806
      %v3066 = vunpack.c.l.b16 %v2807
      %v3067 = vunpack.c.l.b16 %v2808
      %v3068 = vunpack.c.l.b16 %v2809
      %v3069 = vunpack.c.l.b16 %v2810
      %v3070 = vunpack.c.l.b16 %v2811
      %v3071 = vunpack.c.l.b16 %v2812
      %v3072 = vunpack.c.l.b16 %v2813
      %v3073 = vunpack.c.l.b16 %v2814
      %v3074 = vunpack.c.l.b16 %v2815
      %v3075 = vunpack.c.l.b16 %v2816
      %v3076 = vunpack.c.l.b16 %v2817
      %v3077 = vunpack.c.l.b16 %v2818
      %v3078 = vunpack.c.l.b16 %v2819
      %v3079 = vunpack.c.l.b16 %v2820
      %v3080 = vunpack.c.l.b16 %v2821
      %v3081 = vunpack.c.l.b16 %v2822
      %v3082 = vunpack.c.l.b16 %v2823
      %v3083 = vunpack.c.l.b16 %v2824
      %v3084 = vunpack.c.l.b16 %v2825
      %v3085 = vunpack.c.l.b16 %v2826
      %v3086 = vunpack.c.l.b16 %v2827
      %v3087 = vpack.c.b16 %v2960, %v2959
      %v3088 = vpack.c.b16 %v2962, %v2961
      %v3089 = vpack.c.b16 %v2964, %v2963
      %v3090 = vpack.c.b16 %v2966, %v2965
      %v3091 = vpack.c.b16 %v2968, %v2967
      %v3092 = vpack.c.b16 %v2970, %v2969
      %v3093 = vpack.c.b16 %v2972, %v2971
      %v3094 = vpack.c.b16 %v2974, %v2973
      %v3095 = vpack.c.b16 %v2976, %v2975
      %v3096 = vpack.c.b16 %v2978, %v2977
      %v3097 = vpack.c.b16 %v2980, %v2979
      %v3098 = vpack.c.b16 %v2982, %v2981
      %v3099 = vpack.c.b16 %v2984, %v2983
      %v3100 = vpack.c.b16 %v2986, %v2985
      %v3101 = vpack.c.b16 %v2988, %v2987
      %v3102 = vpack.c.b16 %v2990, %v2989
      %v3103 = vpack.c.b16 %v2992, %v2991
      %v3104 = vpack.c.b16 %v2994, %v2993
      %v3105 = vpack.c.b16 %v2996, %v2995
      %v3106 = vpack.c.b16 %v2998, %v2997
      %v3107 = vpack.c.b16 %v3000, %v2999
      %v3108 = vpack.c.b16 %v3002, %v3001
      %v3109 = vpack.c.b16 %v3004, %v3003
      %v3110 = vpack.c.b16 %v3006, %v3005
      %v3111 = vpack.c.b16 %v3008, %v3007
      %v3112 = vpack.c.b16 %v3010, %v3009
      %v3113 = vpack.c.b16 %v3012, %v3011
      %v3114 = vpack.c.b16 %v3014, %v3013
      %v3115 = vpack.c.b16 %v3016, %v3015
      %v3116 = vpack.c.b16 %v3018, %v3017
      %v3117 = vpack.c.b16 %v3020, %v3019
      %v3118 = vpack.c.b16 %v3022, %v3021
      %v3119 = vpack.c.b16 %v3024, %v3023
      %v3120 = vpack.c.b16 %v3026, %v3025
      %v3121 = vpack.c.b16 %v3028, %v3027
      %v3122 = vpack.c.b16 %v3030, %v3029
      %v3123 = vpack.c.b16 %v3032, %v3031
      %v3124 = vpack.c.b16 %v3034, %v3033
      %v3125 = vpack.c.b16 %v3036, %v3035
      %v3126 = vpack.c.b16 %v3038, %v3037
      %v3127 = vpack.c.b16 %v3040, %v3039
      %v3128 = vpack.c.b16 %v3042, %v3041
      %v3129 = vpack.c.b16 %v3044, %v3043
      %v3130 = vpack.c.b16 %v3046, %v3045
      %v3131 = vpack.c.b16 %v3048, %v3047
      %v3132 = vpack.c.b16 %v3050, %v3049
      %v3133 = vpack.c.b16 %v3052, %v3051
      %v3134 = vpack.c.b16 %v3054, %v3053
      %v3135 = vpack.c.b16 %v3056, %v3055
      %v3136 = vpack.c.b16 %v3058, %v3057
      %v3137 = vpack.c.b16 %v3060, %v3059
      %v3138 = vpack.c.b16 %v3062, %v3061
      %v3139 = vpack.c.b16 %v3064, %v3063
      %v3140 = vpack.c.b16 %v3066, %v3065
      %v3141 = vpack.c.b16 %v3068, %v3067
      %v3142 = vpack.c.b16 %v3070, %v3069
      %v3143 = vpack.c.b16 %v3072, %v3071
      %v3144 = vpack.c.b16 %v3074, %v3073
      %v3145 = vpack.c.b16 %v3076, %v3075
      %v3146 = vpack.c.b16 %v3078, %v3077
      %v3147 = vpack.c.b16 %v3080, %v3079
      %v3148 = vpack.c.b16 %v3082, %v3081
      %v3149 = vpack.c.b16 %v3084, %v3083
      %v3150 = vpack.c.b16 %v3086, %v3085
      %v3153 = vunpack.c.l.b16 %v2829
      %v3154 = vunpack.c.l.b16 %v2830
      %v3155 = vpack.c.b16 %v3154, %v3153
      %v3157 = vsel %vm634, %v3087, 0
      %v3160 = vsel %vm634, %v3088, 0
      %v3163 = vsel %vm634, %v3089, 0
      %v3166 = vsel %vm634, %v3090, 0
      %v3169 = vsel %vm634, %v3091, 0
      %v3172 = vsel %vm634, %v3092, 0
      %v3175 = vsel %vm634, %v3093, 0
      %v3178 = vsel %vm634, %v3094, 0
      %v3181 = vsel %vm634, %v3095, 0
      %v3184 = vsel %vm634, %v3096, 0
      %v3187 = vsel %vm634, %v3097, 0
      %v3190 = vsel %vm634, %v3098, 0
      %v3193 = vsel %vm634, %v3099, 0
      %v3196 = vsel %vm634, %v3100, 0
      %v3199 = vsel %vm634, %v3101, 0
      %v3202 = vsel %vm634, %v3102, 0
      %v3205 = vsel %vm634, %v3103, 0
      %v3208 = vsel %vm634, %v3104, 0
      %v3211 = vsel %vm634, %v3105, 0
      %v3214 = vsel %vm634, %v3106, 0
      %v3217 = vsel %vm634, %v3107, 0
      %v3220 = vsel %vm634, %v3108, 0
      %v3223 = vsel %vm634, %v3109, 0
      %v3226 = vsel %vm634, %v3110, 0
      %v3229 = vsel %vm634, %v3111, 0
      %v3232 = vsel %vm634, %v3112, 0
      %v3235 = vsel %vm634, %v3113, 0
      %v3238 = vsel %vm634, %v3114, 0
      %v3241 = vsel %vm634, %v3115, 0
      %v3244 = vsel %vm634, %v3116, 0
      %v3247 = vsel %vm634, %v3117, 0
      %v3250 = vsel %vm634, %v3118, 0
      %v3253 = vsel %vm634, %v3119, 0
      %v3256 = vsel %vm634, %v3120, 0
      %v3259 = vsel %vm634, %v3121, 0
      %v3262 = vsel %vm634, %v3122, 0
      %v3265 = vsel %vm634, %v3123, 0
      %v3268 = vsel %vm634, %v3124, 0
      %v3271 = vsel %vm634, %v3125, 0
      %v3274 = vsel %vm634, %v3126, 0
      %v3277 = vsel %vm634, %v3127, 0
      %v3280 = vsel %vm634, %v3128, 0
      %v3283 = vsel %vm634, %v3129, 0
      %v3286 = vsel %vm634, %v3130, 0
      %v3289 = vsel %vm634, %v3131, 0
      %v3292 = vsel %vm634, %v3132, 0
      %v3295 = vsel %vm634, %v3133, 0
      %v3298 = vsel %vm634, %v3134, 0
      %v3301 = vsel %vm634, %v3135, 0
      %v3304 = vsel %vm634, %v3136, 0
      %v3307 = vsel %vm634, %v3137, 0
      %v3310 = vsel %vm634, %v3138, 0
      %v3313 = vsel %vm634, %v3139, 0
      %v3316 = vsel %vm634, %v3140, 0
      %v3319 = vsel %vm634, %v3141, 0
      %v3322 = vsel %vm634, %v3142, 0
      %v3325 = vsel %vm634, %v3143, 0
      %v3328 = vsel %vm634, %v3144, 0
      %v3331 = vsel %vm634, %v3145, 0
      %v3334 = vsel %vm634, %v3146, 0
      %v3337 = vsel %vm634, %v3147, 0
      %v3340 = vsel %vm634, %v3148, 0
      %v3343 = vsel %vm634, %v3149, 0
      %v3346 = vsel %vm634, %v3150, 0
      %v3349 = vsel %vm827, %v3155, 0
      %3351 = vmatprep.subr.bf16.mxu0 0
      %3352 = vmatpush1.bf16.msra.mxu0 %v3349
      %3353 = vmatprep.subr.bf16.mxu0 0
      %3354 = vmatpush1.bf16.msra.mxu0 0
      %3355 = vmatprep.subr.bf16.mxu0 0
      %3356 = vmatpush1.bf16.msra.mxu0 0
      %3357 = vmatprep.subr.bf16.mxu0 0
      %3358 = vmatpush1.bf16.msra.mxu0 0
      %3359 = vmatprep.subr.bf16.mxu0 0
      %3360 = vmatpush1.bf16.msra.mxu0 0
      %3361 = vmatprep.subr.bf16.mxu0 0
      %3362 = vmatpush1.bf16.msra.mxu0 0
      %3363 = vmatprep.subr.bf16.mxu0 0
      %3364 = vmatpush1.bf16.msra.mxu0 0
      %3365 = vmatprep.subr.bf16.mxu0 0
      %3366 = vmatpush1.bf16.msra.mxu0 0
      %3367 = vmatprep.subr.bf16.mxu0 0
      %3368 = vmatpush1.bf16.msra.mxu0 0
      %3369 = vmatprep.subr.bf16.mxu0 0
      %3370 = vmatpush1.bf16.msra.mxu0 0
      %3371 = vmatprep.subr.bf16.mxu0 0
      %3372 = vmatpush1.bf16.msra.mxu0 0
      %3373 = vmatprep.subr.bf16.mxu0 0
      %3374 = vmatpush1.bf16.msra.mxu0 0
      %3375 = vmatprep.subr.bf16.mxu0 0
      %3376 = vmatpush1.bf16.msra.mxu0 0
      %3377 = vmatprep.subr.bf16.mxu0 0
      %3378 = vmatpush1.bf16.msra.mxu0 0
      %3379 = vmatprep.subr.bf16.mxu0 0
      %3380 = vmatpush1.bf16.msra.mxu0 0
      %3381 = vmatprep.subr.bf16.mxu0 0
      %3382 = vmatpush1.bf16.msra.mxu0 0
      %3383 = vmatprep.mubr.bf16.mxu0 0
      %3384 = vmatmul.mubr.bf16.gmra.mrb[0].mxu0 %v3157
      %v3385 = vpop.f32.mrb[0].mxu0
      %v3386 = vadd.f32 0.0, %v3385
      %v3387 = vpop.f32.mrb[0].mxu0
      %v3388 = vpop.f32.mrb[0].mxu0
      %v3389 = vadd.f32 0.0, %v3388
      %v3390 = vpop.f32.mrb[0].mxu0
      %3391 = vmatprep.mubr.bf16.mxu0 0
      %3392 = vmatmul.mubr.bf16.gmra.mrb[0].mxu0 %v3160
      %v3393 = vpop.f32.mrb[0].mxu0
      %v3394 = vadd.f32 0.0, %v3393
      %v3395 = vpop.f32.mrb[0].mxu0
      %v3396 = vpop.f32.mrb[0].mxu0
      %v3397 = vadd.f32 0.0, %v3396
      %v3398 = vpop.f32.mrb[0].mxu0
      %3399 = vmatprep.mubr.bf16.mxu0 0
      %3400 = vmatmul.mubr.bf16.gmra.mrb[0].mxu0 %v3163
      %v3401 = vpop.f32.mrb[0].mxu0
      %v3402 = vadd.f32 0.0, %v3401
      %v3403 = vpop.f32.mrb[0].mxu0
      %v3404 = vpop.f32.mrb[0].mxu0
      %v3405 = vadd.f32 0.0, %v3404
      %v3406 = vpop.f32.mrb[0].mxu0
      %3407 = vmatprep.mubr.bf16.mxu0 0
      %3408 = vmatmul.mubr.bf16.gmra.mrb[0].mxu0 %v3166
      %v3409 = vpop.f32.mrb[0].mxu0
      %v3410 = vadd.f32 0.0, %v3409
      %v3411 = vpop.f32.mrb[0].mxu0
      %v3412 = vpop.f32.mrb[0].mxu0
      %v3413 = vadd.f32 0.0, %v3412
      %v3414 = vpop.f32.mrb[0].mxu0
      %3415 = vmatprep.mubr.bf16.mxu0 0
      %3416 = vmatmul.mubr.bf16.gmra.mrb[0].mxu0 %v3169
      %v3417 = vpop.f32.mrb[0].mxu0
      %v3418 = vadd.f32 0.0, %v3417
      %v3419 = vpop.f32.mrb[0].mxu0
      %v3420 = vpop.f32.mrb[0].mxu0
      %v3421 = vadd.f32 0.0, %v3420
      %v3422 = vpop.f32.mrb[0].mxu0
      %3423 = vmatprep.mubr.bf16.mxu0 0
      %3424 = vmatmul.mubr.bf16.gmra.mrb[0].mxu0 %v3172
      %v3425 = vpop.f32.mrb[0].mxu0
      %v3426 = vadd.f32 0.0, %v3425
      %v3427 = vpop.f32.mrb[0].mxu0
      %v3428 = vpop.f32.mrb[0].mxu0
      %v3429 = vadd.f32 0.0, %v3428
      %v3430 = vpop.f32.mrb[0].mxu0
      %3431 = vmatprep.mubr.bf16.mxu0 0
      %3432 = vmatmul.mubr.bf16.gmra.mrb[0].mxu0 %v3175
      %v3433 = vpop.f32.mrb[0].mxu0
      %v3434 = vadd.f32 0.0, %v3433
      %v3435 = vpop.f32.mrb[0].mxu0
      %v3436 = vpop.f32.mrb[0].mxu0
      %v3437 = vadd.f32 0.0, %v3436
      %v3438 = vpop.f32.mrb[0].mxu0
      %3439 = vmatprep.mubr.bf16.mxu0 0
      %3440 = vmatmul.mubr.bf16.gmra.mrb[0].mxu0 %v3178
      %v3441 = vpop.f32.mrb[0].mxu0
      %v3442 = vadd.f32 0.0, %v3441
      %v3443 = vpop.f32.mrb[0].mxu0
      %v3444 = vpop.f32.mrb[0].mxu0
      %v3445 = vadd.f32 0.0, %v3444
      %v3446 = vpop.f32.mrb[0].mxu0
      %3447 = vmatprep.mubr.bf16.mxu0 0
      %3448 = vmatmul.mubr.bf16.gmra.mrb[0].mxu0 %v3181
      %v3449 = vpop.f32.mrb[0].mxu0
      %v3450 = vadd.f32 0.0, %v3449
      %v3451 = vpop.f32.mrb[0].mxu0
      %v3452 = vpop.f32.mrb[0].mxu0
      %v3453 = vadd.f32 0.0, %v3452
      %v3454 = vpop.f32.mrb[0].mxu0
      %3455 = vmatprep.mubr.bf16.mxu0 0
      %3456 = vmatmul.mubr.bf16.gmra.mrb[0].mxu0 %v3184
      %v3457 = vpop.f32.mrb[0].mxu0
      %v3458 = vadd.f32 0.0, %v3457
      %v3459 = vpop.f32.mrb[0].mxu0
      %v3460 = vpop.f32.mrb[0].mxu0
      %v3461 = vadd.f32 0.0, %v3460
      %v3462 = vpop.f32.mrb[0].mxu0
      %3463 = vmatprep.mubr.bf16.mxu0 0
      %3464 = vmatmul.mubr.bf16.gmra.mrb[0].mxu0 %v3187
      %v3465 = vpop.f32.mrb[0].mxu0
      %v3466 = vadd.f32 0.0, %v3465
      %v3467 = vpop.f32.mrb[0].mxu0
      %v3468 = vpop.f32.mrb[0].mxu0
      %v3469 = vadd.f32 0.0, %v3468
      %v3470 = vpop.f32.mrb[0].mxu0
      %3471 = vmatprep.mubr.bf16.mxu0 0
      %3472 = vmatmul.mubr.bf16.gmra.mrb[0].mxu0 %v3190
      %v3473 = vpop.f32.mrb[0].mxu0
      %v3474 = vadd.f32 0.0, %v3473
      %v3475 = vpop.f32.mrb[0].mxu0
      %v3476 = vpop.f32.mrb[0].mxu0
      %v3477 = vadd.f32 0.0, %v3476
      %v3478 = vpop.f32.mrb[0].mxu0
      %3479 = vmatprep.mubr.bf16.mxu0 0
      %3480 = vmatmul.mubr.bf16.gmra.mrb[0].mxu0 %v3193
      %v3481 = vpop.f32.mrb[0].mxu0
      %v3482 = vadd.f32 0.0, %v3481
      %v3483 = vpop.f32.mrb[0].mxu0
      %v3484 = vpop.f32.mrb[0].mxu0
      %v3485 = vadd.f32 0.0, %v3484
      %v3486 = vpop.f32.mrb[0].mxu0
      %3487 = vmatprep.mubr.bf16.mxu0 0
      %3488 = vmatmul.mubr.bf16.gmra.mrb[0].mxu0 %v3196
      %v3489 = vpop.f32.mrb[0].mxu0
      %v3490 = vadd.f32 0.0, %v3489
      %v3491 = vpop.f32.mrb[0].mxu0
      %v3492 = vpop.f32.mrb[0].mxu0
      %v3493 = vadd.f32 0.0, %v3492
      %v3494 = vpop.f32.mrb[0].mxu0
      %3495 = vmatprep.mubr.bf16.mxu0 0
      %3496 = vmatmul.mubr.bf16.gmra.mrb[0].mxu0 %v3199
      %v3497 = vpop.f32.mrb[0].mxu0
      %v3498 = vadd.f32 0.0, %v3497
      %v3499 = vpop.f32.mrb[0].mxu0
      %v3500 = vpop.f32.mrb[0].mxu0
      %v3501 = vadd.f32 0.0, %v3500
      %v3502 = vpop.f32.mrb[0].mxu0
      %3503 = vmatprep.mubr.bf16.mxu0 0
      %3504 = vmatmul.mubr.bf16.gmra.mrb[0].mxu0 %v3202
      %v3505 = vpop.f32.mrb[0].mxu0
      %v3506 = vadd.f32 0.0, %v3505
      %v3507 = vpop.f32.mrb[0].mxu0
      %v3508 = vpop.f32.mrb[0].mxu0
      %v3509 = vadd.f32 0.0, %v3508
      %v3510 = vpop.f32.mrb[0].mxu0
      %3511 = vmatprep.mubr.bf16.mxu0 0
      %3512 = vmatmul.mubr.bf16.gmra.mrb[0].mxu0 %v3205
      %v3513 = vpop.f32.mrb[0].mxu0
      %v3514 = vadd.f32 0.0, %v3513
      %v3515 = vpop.f32.mrb[0].mxu0
      %v3516 = vpop.f32.mrb[0].mxu0
      %v3517 = vadd.f32 0.0, %v3516
      %v3518 = vpop.f32.mrb[0].mxu0
      %3519 = vmatprep.mubr.bf16.mxu0 0
      %3520 = vmatmul.mubr.bf16.gmra.mrb[0].mxu0 %v3208
      %v3521 = vpop.f32.mrb[0].mxu0
      %v3522 = vadd.f32 0.0, %v3521
      %v3523 = vpop.f32.mrb[0].mxu0
      %v3524 = vpop.f32.mrb[0].mxu0
      %v3525 = vadd.f32 0.0, %v3524
      %v3526 = vpop.f32.mrb[0].mxu0
      %3527 = vmatprep.mubr.bf16.mxu0 0
      %3528 = vmatmul.mubr.bf16.gmra.mrb[0].mxu0 %v3211
      %v3529 = vpop.f32.mrb[0].mxu0
      %v3530 = vadd.f32 0.0, %v3529
      %v3531 = vpop.f32.mrb[0].mxu0
      %v3532 = vpop.f32.mrb[0].mxu0
      %v3533 = vadd.f32 0.0, %v3532
      %v3534 = vpop.f32.mrb[0].mxu0
      %3535 = vmatprep.mubr.bf16.mxu0 0
      %3536 = vmatmul.mubr.bf16.gmra.mrb[0].mxu0 %v3214
      %v3537 = vpop.f32.mrb[0].mxu0
      %v3538 = vadd.f32 0.0, %v3537
      %v3539 = vpop.f32.mrb[0].mxu0
      %v3540 = vpop.f32.mrb[0].mxu0
      %v3541 = vadd.f32 0.0, %v3540
      %v3542 = vpop.f32.mrb[0].mxu0
      %3543 = vmatprep.mubr.bf16.mxu0 0
      %3544 = vmatmul.mubr.bf16.gmra.mrb[0].mxu0 %v3217
      %v3545 = vpop.f32.mrb[0].mxu0
      %v3546 = vadd.f32 0.0, %v3545
      %v3547 = vpop.f32.mrb[0].mxu0
      %v3548 = vpop.f32.mrb[0].mxu0
      %v3549 = vadd.f32 0.0, %v3548
      %v3550 = vpop.f32.mrb[0].mxu0
      %3551 = vmatprep.mubr.bf16.mxu0 0
      %3552 = vmatmul.mubr.bf16.gmra.mrb[0].mxu0 %v3220
      %v3553 = vpop.f32.mrb[0].mxu0
      %v3554 = vadd.f32 0.0, %v3553
      %v3555 = vpop.f32.mrb[0].mxu0
      %v3556 = vpop.f32.mrb[0].mxu0
      %v3557 = vadd.f32 0.0, %v3556
      %v3558 = vpop.f32.mrb[0].mxu0
      %3559 = vmatprep.mubr.bf16.mxu0 0
      %3560 = vmatmul.mubr.bf16.gmra.mrb[0].mxu0 %v3223
      %v3561 = vpop.f32.mrb[0].mxu0
      %v3562 = vadd.f32 0.0, %v3561
      %v3563 = vpop.f32.mrb[0].mxu0
      %v3564 = vpop.f32.mrb[0].mxu0
      %v3565 = vadd.f32 0.0, %v3564
      %v3566 = vpop.f32.mrb[0].mxu0
      %3567 = vmatprep.mubr.bf16.mxu0 0
      %3568 = vmatmul.mubr.bf16.gmra.mrb[0].mxu0 %v3226
      %v3569 = vpop.f32.mrb[0].mxu0
      %v3570 = vadd.f32 0.0, %v3569
      %v3571 = vpop.f32.mrb[0].mxu0
      %v3572 = vpop.f32.mrb[0].mxu0
      %v3573 = vadd.f32 0.0, %v3572
      %v3574 = vpop.f32.mrb[0].mxu0
      %3575 = vmatprep.mubr.bf16.mxu0 0
      %3576 = vmatmul.mubr.bf16.gmra.mrb[0].mxu0 %v3229
      %v3577 = vpop.f32.mrb[0].mxu0
      %v3578 = vadd.f32 0.0, %v3577
      %v3579 = vpop.f32.mrb[0].mxu0
      %v3580 = vpop.f32.mrb[0].mxu0
      %v3581 = vadd.f32 0.0, %v3580
      %v3582 = vpop.f32.mrb[0].mxu0
      %3583 = vmatprep.mubr.bf16.mxu0 0
      %3584 = vmatmul.mubr.bf16.gmra.mrb[0].mxu0 %v3232
      %v3585 = vpop.f32.mrb[0].mxu0
      %v3586 = vadd.f32 0.0, %v3585
      %v3587 = vpop.f32.mrb[0].mxu0
      %v3588 = vpop.f32.mrb[0].mxu0
      %v3589 = vadd.f32 0.0, %v3588
      %v3590 = vpop.f32.mrb[0].mxu0
      %3591 = vmatprep.mubr.bf16.mxu0 0
      %3592 = vmatmul.mubr.bf16.gmra.mrb[0].mxu0 %v3235
      %v3593 = vpop.f32.mrb[0].mxu0
      %v3594 = vadd.f32 0.0, %v3593
      %v3595 = vpop.f32.mrb[0].mxu0
      %v3596 = vpop.f32.mrb[0].mxu0
      %v3597 = vadd.f32 0.0, %v3596
      %v3598 = vpop.f32.mrb[0].mxu0
      %3599 = vmatprep.mubr.bf16.mxu0 0
      %3600 = vmatmul.mubr.bf16.gmra.mrb[0].mxu0 %v3238
      %v3601 = vpop.f32.mrb[0].mxu0
      %v3602 = vadd.f32 0.0, %v3601
      %v3603 = vpop.f32.mrb[0].mxu0
      %v3604 = vpop.f32.mrb[0].mxu0
      %v3605 = vadd.f32 0.0, %v3604
      %v3606 = vpop.f32.mrb[0].mxu0
      %3607 = vmatprep.mubr.bf16.mxu0 0
      %3608 = vmatmul.mubr.bf16.gmra.mrb[0].mxu0 %v3241
      %v3609 = vpop.f32.mrb[0].mxu0
      %v3610 = vadd.f32 0.0, %v3609
      %v3611 = vpop.f32.mrb[0].mxu0
      %v3612 = vpop.f32.mrb[0].mxu0
      %v3613 = vadd.f32 0.0, %v3612
      %v3614 = vpop.f32.mrb[0].mxu0
      %3615 = vmatprep.mubr.bf16.mxu0 0
      %3616 = vmatmul.mubr.bf16.gmra.mrb[0].mxu0 %v3244
      %v3617 = vpop.f32.mrb[0].mxu0
      %v3618 = vadd.f32 0.0, %v3617
      %v3619 = vpop.f32.mrb[0].mxu0
      %v3620 = vpop.f32.mrb[0].mxu0
      %v3621 = vadd.f32 0.0, %v3620
      %v3622 = vpop.f32.mrb[0].mxu0
      %3623 = vmatprep.mubr.bf16.mxu0 0
      %3624 = vmatmul.mubr.bf16.gmra.mrb[0].mxu0 %v3247
      %v3625 = vpop.f32.mrb[0].mxu0
      %v3626 = vadd.f32 0.0, %v3625
      %v3627 = vpop.f32.mrb[0].mxu0
      %v3628 = vpop.f32.mrb[0].mxu0
      %v3629 = vadd.f32 0.0, %v3628
      %v3630 = vpop.f32.mrb[0].mxu0
      %3631 = vmatprep.mubr.bf16.mxu0 0
      %3632 = vmatmul.mubr.bf16.gmra.mrb[0].mxu0 %v3250
      %v3633 = vpop.f32.mrb[0].mxu0
      %v3634 = vadd.f32 0.0, %v3633
      %v3635 = vpop.f32.mrb[0].mxu0
      %v3636 = vpop.f32.mrb[0].mxu0
      %v3637 = vadd.f32 0.0, %v3636
      %v3638 = vpop.f32.mrb[0].mxu0
      %3639 = vmatprep.mubr.bf16.mxu0 0
      %3640 = vmatmul.mubr.bf16.gmra.mrb[0].mxu0 %v3253
      %v3641 = vpop.f32.mrb[0].mxu0
      %v3642 = vadd.f32 0.0, %v3641
      %v3643 = vpop.f32.mrb[0].mxu0
      %v3644 = vpop.f32.mrb[0].mxu0
      %v3645 = vadd.f32 0.0, %v3644
      %v3646 = vpop.f32.mrb[0].mxu0
      %3647 = vmatprep.mubr.bf16.mxu0 0
      %3648 = vmatmul.mubr.bf16.gmra.mrb[0].mxu0 %v3256
      %v3649 = vpop.f32.mrb[0].mxu0
      %v3650 = vadd.f32 0.0, %v3649
      %v3651 = vpop.f32.mrb[0].mxu0
      %v3652 = vpop.f32.mrb[0].mxu0
      %v3653 = vadd.f32 0.0, %v3652
      %v3654 = vpop.f32.mrb[0].mxu0
      %3655 = vmatprep.mubr.bf16.mxu0 0
      %3656 = vmatmul.mubr.bf16.gmra.mrb[0].mxu0 %v3259
      %v3657 = vpop.f32.mrb[0].mxu0
      %v3658 = vadd.f32 0.0, %v3657
      %v3659 = vpop.f32.mrb[0].mxu0
      %v3660 = vpop.f32.mrb[0].mxu0
      %v3661 = vadd.f32 0.0, %v3660
      %v3662 = vpop.f32.mrb[0].mxu0
      %3663 = vmatprep.mubr.bf16.mxu0 0
      %3664 = vmatmul.mubr.bf16.gmra.mrb[0].mxu0 %v3262
      %v3665 = vpop.f32.mrb[0].mxu0
      %v3666 = vadd.f32 0.0, %v3665
      %v3667 = vpop.f32.mrb[0].mxu0
      %v3668 = vpop.f32.mrb[0].mxu0
      %v3669 = vadd.f32 0.0, %v3668
      %v3670 = vpop.f32.mrb[0].mxu0
      %3671 = vmatprep.mubr.bf16.mxu0 0
      %3672 = vmatmul.mubr.bf16.gmra.mrb[0].mxu0 %v3265
      %v3673 = vpop.f32.mrb[0].mxu0
      %v3674 = vadd.f32 0.0, %v3673
      %v3675 = vpop.f32.mrb[0].mxu0
      %v3676 = vpop.f32.mrb[0].mxu0
      %v3677 = vadd.f32 0.0, %v3676
      %v3678 = vpop.f32.mrb[0].mxu0
      %3679 = vmatprep.mubr.bf16.mxu0 0
      %3680 = vmatmul.mubr.bf16.gmra.mrb[0].mxu0 %v3268
      %v3681 = vpop.f32.mrb[0].mxu0
      %v3682 = vadd.f32 0.0, %v3681
      %v3683 = vpop.f32.mrb[0].mxu0
      %v3684 = vpop.f32.mrb[0].mxu0
      %v3685 = vadd.f32 0.0, %v3684
      %v3686 = vpop.f32.mrb[0].mxu0
      %3687 = vmatprep.mubr.bf16.mxu0 0
      %3688 = vmatmul.mubr.bf16.gmra.mrb[0].mxu0 %v3271
      %v3689 = vpop.f32.mrb[0].mxu0
      %v3690 = vadd.f32 0.0, %v3689
      %v3691 = vpop.f32.mrb[0].mxu0
      %v3692 = vpop.f32.mrb[0].mxu0
      %v3693 = vadd.f32 0.0, %v3692
      %v3694 = vpop.f32.mrb[0].mxu0
      %3695 = vmatprep.mubr.bf16.mxu0 0
      %3696 = vmatmul.mubr.bf16.gmra.mrb[0].mxu0 %v3274
      %v3697 = vpop.f32.mrb[0].mxu0
      %v3698 = vadd.f32 0.0, %v3697
      %v3699 = vpop.f32.mrb[0].mxu0
      %v3700 = vpop.f32.mrb[0].mxu0
      %v3701 = vadd.f32 0.0, %v3700
      %v3702 = vpop.f32.mrb[0].mxu0
      %3703 = vmatprep.mubr.bf16.mxu0 0
      %3704 = vmatmul.mubr.bf16.gmra.mrb[0].mxu0 %v3277
      %v3705 = vpop.f32.mrb[0].mxu0
      %v3706 = vadd.f32 0.0, %v3705
      %v3707 = vpop.f32.mrb[0].mxu0
      %v3708 = vpop.f32.mrb[0].mxu0
      %v3709 = vadd.f32 0.0, %v3708
      %v3710 = vpop.f32.mrb[0].mxu0
      %3711 = vmatprep.mubr.bf16.mxu0 0
      %3712 = vmatmul.mubr.bf16.gmra.mrb[0].mxu0 %v3280
      %v3713 = vpop.f32.mrb[0].mxu0
      %v3714 = vadd.f32 0.0, %v3713
      %v3715 = vpop.f32.mrb[0].mxu0
      %v3716 = vpop.f32.mrb[0].mxu0
      %v3717 = vadd.f32 0.0, %v3716
      %v3718 = vpop.f32.mrb[0].mxu0
      %3719 = vmatprep.mubr.bf16.mxu0 0
      %3720 = vmatmul.mubr.bf16.gmra.mrb[0].mxu0 %v3283
      %v3721 = vpop.f32.mrb[0].mxu0
      %v3722 = vadd.f32 0.0, %v3721
      %v3723 = vpop.f32.mrb[0].mxu0
      %v3724 = vpop.f32.mrb[0].mxu0
      %v3725 = vadd.f32 0.0, %v3724
      %v3726 = vpop.f32.mrb[0].mxu0
      %3727 = vmatprep.mubr.bf16.mxu0 0
      %3728 = vmatmul.mubr.bf16.gmra.mrb[0].mxu0 %v3286
      %v3729 = vpop.f32.mrb[0].mxu0
      %v3730 = vadd.f32 0.0, %v3729
      %v3731 = vpop.f32.mrb[0].mxu0
      %v3732 = vpop.f32.mrb[0].mxu0
      %v3733 = vadd.f32 0.0, %v3732
      %v3734 = vpop.f32.mrb[0].mxu0
      %3735 = vmatprep.mubr.bf16.mxu0 0
      %3736 = vmatmul.mubr.bf16.gmra.mrb[0].mxu0 %v3289
      %v3737 = vpop.f32.mrb[0].mxu0
      %v3738 = vadd.f32 0.0, %v3737
      %v3739 = vpop.f32.mrb[0].mxu0
      %v3740 = vpop.f32.mrb[0].mxu0
      %v3741 = vadd.f32 0.0, %v3740
      %v3742 = vpop.f32.mrb[0].mxu0
      %3743 = vmatprep.mubr.bf16.mxu0 0
      %3744 = vmatmul.mubr.bf16.gmra.mrb[0].mxu0 %v3292
      %v3745 = vpop.f32.mrb[0].mxu0
      %v3746 = vadd.f32 0.0, %v3745
      %v3747 = vpop.f32.mrb[0].mxu0
      %v3748 = vpop.f32.mrb[0].mxu0
      %v3749 = vadd.f32 0.0, %v3748
      %v3750 = vpop.f32.mrb[0].mxu0
      %3751 = vmatprep.mubr.bf16.mxu0 0
      %3752 = vmatmul.mubr.bf16.gmra.mrb[0].mxu0 %v3295
      %v3753 = vpop.f32.mrb[0].mxu0
      %v3754 = vadd.f32 0.0, %v3753
      %v3755 = vpop.f32.mrb[0].mxu0
      %v3756 = vpop.f32.mrb[0].mxu0
      %v3757 = vadd.f32 0.0, %v3756
      %v3758 = vpop.f32.mrb[0].mxu0
      %3759 = vmatprep.mubr.bf16.mxu0 0
      %3760 = vmatmul.mubr.bf16.gmra.mrb[0].mxu0 %v3298
      %v3761 = vpop.f32.mrb[0].mxu0
      %v3762 = vadd.f32 0.0, %v3761
      %v3763 = vpop.f32.mrb[0].mxu0
      %v3764 = vpop.f32.mrb[0].mxu0
      %v3765 = vadd.f32 0.0, %v3764
      %v3766 = vpop.f32.mrb[0].mxu0
      %3767 = vmatprep.mubr.bf16.mxu0 0
      %3768 = vmatmul.mubr.bf16.gmra.mrb[0].mxu0 %v3301
      %v3769 = vpop.f32.mrb[0].mxu0
      %v3770 = vadd.f32 0.0, %v3769
      %v3771 = vpop.f32.mrb[0].mxu0
      %v3772 = vpop.f32.mrb[0].mxu0
      %v3773 = vadd.f32 0.0, %v3772
      %v3774 = vpop.f32.mrb[0].mxu0
      %3775 = vmatprep.mubr.bf16.mxu0 0
      %3776 = vmatmul.mubr.bf16.gmra.mrb[0].mxu0 %v3304
      %v3777 = vpop.f32.mrb[0].mxu0
      %v3778 = vadd.f32 0.0, %v3777
      %v3779 = vpop.f32.mrb[0].mxu0
      %v3780 = vpop.f32.mrb[0].mxu0
      %v3781 = vadd.f32 0.0, %v3780
      %v3782 = vpop.f32.mrb[0].mxu0
      %3783 = vmatprep.mubr.bf16.mxu0 0
      %3784 = vmatmul.mubr.bf16.gmra.mrb[0].mxu0 %v3307
      %v3785 = vpop.f32.mrb[0].mxu0
      %v3786 = vadd.f32 0.0, %v3785
      %v3787 = vpop.f32.mrb[0].mxu0
      %v3788 = vpop.f32.mrb[0].mxu0
      %v3789 = vadd.f32 0.0, %v3788
      %v3790 = vpop.f32.mrb[0].mxu0
      %3791 = vmatprep.mubr.bf16.mxu0 0
      %3792 = vmatmul.mubr.bf16.gmra.mrb[0].mxu0 %v3310
      %v3793 = vpop.f32.mrb[0].mxu0
      %v3794 = vadd.f32 0.0, %v3793
      %v3795 = vpop.f32.mrb[0].mxu0
      %v3796 = vpop.f32.mrb[0].mxu0
      %v3797 = vadd.f32 0.0, %v3796
      %v3798 = vpop.f32.mrb[0].mxu0
      %3799 = vmatprep.mubr.bf16.mxu0 0
      %3800 = vmatmul.mubr.bf16.gmra.mrb[0].mxu0 %v3313
      %v3801 = vpop.f32.mrb[0].mxu0
      %v3802 = vadd.f32 0.0, %v3801
      %v3803 = vpop.f32.mrb[0].mxu0
      %v3804 = vpop.f32.mrb[0].mxu0
      %v3805 = vadd.f32 0.0, %v3804
      %v3806 = vpop.f32.mrb[0].mxu0
      %3807 = vmatprep.mubr.bf16.mxu0 0
      %3808 = vmatmul.mubr.bf16.gmra.mrb[0].mxu0 %v3316
      %v3809 = vpop.f32.mrb[0].mxu0
      %v3810 = vadd.f32 0.0, %v3809
      %v3811 = vpop.f32.mrb[0].mxu0
      %v3812 = vpop.f32.mrb[0].mxu0
      %v3813 = vadd.f32 0.0, %v3812
      %v3814 = vpop.f32.mrb[0].mxu0
      %3815 = vmatprep.mubr.bf16.mxu0 0
      %3816 = vmatmul.mubr.bf16.gmra.mrb[0].mxu0 %v3319
      %v3817 = vpop.f32.mrb[0].mxu0
      %v3818 = vadd.f32 0.0, %v3817
      %v3819 = vpop.f32.mrb[0].mxu0
      %v3820 = vpop.f32.mrb[0].mxu0
      %v3821 = vadd.f32 0.0, %v3820
      %v3822 = vpop.f32.mrb[0].mxu0
      %3823 = vmatprep.mubr.bf16.mxu0 0
      %3824 = vmatmul.mubr.bf16.gmra.mrb[0].mxu0 %v3322
      %v3825 = vpop.f32.mrb[0].mxu0
      %v3826 = vadd.f32 0.0, %v3825
      %v3827 = vpop.f32.mrb[0].mxu0
      %v3828 = vpop.f32.mrb[0].mxu0
      %v3829 = vadd.f32 0.0, %v3828
      %v3830 = vpop.f32.mrb[0].mxu0
      %3831 = vmatprep.mubr.bf16.mxu0 0
      %3832 = vmatmul.mubr.bf16.gmra.mrb[0].mxu0 %v3325
      %v3833 = vpop.f32.mrb[0].mxu0
      %v3834 = vadd.f32 0.0, %v3833
      %v3835 = vpop.f32.mrb[0].mxu0
      %v3836 = vpop.f32.mrb[0].mxu0
      %v3837 = vadd.f32 0.0, %v3836
      %v3838 = vpop.f32.mrb[0].mxu0
      %3839 = vmatprep.mubr.bf16.mxu0 0
      %3840 = vmatmul.mubr.bf16.gmra.mrb[0].mxu0 %v3328
      %v3841 = vpop.f32.mrb[0].mxu0
      %v3842 = vadd.f32 0.0, %v3841
      %v3843 = vpop.f32.mrb[0].mxu0
      %v3844 = vpop.f32.mrb[0].mxu0
      %v3845 = vadd.f32 0.0, %v3844
      %v3846 = vpop.f32.mrb[0].mxu0
      %3847 = vmatprep.mubr.bf16.mxu0 0
      %3848 = vmatmul.mubr.bf16.gmra.mrb[0].mxu0 %v3331
      %v3849 = vpop.f32.mrb[0].mxu0
      %v3850 = vadd.f32 0.0, %v3849
      %v3851 = vpop.f32.mrb[0].mxu0
      %v3852 = vpop.f32.mrb[0].mxu0
      %v3853 = vadd.f32 0.0, %v3852
      %v3854 = vpop.f32.mrb[0].mxu0
      %3855 = vmatprep.mubr.bf16.mxu0 0
      %3856 = vmatmul.mubr.bf16.gmra.mrb[0].mxu0 %v3334
      %v3857 = vpop.f32.mrb[0].mxu0
      %v3858 = vadd.f32 0.0, %v3857
      %v3859 = vpop.f32.mrb[0].mxu0
      %v3860 = vpop.f32.mrb[0].mxu0
      %v3861 = vadd.f32 0.0, %v3860
      %v3862 = vpop.f32.mrb[0].mxu0
      %3863 = vmatprep.mubr.bf16.mxu0 0
      %3864 = vmatmul.mubr.bf16.gmra.mrb[0].mxu0 %v3337
      %v3865 = vpop.f32.mrb[0].mxu0
      %v3866 = vadd.f32 0.0, %v3865
      %v3867 = vpop.f32.mrb[0].mxu0
      %v3868 = vpop.f32.mrb[0].mxu0
      %v3869 = vadd.f32 0.0, %v3868
      %v3870 = vpop.f32.mrb[0].mxu0
      %3871 = vmatprep.mubr.bf16.mxu0 0
      %3872 = vmatmul.mubr.bf16.gmra.mrb[0].mxu0 %v3340
      %v3873 = vpop.f32.mrb[0].mxu0
      %v3874 = vadd.f32 0.0, %v3873
      %v3875 = vpop.f32.mrb[0].mxu0
      %v3876 = vpop.f32.mrb[0].mxu0
      %v3877 = vadd.f32 0.0, %v3876
      %v3878 = vpop.f32.mrb[0].mxu0
      %3879 = vmatprep.mubr.bf16.mxu0 0
      %3880 = vmatmul.mubr.bf16.gmra.mrb[0].mxu0 %v3343
      %v3881 = vpop.f32.mrb[0].mxu0
      %v3882 = vadd.f32 0.0, %v3881
      %v3883 = vpop.f32.mrb[0].mxu0
      %v3884 = vpop.f32.mrb[0].mxu0
      %v3885 = vadd.f32 0.0, %v3884
      %v3886 = vpop.f32.mrb[0].mxu0
      %3887 = vmatprep.mubr.bf16.mxu0 0
      %3888 = vmatmul.mubr.bf16.gmra.mrb[0].mxu0 %v3346
      %v3889 = vpop.f32.mrb[0].mxu0
      %v3890 = vadd.f32 0.0, %v3889
      %v3891 = vpop.f32.mrb[0].mxu0
      %v3892 = vpop.f32.mrb[0].mxu0
      %v3893 = vadd.f32 0.0, %v3892
      %v3894 = vpop.f32.mrb[0].mxu0
      %3895 = vdwg.mxu0
      %v3896 = vadd.f32 %v2572, %v3386
      %v3897 = vadd.f32 %v2573, %v3389
      %v3898 = vadd.f32 %v2574, %v3394
      %v3899 = vadd.f32 %v2575, %v3397
      %v3900 = vadd.f32 %v2576, %v3402
      %v3901 = vadd.f32 %v2577, %v3405
      %v3902 = vadd.f32 %v2578, %v3410
      %v3903 = vadd.f32 %v2579, %v3413
      %v3904 = vadd.f32 %v2580, %v3418
      %v3905 = vadd.f32 %v2581, %v3421
      %v3906 = vadd.f32 %v2582, %v3426
      %v3907 = vadd.f32 %v2583, %v3429
      %v3908 = vadd.f32 %v2584, %v3434
      %v3909 = vadd.f32 %v2585, %v3437
      %v3910 = vadd.f32 %v2586, %v3442
      %v3911 = vadd.f32 %v2587, %v3445
      %v3912 = vadd.f32 %v2588, %v3450
      %v3913 = vadd.f32 %v2589, %v3453
      %v3914 = vadd.f32 %v2590, %v3458
      %v3915 = vadd.f32 %v2591, %v3461
      %v3916 = vadd.f32 %v2592, %v3466
      %v3917 = vadd.f32 %v2593, %v3469
      %v3918 = vadd.f32 %v2594, %v3474
      %v3919 = vadd.f32 %v2595, %v3477
      %v3920 = vadd.f32 %v2596, %v3482
      %v3921 = vadd.f32 %v2597, %v3485
      %v3922 = vadd.f32 %v2598, %v3490
      %v3923 = vadd.f32 %v2599, %v3493
      %v3924 = vadd.f32 %v2600, %v3498
      %v3925 = vadd.f32 %v2601, %v3501
      %v3926 = vadd.f32 %v2602, %v3506
      %v3927 = vadd.f32 %v2603, %v3509
      %v3928 = vadd.f32 %v2604, %v3514
      %v3929 = vadd.f32 %v2605, %v3517
      %v3930 = vadd.f32 %v2606, %v3522
      %v3931 = vadd.f32 %v2607, %v3525
      %v3932 = vadd.f32 %v2608, %v3530
      %v3933 = vadd.f32 %v2609, %v3533
      %v3934 = vadd.f32 %v2610, %v3538
      %v3935 = vadd.f32 %v2611, %v3541
      %v3936 = vadd.f32 %v2612, %v3546
      %v3937 = vadd.f32 %v2613, %v3549
      %v3938 = vadd.f32 %v2614, %v3554
      %v3939 = vadd.f32 %v2615, %v3557
      %v3940 = vadd.f32 %v2616, %v3562
      %v3941 = vadd.f32 %v2617, %v3565
      %v3942 = vadd.f32 %v2618, %v3570
      %v3943 = vadd.f32 %v2619, %v3573
      %v3944 = vadd.f32 %v2620, %v3578
      %v3945 = vadd.f32 %v2621, %v3581
      %v3946 = vadd.f32 %v2622, %v3586
      %v3947 = vadd.f32 %v2623, %v3589
      %v3948 = vadd.f32 %v2624, %v3594
      %v3949 = vadd.f32 %v2625, %v3597
      %v3950 = vadd.f32 %v2626, %v3602
      %v3951 = vadd.f32 %v2627, %v3605
      %v3952 = vadd.f32 %v2628, %v3610
      %v3953 = vadd.f32 %v2629, %v3613
      %v3954 = vadd.f32 %v2630, %v3618
      %v3955 = vadd.f32 %v2631, %v3621
      %v3956 = vadd.f32 %v2632, %v3626
      %v3957 = vadd.f32 %v2633, %v3629
      %v3958 = vadd.f32 %v2634, %v3634
      %v3959 = vadd.f32 %v2635, %v3637
      %v3960 = vadd.f32 %v2636, %v3642
      %v3961 = vadd.f32 %v2637, %v3645
      %v3962 = vadd.f32 %v2638, %v3650
      %v3963 = vadd.f32 %v2639, %v3653
      %v3964 = vadd.f32 %v2640, %v3658
      %v3965 = vadd.f32 %v2641, %v3661
      %v3966 = vadd.f32 %v2642, %v3666
      %v3967 = vadd.f32 %v2643, %v3669
      %v3968 = vadd.f32 %v2644, %v3674
      %v3969 = vadd.f32 %v2645, %v3677
      %v3970 = vadd.f32 %v2646, %v3682
      %v3971 = vadd.f32 %v2647, %v3685
      %v3972 = vadd.f32 %v2648, %v3690
      %v3973 = vadd.f32 %v2649, %v3693
      %v3974 = vadd.f32 %v2650, %v3698
      %v3975 = vadd.f32 %v2651, %v3701
      %v3976 = vadd.f32 %v2652, %v3706
      %v3977 = vadd.f32 %v2653, %v3709
      %v3978 = vadd.f32 %v2654, %v3714
      %v3979 = vadd.f32 %v2655, %v3717
      %v3980 = vadd.f32 %v2656, %v3722
      %v3981 = vadd.f32 %v2657, %v3725
      %v3982 = vadd.f32 %v2658, %v3730
      %v3983 = vadd.f32 %v2659, %v3733
      %v3984 = vadd.f32 %v2660, %v3738
      %v3985 = vadd.f32 %v2661, %v3741
      %v3986 = vadd.f32 %v2662, %v3746
      %v3987 = vadd.f32 %v2663, %v3749
      %v3988 = vadd.f32 %v2664, %v3754
      %v3989 = vadd.f32 %v2665, %v3757
      %v3990 = vadd.f32 %v2666, %v3762
      %v3991 = vadd.f32 %v2667, %v3765
      %v3992 = vadd.f32 %v2668, %v3770
      %v3993 = vadd.f32 %v2669, %v3773
      %v3994 = vadd.f32 %v2670, %v3778
      %v3995 = vadd.f32 %v2671, %v3781
      %v3996 = vadd.f32 %v2672, %v3786
      %v3997 = vadd.f32 %v2673, %v3789
      %v3998 = vadd.f32 %v2674, %v3794
      %v3999 = vadd.f32 %v2675, %v3797
      %v4000 = vadd.f32 %v2676, %v3802
      %v4001 = vadd.f32 %v2677, %v3805
      %v4002 = vadd.f32 %v2678, %v3810
      %v4003 = vadd.f32 %v2679, %v3813
      %v4004 = vadd.f32 %v2680, %v3818
      %v4005 = vadd.f32 %v2681, %v3821
      %v4006 = vadd.f32 %v2682, %v3826
      %v4007 = vadd.f32 %v2683, %v3829
      %v4008 = vadd.f32 %v2684, %v3834
      %v4009 = vadd.f32 %v2685, %v3837
      %v4010 = vadd.f32 %v2686, %v3842
      %v4011 = vadd.f32 %v2687, %v3845
      %v4012 = vadd.f32 %v2688, %v3850
      %v4013 = vadd.f32 %v2689, %v3853
      %v4014 = vadd.f32 %v2690, %v3858
      %v4015 = vadd.f32 %v2691, %v3861
      %v4016 = vadd.f32 %v2692, %v3866
      %v4017 = vadd.f32 %v2693, %v3869
      %v4018 = vadd.f32 %v2694, %v3874
      %v4019 = vadd.f32 %v2695, %v3877
      %v4020 = vadd.f32 %v2696, %v3882
      %v4021 = vadd.f32 %v2697, %v3885
      %v4022 = vadd.f32 %v2698, %v3890
      %v4023 = vadd.f32 %v2699, %v3893
      %vm4024 = vcmask 64512
      %4025 = vst.msk [vmem:[%s170] sm:$0xff] %vm4024, %v3896
      %4026 = vst.msk [vmem:[%s170 + $0x8] sm:$0xff] %vm4024, %v3897
      %4027 = vst.msk [vmem:[%s170 + $0x10] sm:$0xff] %vm4024, %v3898
      %4028 = vst.msk [vmem:[%s170 + $0x18] sm:$0xff] %vm4024, %v3899
      %4029 = vst.msk [vmem:[%s170 + $0x20] sm:$0xff] %vm4024, %v3900
      %4030 = vst.msk [vmem:[%s170 + $0x28] sm:$0xff] %vm4024, %v3901
      %4031 = vst.msk [vmem:[%s170 + $0x30] sm:$0xff] %vm4024, %v3902
      %4032 = vst.msk [vmem:[%s170 + $0x38] sm:$0xff] %vm4024, %v3903
      %4033 = vst.msk [vmem:[%s170 + $0x40] sm:$0xff] %vm4024, %v3904
      %4034 = vst.msk [vmem:[%s170 + $0x48] sm:$0xff] %vm4024, %v3905
      %4035 = vst.msk [vmem:[%s170 + $0x50] sm:$0xff] %vm4024, %v3906
      %4036 = vst.msk [vmem:[%s170 + $0x58] sm:$0xff] %vm4024, %v3907
      %4037 = vst.msk [vmem:[%s170 + $0x60] sm:$0xff] %vm4024, %v3908
      %4038 = vst.msk [vmem:[%s170 + $0x68] sm:$0xff] %vm4024, %v3909
      %4039 = vst.msk [vmem:[%s170 + $0x70] sm:$0xff] %vm4024, %v3910
      %4040 = vst.msk [vmem:[%s170 + $0x78] sm:$0xff] %vm4024, %v3911
      %4041 = vst.msk [vmem:[%s170 + $0x80] sm:$0xff] %vm4024, %v3912
      %4042 = vst.msk [vmem:[%s170 + $0x88] sm:$0xff] %vm4024, %v3913
      %4043 = vst.msk [vmem:[%s170 + $0x90] sm:$0xff] %vm4024, %v3914
      %4044 = vst.msk [vmem:[%s170 + $0x98] sm:$0xff] %vm4024, %v3915
      %4045 = vst.msk [vmem:[%s170 + $0xa0] sm:$0xff] %vm4024, %v3916
      %4046 = vst.msk [vmem:[%s170 + $0xa8] sm:$0xff] %vm4024, %v3917
      %4047 = vst.msk [vmem:[%s170 + $0xb0] sm:$0xff] %vm4024, %v3918
      %4048 = vst.msk [vmem:[%s170 + $0xb8] sm:$0xff] %vm4024, %v3919
      %4049 = vst.msk [vmem:[%s170 + $0xc0] sm:$0xff] %vm4024, %v3920
      %4050 = vst.msk [vmem:[%s170 + $0xc8] sm:$0xff] %vm4024, %v3921
      %4051 = vst.msk [vmem:[%s170 + $0xd0] sm:$0xff] %vm4024, %v3922
      %4052 = vst.msk [vmem:[%s170 + $0xd8] sm:$0xff] %vm4024, %v3923
      %4053 = vst.msk [vmem:[%s170 + $0xe0] sm:$0xff] %vm4024, %v3924
      %4054 = vst.msk [vmem:[%s170 + $0xe8] sm:$0xff] %vm4024, %v3925
      %4055 = vst.msk [vmem:[%s170 + $0xf0] sm:$0xff] %vm4024, %v3926
      %4056 = vst.msk [vmem:[%s170 + $0xf8] sm:$0xff] %vm4024, %v3927
      %4057 = vst.msk [vmem:[%s170 + $0x100] sm:$0xff] %vm4024, %v3928
      %4058 = vst.msk [vmem:[%s170 + $0x108] sm:$0xff] %vm4024, %v3929
      %4059 = vst.msk [vmem:[%s170 + $0x110] sm:$0xff] %vm4024, %v3930
      %4060 = vst.msk [vmem:[%s170 + $0x118] sm:$0xff] %vm4024, %v3931
      %4061 = vst.msk [vmem:[%s170 + $0x120] sm:$0xff] %vm4024, %v3932
      %4062 = vst.msk [vmem:[%s170 + $0x128] sm:$0xff] %vm4024, %v3933
      %4063 = vst.msk [vmem:[%s170 + $0x130] sm:$0xff] %vm4024, %v3934
      %4064 = vst.msk [vmem:[%s170 + $0x138] sm:$0xff] %vm4024, %v3935
      %4065 = vst.msk [vmem:[%s170 + $0x140] sm:$0xff] %vm4024, %v3936
      %4066 = vst.msk [vmem:[%s170 + $0x148] sm:$0xff] %vm4024, %v3937
      %4067 = vst.msk [vmem:[%s170 + $0x150] sm:$0xff] %vm4024, %v3938
      %4068 = vst.msk [vmem:[%s170 + $0x158] sm:$0xff] %vm4024, %v3939
      %4069 = vst.msk [vmem:[%s170 + $0x160] sm:$0xff] %vm4024, %v3940
      %4070 = vst.msk [vmem:[%s170 + $0x168] sm:$0xff] %vm4024, %v3941
      %4071 = vst.msk [vmem:[%s170 + $0x170] sm:$0xff] %vm4024, %v3942
      %4072 = vst.msk [vmem:[%s170 + $0x178] sm:$0xff] %vm4024, %v3943
      %4073 = vst.msk [vmem:[%s170 + $0x180] sm:$0xff] %vm4024, %v3944
      %4074 = vst.msk [vmem:[%s170 + $0x188] sm:$0xff] %vm4024, %v3945
      %4075 = vst.msk [vmem:[%s170 + $0x190] sm:$0xff] %vm4024, %v3946
      %4076 = vst.msk [vmem:[%s170 + $0x198] sm:$0xff] %vm4024, %v3947
      %4077 = vst.msk [vmem:[%s170 + $0x1a0] sm:$0xff] %vm4024, %v3948
      %4078 = vst.msk [vmem:[%s170 + $0x1a8] sm:$0xff] %vm4024, %v3949
      %4079 = vst.msk [vmem:[%s170 + $0x1b0] sm:$0xff] %vm4024, %v3950
      %4080 = vst.msk [vmem:[%s170 + $0x1b8] sm:$0xff] %vm4024, %v3951
      %4081 = vst.msk [vmem:[%s170 + $0x1c0] sm:$0xff] %vm4024, %v3952
      %4082 = vst.msk [vmem:[%s170 + $0x1c8] sm:$0xff] %vm4024, %v3953
      %4083 = vst.msk [vmem:[%s170 + $0x1d0] sm:$0xff] %vm4024, %v3954
      %4084 = vst.msk [vmem:[%s170 + $0x1d8] sm:$0xff] %vm4024, %v3955
      %4085 = vst.msk [vmem:[%s170 + $0x1e0] sm:$0xff] %vm4024, %v3956
      %4086 = vst.msk [vmem:[%s170 + $0x1e8] sm:$0xff] %vm4024, %v3957
      %4087 = vst.msk [vmem:[%s170 + $0x1f0] sm:$0xff] %vm4024, %v3958
      %4088 = vst.msk [vmem:[%s170 + $0x1f8] sm:$0xff] %vm4024, %v3959
      %4089 = vst.msk [vmem:[%s170 + $0x200] sm:$0xff] %vm4024, %v3960
      %4090 = vst.msk [vmem:[%s170 + $0x208] sm:$0xff] %vm4024, %v3961
      %4091 = vst.msk [vmem:[%s170 + $0x210] sm:$0xff] %vm4024, %v3962
      %4092 = vst.msk [vmem:[%s170 + $0x218] sm:$0xff] %vm4024, %v3963
      %4093 = vst.msk [vmem:[%s170 + $0x220] sm:$0xff] %vm4024, %v3964
      %4094 = vst.msk [vmem:[%s170 + $0x228] sm:$0xff] %vm4024, %v3965
      %4095 = vst.msk [vmem:[%s170 + $0x230] sm:$0xff] %vm4024, %v3966
      %4096 = vst.msk [vmem:[%s170 + $0x238] sm:$0xff] %vm4024, %v3967
      %4097 = vst.msk [vmem:[%s170 + $0x240] sm:$0xff] %vm4024, %v3968
      %4098 = vst.msk [vmem:[%s170 + $0x248] sm:$0xff] %vm4024, %v3969
      %4099 = vst.msk [vmem:[%s170 + $0x250] sm:$0xff] %vm4024, %v3970
      %4100 = vst.msk [vmem:[%s170 + $0x258] sm:$0xff] %vm4024, %v3971
      %4101 = vst.msk [vmem:[%s170 + $0x260] sm:$0xff] %vm4024, %v3972
      %4102 = vst.msk [vmem:[%s170 + $0x268] sm:$0xff] %vm4024, %v3973
      %4103 = vst.msk [vmem:[%s170 + $0x270] sm:$0xff] %vm4024, %v3974
      %4104 = vst.msk [vmem:[%s170 + $0x278] sm:$0xff] %vm4024, %v3975
      %4105 = vst.msk [vmem:[%s170 + $0x280] sm:$0xff] %vm4024, %v3976
      %4106 = vst.msk [vmem:[%s170 + $0x288] sm:$0xff] %vm4024, %v3977
      %4107 = vst.msk [vmem:[%s170 + $0x290] sm:$0xff] %vm4024, %v3978
      %4108 = vst.msk [vmem:[%s170 + $0x298] sm:$0xff] %vm4024, %v3979
      %4109 = vst.msk [vmem:[%s170 + $0x2a0] sm:$0xff] %vm4024, %v3980
      %4110 = vst.msk [vmem:[%s170 + $0x2a8] sm:$0xff] %vm4024, %v3981
      %4111 = vst.msk [vmem:[%s170 + $0x2b0] sm:$0xff] %vm4024, %v3982
      %4112 = vst.msk [vmem:[%s170 + $0x2b8] sm:$0xff] %vm4024, %v3983
      %4113 = vst.msk [vmem:[%s170 + $0x2c0] sm:$0xff] %vm4024, %v3984
      %4114 = vst.msk [vmem:[%s170 + $0x2c8] sm:$0xff] %vm4024, %v3985
      %4115 = vst.msk [vmem:[%s170 + $0x2d0] sm:$0xff] %vm4024, %v3986
      %4116 = vst.msk [vmem:[%s170 + $0x2d8] sm:$0xff] %vm4024, %v3987
      %4117 = vst.msk [vmem:[%s170 + $0x2e0] sm:$0xff] %vm4024, %v3988
      %4118 = vst.msk [vmem:[%s170 + $0x2e8] sm:$0xff] %vm4024, %v3989
      %4119 = vst.msk [vmem:[%s170 + $0x2f0] sm:$0xff] %vm4024, %v3990
      %4120 = vst.msk [vmem:[%s170 + $0x2f8] sm:$0xff] %vm4024, %v3991
      %4121 = vst.msk [vmem:[%s170 + $0x300] sm:$0xff] %vm4024, %v3992
      %4122 = vst.msk [vmem:[%s170 + $0x308] sm:$0xff] %vm4024, %v3993
      %4123 = vst.msk [vmem:[%s170 + $0x310] sm:$0xff] %vm4024, %v3994
      %4124 = vst.msk [vmem:[%s170 + $0x318] sm:$0xff] %vm4024, %v3995
      %4125 = vst.msk [vmem:[%s170 + $0x320] sm:$0xff] %vm4024, %v3996
      %4126 = vst.msk [vmem:[%s170 + $0x328] sm:$0xff] %vm4024, %v3997
      %4127 = vst.msk [vmem:[%s170 + $0x330] sm:$0xff] %vm4024, %v3998
      %4128 = vst.msk [vmem:[%s170 + $0x338] sm:$0xff] %vm4024, %v3999
      %4129 = vst.msk [vmem:[%s170 + $0x340] sm:$0xff] %vm4024, %v4000
      %4130 = vst.msk [vmem:[%s170 + $0x348] sm:$0xff] %vm4024, %v4001
      %4131 = vst.msk [vmem:[%s170 + $0x350] sm:$0xff] %vm4024, %v4002
      %4132 = vst.msk [vmem:[%s170 + $0x358] sm:$0xff] %vm4024, %v4003
      %4133 = vst.msk [vmem:[%s170 + $0x360] sm:$0xff] %vm4024, %v4004
      %4134 = vst.msk [vmem:[%s170 + $0x368] sm:$0xff] %vm4024, %v4005
      %4135 = vst.msk [vmem:[%s170 + $0x370] sm:$0xff] %vm4024, %v4006
      %4136 = vst.msk [vmem:[%s170 + $0x378] sm:$0xff] %vm4024, %v4007
      %4137 = vst.msk [vmem:[%s170 + $0x380] sm:$0xff] %vm4024, %v4008
      %4138 = vst.msk [vmem:[%s170 + $0x388] sm:$0xff] %vm4024, %v4009
      %4139 = vst.msk [vmem:[%s170 + $0x390] sm:$0xff] %vm4024, %v4010
      %4140 = vst.msk [vmem:[%s170 + $0x398] sm:$0xff] %vm4024, %v4011
      %4141 = vst.msk [vmem:[%s170 + $0x3a0] sm:$0xff] %vm4024, %v4012
      %4142 = vst.msk [vmem:[%s170 + $0x3a8] sm:$0xff] %vm4024, %v4013
      %4143 = vst.msk [vmem:[%s170 + $0x3b0] sm:$0xff] %vm4024, %v4014
      %4144 = vst.msk [vmem:[%s170 + $0x3b8] sm:$0xff] %vm4024, %v4015
      %4145 = vst.msk [vmem:[%s170 + $0x3c0] sm:$0xff] %vm4024, %v4016
      %4146 = vst.msk [vmem:[%s170 + $0x3c8] sm:$0xff] %vm4024, %v4017
      %4147 = vst.msk [vmem:[%s170 + $0x3d0] sm:$0xff] %vm4024, %v4018
      %4148 = vst.msk [vmem:[%s170 + $0x3d8] sm:$0xff] %vm4024, %v4019
      %4149 = vst.msk [vmem:[%s170 + $0x3e0] sm:$0xff] %vm4024, %v4020
      %4150 = vst.msk [vmem:[%s170 + $0x3e8] sm:$0xff] %vm4024, %v4021
      %4151 = vst.msk [vmem:[%s170 + $0x3f0] sm:$0xff] %vm4024, %v4022
      %4152 = vst.msk [vmem:[%s170 + $0x3f8] sm:$0xff] %vm4024, %v4023
      %p4153 = scmp.lt.s32.totalorder %s14, 1
      %s4154 = scalar_select %p4153, %s14, 1
      %s4155 = smul.addr %s4154, 128
      %s4156 = smul.addr %s4155, 8
      %s4157 = scalar_lea.vmem %s3, %s4156
      // Predicated region
      $region33: #{tpu_custom_call.1} parent=31 // pred_check
        %p4158 = pneg %p100
      $region34: #{tpu_custom_call.1} parent=31 // pred_check_branch
        %4160 = sbr.rel (%p4158) target = $region36
      $region35: #{tpu_custom_call.1} parent=31 // pred_region
        _
      $region36: #{tpu_custom_call.1} parent=31 // pred_fallthru
        _
    $region32: #{tpu_custom_call.1} parent=5 // pred_fallthru
      _
    %p4161 = scmp.le.s32.totalorder 2, %s9
    // Predicated region
    $region37: #{tpu_custom_call.1} parent=5 // pred_check
      %p4162 = pneg %p4161
    $region38: #{tpu_custom_call.1} parent=5 // pred_check_branch
      %4164 = sbr.rel (%p4162) target = $region40
    $region39: #{tpu_custom_call.1} parent=5 // pred_region
      %s4165 = ssub.s32 %s9, 2
      // Predicated region
      $region41: #{tpu_custom_call.1} parent=39 // pred_check
        %p4166 = pneg %p106
      $region42: #{tpu_custom_call.1} parent=39 // pred_check_branch
        %4168 = sbr.rel (%p4166) target = $region44
      $region43: #{tpu_custom_call.1} parent=39 // pred_region
        %p4169 = scmp.lt.s32.totalorder %s15, 1
        %s4170 = scalar_select %p4169, %s15, 1
        %s4171 = smul.addr %s4170, 128
        %s4172 = smul.addr %s4171, 8
        %s4173 = scalar_lea.vmem %s3, %s4172
      $region44: #{tpu_custom_call.1} parent=39 // pred_fallthru
        _
    $region40: #{tpu_custom_call.1} parent=5 // pred_fallthru
      _
  $region6: #{tpu_custom_call.1} parent=0 // loop_footer
    %s13 = sadd.s32 1, %s9
  $region7: #{tpu_custom_call.1} parent=0 // loop_footer_branch
    %8 = sbr.rel target = $region3
  $region8: #{tpu_custom_call.1} parent=0 // loop_exit
    _

</llo_original>
